<compile_context>
chip_gen: v7x
topology: tpu7x:2x2x1
jax: 0.10.0
libtpu: 0.0.40
codegen_flags: <defaults>
</compile_context>

<pallas_src>
import numpy as np
import jax
import jax.numpy as jnp
from jax.experimental import pallas as pl
from jax.experimental.pallas import tpu as pltpu


def _round_up(x, m):
    return ((x + m - 1) // m) * m


# ---------------------------------------------------------------------------
# Fused, tiled 1x1-conv projections:  q = x @ Wq + bq,  k = y @ Wk + bk,
# v = y @ Wv + bv  (per-token matmuls over channels).
# ---------------------------------------------------------------------------
def _proj_kernel(x_ref, y_ref, wq_ref, wk_ref, wv_ref, bq_ref, bk_ref, bv_ref,
                 q_ref, k_ref, v_ref):
    xv = x_ref[...]            # (TN, C)
    yv = y_ref[...]            # (TN, C)   -- read once, used for both k and v
    q_ref[...] = (jnp.dot(xv, wq_ref[...], preferred_element_type=jnp.float32)
                  + bq_ref[...])
    k_ref[...] = (jnp.dot(yv, wk_ref[...], preferred_element_type=jnp.float32)
                  + bk_ref[...])
    v_ref[...] = (jnp.dot(yv, wv_ref[...], preferred_element_type=jnp.float32)
                  + bv_ref[...])


def qkv_projection(x_tok, y_tok, wq, bq, wk, bk, wv, bv, *, tn=512):
    n, c = x_tok.shape
    c8 = wq.shape[1]

    # Row-tile size: big enough to pipeline well, multiple of 8 (sublanes).
    tn = min(tn, _round_up(n, 8))
    n_pad = _round_up(n, tn)
    if n_pad != n:
        pad = ((0, n_pad - n), (0, 0))
        x_tok = jnp.pad(x_tok, pad)
        y_tok = jnp.pad(y_tok, pad)

    row_spec = pl.BlockSpec((tn, c), lambda i: (i, 0))
    w_spec = lambda co: pl.BlockSpec((c, co), lambda i: (0, 0))   # resident
    b_spec = lambda co: pl.BlockSpec((1, co), lambda i: (0, 0))   # resident

    q, k, v = pl.pallas_call(
        _proj_kernel,
        grid=(n_pad // tn,),
        in_specs=[row_spec, row_spec,
                  w_spec(c8), w_spec(c8), w_spec(c),
                  b_spec(c8), b_spec(c8), b_spec(c)],
        out_specs=[pl.BlockSpec((tn, c8), lambda i: (i, 0)),
                   pl.BlockSpec((tn, c8), lambda i: (i, 0)),
                   pl.BlockSpec((tn, c), lambda i: (i, 0))],
        out_shape=(jax.ShapeDtypeStruct((n_pad, c8), jnp.float32),
                   jax.ShapeDtypeStruct((n_pad, c8), jnp.float32),
                   jax.ShapeDtypeStruct((n_pad, c), jnp.float32)),
        compiler_params=pltpu.CompilerParams(
            dimension_semantics=("parallel",)),
    )(x_tok, y_tok, wq, wk, wv,
      bq.reshape(1, c8), bk.reshape(1, c8), bv.reshape(1, c))

    if n_pad != n:
        q, k, v = q[:n], k[:n], v[:n]
    return q, k, v


# ---------------------------------------------------------------------------
# Criss-cross attention core (per batch element), single fused output.
# ---------------------------------------------------------------------------
def _cca_attention_kernel(gamma_ref, q_ref, k_ref, v_ref, x_ref, o_ref):
    gamma = gamma_ref[0]
    q_hw = q_ref[0]            # (H, W, C8)
    k_hw = k_ref[0]            # (H, W, C8)
    v_hw = v_ref[0]            # (H, W, C)
    x = x_ref[0]               # (H, W, C)

    h = q_hw.shape[0]

    # Build the column-major ("wh") views once, in VMEM, on the XLU; no
    # duplicate HBM copies of q/k/v are ever materialized.
    q_wh = pltpu.einshape("hwc->whc", q_hw)    # (W, H, C8)
    k_wh = pltpu.einshape("hwc->whc", k_hw)    # (W, H, C8)
    v_wh = pltpu.einshape("hwc->whc", v_hw)    # (W, H, C)

    # bf16 operands for the score matmuls (MXU-native), f32 accumulation.
    qb_hw = q_hw.astype(jnp.bfloat16)
    kb_hw = k_hw.astype(jnp.bfloat16)
    qb_wh = q_wh.astype(jnp.bfloat16)
    kb_wh = k_wh.astype(jnp.bfloat16)

    # Column ("H") attention scores, batched over the column index w:
    #   s_h[w, h, g] = <q[:, h, w], k[:, g, w]>   (-inf on the h == g diagonal)
    s_h = jnp.einsum('whc,wgc->whg', qb_wh, kb_wh,
                     preferred_element_type=jnp.float32)            # (W, H, H)
    ri = jax.lax.broadcasted_iota(jnp.int32, (h, h), 0)
    ci = jax.lax.broadcasted_iota(jnp.int32, (h, h), 1)
    s_h = jnp.where((ri == ci)[None, :, :], -jnp.inf, s_h)

    # Row ("W") attention scores, batched over the row index h:
    #   s_w[h, w, g] = <q[:, h, w], k[:, h, g]>
    s_w = jnp.einsum('hwc,hgc->hwg', qb_hw, kb_hw,
                     preferred_element_type=jnp.float32)            # (H, W, W)

    # Joint softmax per pixel (h, w) over the concatenated (H + W) scores.
    m_hw = jnp.maximum(jnp.max(s_h, axis=-1).T, jnp.max(s_w, axis=-1))  # (H, W)
    m_wh = m_hw.T                                                       # (W, H)
    p_h = jnp.exp(s_h - m_wh[:, :, None])                               # (W, H, H)
    p_w = jnp.exp(s_w - m_hw[:, :, None])                               # (H, W, W)
    denom_hw = jnp.sum(p_h, axis=-1).T + jnp.sum(p_w, axis=-1)          # (H, W)
    inv_hw = pl.reciprocal(denom_hw, approx=True)   # EUP slot, ~free
    inv_wh = inv_hw.T
    att_h = p_h * inv_wh[:, :, None]                                    # (W, H, H)
    att_w = p_w * inv_hw[:, :, None]                                    # (H, W, W)

    # Weighted sums of values (f32 for accuracy).
    out_h_wh = jnp.einsum('whg,wgc->whc', att_h, v_wh,
                          preferred_element_type=jnp.float32)           # (W, H, C)
    out_w_hw = jnp.einsum('hwg,hgc->hwc', att_w, v_hw,
                          preferred_element_type=jnp.float32)           # (H, W, C)

    # Fused recombination: transpose column branch back to hw in VMEM and
    # emit a single output (no extra HBM write + XLA transpose/add pass).
    out_h_hw = pltpu.einshape("whc->hwc", out_h_wh)                     # (H, W, C)
    o_ref[0] = gamma * (out_h_hw + out_w_hw) + x


def cca_attention(gamma, q_hw, k_hw, v_hw, x_hw):
    b, h, w, c8 = q_hw.shape
    c = v_hw.shape[-1]
    bmap = lambda i: (i, 0, 0, 0)
    return pl.pallas_call(
        _cca_attention_kernel,
        grid=(b,),
        in_specs=[
            pl.BlockSpec(memory_space=pltpu.MemorySpace.SMEM),   # gamma (1,)
            pl.BlockSpec((1, h, w, c8), bmap),                   # q_hw
            pl.BlockSpec((1, h, w, c8), bmap),                   # k_hw
            pl.BlockSpec((1, h, w, c), bmap),                    # v_hw
            pl.BlockSpec((1, h, w, c), bmap),                    # x_hw (residual)
        ],
        out_specs=pl.BlockSpec((1, h, w, c), bmap),
        out_shape=jax.ShapeDtypeStruct((b, h, w, c), jnp.float32),
        input_output_aliases={4: 0},      # residual buffer reused for output
        compiler_params=pltpu.CompilerParams(
            dimension_semantics=("parallel",),
            vmem_limit_bytes=32 * 1024 * 1024),
    )(gamma, q_hw, k_hw, v_hw, x_hw)


# ---------------------------------------------------------------------------
# Full forward pass (NCHW in / NCHW out, like the PyTorch module)
# ---------------------------------------------------------------------------
@jax.jit
def criss_cross_attention(x, y, params):
    b, c, h, w = x.shape
    c8 = c // 8

    x_hw = jnp.transpose(x, (0, 2, 3, 1))             # (B, H, W, C)
    y_hw = jnp.transpose(y, (0, 2, 3, 1))
    x_tok = x_hw.reshape(b * h * w, c)
    y_tok = y_hw.reshape(b * h * w, c)

    # Fused, tiled 1x1 convolutions.
    q, k, v = qkv_projection(x_tok, y_tok,
                             params['wq'], params['bq'],
                             params['wk'], params['bk'],
                             params['wv'], params['bv'])

    q_hw = q.reshape(b, h, w, c8)
    k_hw = k.reshape(b, h, w, c8)
    v_hw = v.reshape(b, h, w, c)

    out_hw = cca_attention(params['gamma'], q_hw, k_hw, v_hw, x_hw)
    return jnp.transpose(out_hw, (0, 3, 1, 2))        # NCHW


# ---------------------------------------------------------------------------
# Pure-JAX reference (direct transcription of the PyTorch forward)
# ---------------------------------------------------------------------------
def criss_cross_attention_reference(x, y, params):
    _, _, h, _ = x.shape
    hp = jax.lax.Precision.HIGHEST

    def conv(inp, wt, bias):
        return jnp.einsum('bchw,cd->bdhw', inp, wt,
                          precision=hp) + bias[None, :, None, None]

    q = conv(x, params['wq'], params['bq'])
    k = conv(y, params['wk'], params['bk'])
    v = conv(y, params['wv'], params['bv'])

    e_h = jnp.einsum('bchw,bcgw->bhwg', q, k, precision=hp)
    diag = jnp.eye(h, dtype=bool)[None, :, None, :]
    e_h = jnp.where(diag, -jnp.inf, e_h)
    e_w = jnp.einsum('bchw,bchg->bhwg', q, k, precision=hp)

    att = jax.nn.softmax(jnp.concatenate([e_h, e_w], axis=-1), axis=-1)
    att_h, att_w = att[..., :h], att[..., h:]

    out_h = jnp.einsum('bhwg,bcgw->bchw', att_h, v, precision=hp)
    out_w = jnp.einsum('bhwg,bchg->bchw', att_w, v, precision=hp)
    return params['gamma'][0] * (out_h + out_w) + x


# ---------------------------------------------------------------------------
if __name__ == "__main__":
    B, C, H, W = 2, 16, 8, 8           # in_dim = 16  ->  query/key channels = 2
    C8 = C // 8

    key = jax.random.PRNGKey(0)
    ks = jax.random.split(key, 8)
    x = jax.random.normal(ks[0], (B, C, H, W), jnp.float32)
    y = jax.random.normal(ks[1], (B, C, H, W), jnp.float32)

    params = {
        'wq': 0.1 * jax.random.normal(ks[2], (C, C8), jnp.float32),
        'bq': 0.1 * jax.random.normal(ks[3], (C8,), jnp.float32),
        'wk': 0.1 * jax.random.normal(ks[4], (C, C8), jnp.float32),
        'bk': 0.1 * jax.random.normal(ks[5], (C8,), jnp.float32),
        'wv': 0.1 * jax.random.normal(ks[6], (C, C), jnp.float32),
        'bv': 0.1 * jax.random.normal(ks[7], (C,), jnp.float32),
        'gamma': jnp.zeros((1,), jnp.float32),   # as in the module __init__
        'beta': jnp.zeros((1,), jnp.float32),    # TODO(synk): beta is defined in __init__ but never used in forward
    }

    # Tolerances account for bf16 score matmuls + EUP approximate reciprocal
    # vs a Precision.HIGHEST f32 reference.
    RTOL, ATOL = 1e-2, 1e-2

    # Module-default parameters (gamma = 0): output must equal x.
    out = jax.block_until_ready(criss_cross_attention(x, y, params))
    ref = criss_cross_attention_reference(x, y, params)
    np.testing.assert_allclose(np.asarray(out), np.asarray(ref),
                               rtol=RTOL, atol=ATOL)

    # Exercise the attention math with a non-zero gamma as well.
    params_nz = dict(params, gamma=jnp.array([0.5], jnp.float32))
    out_nz = jax.block_until_ready(criss_cross_attention(x, y, params_nz))
    ref_nz = criss_cross_attention_reference(x, y, params_nz)
    np.testing.assert_allclose(np.asarray(out_nz), np.asarray(ref_nz),
                               rtol=RTOL, atol=ATOL)

    print("KERNEL_OK")
</pallas_src>

<mosaic_0001>
module attributes {stable_mosaic.version = 11 : i64} {
  func.func @_proj_kernel(%arg0: i32, %arg1: memref<128x16xf32, #tpu.memory_space<vmem>>, %arg2: memref<128x16xf32, #tpu.memory_space<vmem>>, %arg3: memref<16x2xf32, #tpu.memory_space<vmem>>, %arg4: memref<16x2xf32, #tpu.memory_space<vmem>>, %arg5: memref<16x16xf32, #tpu.memory_space<vmem>>, %arg6: memref<1x2xf32, #tpu.memory_space<vmem>>, %arg7: memref<1x2xf32, #tpu.memory_space<vmem>>, %arg8: memref<1x16xf32, #tpu.memory_space<vmem>>, %arg9: memref<128x2xf32, #tpu.memory_space<vmem>>, %arg10: memref<128x2xf32, #tpu.memory_space<vmem>>, %arg11: memref<128x16xf32, #tpu.memory_space<vmem>>) attributes {dimension_semantics = [#tpu.dimension_semantics<parallel>], iteration_bounds = array<i64: 1>, scalar_prefetch = 0 : i64, scratch_operands = 0 : i64, tpu.core_type = #tpu.core_type<tc>, window_params = [{transform_indices = @transform_0, window_bounds = array<i64: 128, 16>}, {transform_indices = @transform_1, window_bounds = array<i64: 128, 16>}, {pipeline_mode = #tpu.pipeline_mode<synchronous>, transform_indices = @transform_2, window_bounds = array<i64: 16, 2>}, {pipeline_mode = #tpu.pipeline_mode<synchronous>, transform_indices = @transform_3, window_bounds = array<i64: 16, 2>}, {pipeline_mode = #tpu.pipeline_mode<synchronous>, transform_indices = @transform_4, window_bounds = array<i64: 16, 16>}, {pipeline_mode = #tpu.pipeline_mode<synchronous>, transform_indices = @transform_5, window_bounds = array<i64: 1, 2>}, {pipeline_mode = #tpu.pipeline_mode<synchronous>, transform_indices = @transform_6, window_bounds = array<i64: 1, 2>}, {pipeline_mode = #tpu.pipeline_mode<synchronous>, transform_indices = @transform_7, window_bounds = array<i64: 1, 16>}, {transform_indices = @transform_8, window_bounds = array<i64: 128, 2>}, {transform_indices = @transform_9, window_bounds = array<i64: 128, 2>}, {transform_indices = @transform_10, window_bounds = array<i64: 128, 16>}]} {
    %c0 = arith.constant 0 : index
    %c0_0 = arith.constant 0 : index
    %0 = vector.load %arg1[%c0, %c0_0] : memref<128x16xf32, #tpu.memory_space<vmem>>, vector<128x16xf32>
    %c0_1 = arith.constant 0 : index
    %c0_2 = arith.constant 0 : index
    %1 = vector.load %arg2[%c0_1, %c0_2] : memref<128x16xf32, #tpu.memory_space<vmem>>, vector<128x16xf32>
    %c0_3 = arith.constant 0 : index
    %c0_4 = arith.constant 0 : index
    %2 = vector.load %arg3[%c0_3, %c0_4] : memref<16x2xf32, #tpu.memory_space<vmem>>, vector<16x2xf32>
    %cst = arith.constant dense<0.000000e+00> : vector<128x2xf32>
    %3 = tpu.matmul %0, %2, %cst {dimension_numbers = #tpu.dot_dimension_numbers<[1], [0], [0], [1], [0, 0, 1, 1], [], []>} : vector<128x16xf32>, vector<16x2xf32>, vector<128x2xf32> -> vector<128x2xf32>
    %c0_5 = arith.constant 0 : index
    %c0_6 = arith.constant 0 : index
    %4 = vector.load %arg6[%c0_5, %c0_6] : memref<1x2xf32, #tpu.memory_space<vmem>>, vector<1x2xf32>
    %5 = vector.broadcast %4 : vector<1x2xf32> to vector<128x2xf32>
    %6 = arith.addf %3, %5 : vector<128x2xf32>
    %c0_7 = arith.constant 0 : index
    %c0_8 = arith.constant 0 : index
    %7 = vector.load %arg9[%c0_7, %c0_8] : memref<128x2xf32, #tpu.memory_space<vmem>>, vector<128x2xf32>
    tpu.vector_store %arg9[%c0_7, %c0_8], %6 {strides = array<i32>} : memref<128x2xf32, #tpu.memory_space<vmem>>, vector<128x2xf32>,
    %c0_9 = arith.constant 0 : index
    %c0_10 = arith.constant 0 : index
    %8 = vector.load %arg4[%c0_9, %c0_10] : memref<16x2xf32, #tpu.memory_space<vmem>>, vector<16x2xf32>
    %cst_11 = arith.constant dense<0.000000e+00> : vector<128x2xf32>
    %9 = tpu.matmul %1, %8, %cst_11 {dimension_numbers = #tpu.dot_dimension_numbers<[1], [0], [0], [1], [0, 0, 1, 1], [], []>} : vector<128x16xf32>, vector<16x2xf32>, vector<128x2xf32> -> vector<128x2xf32>
    %c0_12 = arith.constant 0 : index
    %c0_13 = arith.constant 0 : index
    %10 = vector.load %arg7[%c0_12, %c0_13] : memref<1x2xf32, #tpu.memory_space<vmem>>, vector<1x2xf32>
    %11 = vector.broadcast %10 : vector<1x2xf32> to vector<128x2xf32>
    %12 = arith.addf %9, %11 : vector<128x2xf32>
    %c0_14 = arith.constant 0 : index
    %c0_15 = arith.constant 0 : index
    %13 = vector.load %arg10[%c0_14, %c0_15] : memref<128x2xf32, #tpu.memory_space<vmem>>, vector<128x2xf32>
    tpu.vector_store %arg10[%c0_14, %c0_15], %12 {strides = array<i32>} : memref<128x2xf32, #tpu.memory_space<vmem>>, vector<128x2xf32>,
    %c0_16 = arith.constant 0 : index
    %c0_17 = arith.constant 0 : index
    %14 = vector.load %arg5[%c0_16, %c0_17] : memref<16x16xf32, #tpu.memory_space<vmem>>, vector<16x16xf32>
    %cst_18 = arith.constant dense<0.000000e+00> : vector<128x16xf32>
    %15 = tpu.matmul %1, %14, %cst_18 {dimension_numbers = #tpu.dot_dimension_numbers<[1], [0], [0], [1], [0, 0, 1, 1], [], []>} : vector<128x16xf32>, vector<16x16xf32>, vector<128x16xf32> -> vector<128x16xf32>
    %c0_19 = arith.constant 0 : index
    %c0_20 = arith.constant 0 : index
    %16 = vector.load %arg8[%c0_19, %c0_20] : memref<1x16xf32, #tpu.memory_space<vmem>>, vector<1x16xf32>
    %17 = vector.broadcast %16 : vector<1x16xf32> to vector<128x16xf32>
    %18 = arith.addf %15, %17 : vector<128x16xf32>
    %c0_21 = arith.constant 0 : index
    %c0_22 = arith.constant 0 : index
    %19 = vector.load %arg11[%c0_21, %c0_22] : memref<128x16xf32, #tpu.memory_space<vmem>>, vector<128x16xf32>
    tpu.vector_store %arg11[%c0_21, %c0_22], %18 {strides = array<i32>} : memref<128x16xf32, #tpu.memory_space<vmem>>, vector<128x16xf32>,
    return
  }
  func.func @transform_0(%arg0: i32) -> (i32, i32) {
    %c0_i32 = arith.constant 0 : i32
    %c0_i32_0 = arith.constant 0 : i32
    return %arg0, %c0_i32 : i32, i32
  }
  func.func @transform_1(%arg0: i32) -> (i32, i32) {
    %c0_i32 = arith.constant 0 : i32
    %c0_i32_0 = arith.constant 0 : i32
    return %arg0, %c0_i32 : i32, i32
  }
  func.func @transform_2(%arg0: i32) -> (i32, i32) {
    %c0_i32 = arith.constant 0 : i32
    %c0_i32_0 = arith.constant 0 : i32
    %c0_i32_1 = arith.constant 0 : i32
    return %c0_i32, %c0_i32_0 : i32, i32
  }
  func.func @transform_3(%arg0: i32) -> (i32, i32) {
    %c0_i32 = arith.constant 0 : i32
    %c0_i32_0 = arith.constant 0 : i32
    %c0_i32_1 = arith.constant 0 : i32
    return %c0_i32, %c0_i32_0 : i32, i32
  }
  func.func @transform_4(%arg0: i32) -> (i32, i32) {
    %c0_i32 = arith.constant 0 : i32
    %c0_i32_0 = arith.constant 0 : i32
    %c0_i32_1 = arith.constant 0 : i32
    return %c0_i32, %c0_i32_0 : i32, i32
  }
  func.func @transform_5(%arg0: i32) -> (i32, i32) {
    %c0_i32 = arith.constant 0 : i32
    %c0_i32_0 = arith.constant 0 : i32
    %c0_i32_1 = arith.constant 0 : i32
    return %c0_i32, %c0_i32_0 : i32, i32
  }
  func.func @transform_6(%arg0: i32) -> (i32, i32) {
    %c0_i32 = arith.constant 0 : i32
    %c0_i32_0 = arith.constant 0 : i32
    %c0_i32_1 = arith.constant 0 : i32
    return %c0_i32, %c0_i32_0 : i32, i32
  }
  func.func @transform_7(%arg0: i32) -> (i32, i32) {
    %c0_i32 = arith.constant 0 : i32
    %c0_i32_0 = arith.constant 0 : i32
    %c0_i32_1 = arith.constant 0 : i32
    return %c0_i32, %c0_i32_0 : i32, i32
  }
  func.func @transform_8(%arg0: i32) -> (i32, i32) {
    %c0_i32 = arith.constant 0 : i32
    %c0_i32_0 = arith.constant 0 : i32
    return %arg0, %c0_i32 : i32, i32
  }
  func.func @transform_9(%arg0: i32) -> (i32, i32) {
    %c0_i32 = arith.constant 0 : i32
    %c0_i32_0 = arith.constant 0 : i32
    return %arg0, %c0_i32 : i32, i32
  }
  func.func @transform_10(%arg0: i32) -> (i32, i32) {
    %c0_i32 = arith.constant 0 : i32
    %c0_i32_0 = arith.constant 0 : i32
    return %arg0, %c0_i32 : i32, i32
  }
}

module attributes {stable_mosaic.version = 11 : i64} {
  func.func @_cca_attention_kernel(%arg0: i32, %arg1: memref<1xf32, #tpu.memory_space<smem>>, %arg2: memref<1x8x8x2xf32, #tpu.memory_space<vmem>>, %arg3: memref<1x8x8x2xf32, #tpu.memory_space<vmem>>, %arg4: memref<1x8x8x16xf32, #tpu.memory_space<vmem>>, %arg5: memref<1x8x8x16xf32, #tpu.memory_space<vmem>>, %arg6: memref<1x8x8x16xf32, #tpu.memory_space<vmem>>) attributes {dimension_semantics = [#tpu.dimension_semantics<parallel>], iteration_bounds = array<i64: 2>, scalar_prefetch = 0 : i64, scratch_operands = 0 : i64, tpu.core_type = #tpu.core_type<tc>, window_params = [{transform_indices = @transform_0, window_bounds = array<i64: 1>}, {transform_indices = @transform_1, window_bounds = array<i64: 1, 8, 8, 2>}, {transform_indices = @transform_2, window_bounds = array<i64: 1, 8, 8, 2>}, {transform_indices = @transform_3, window_bounds = array<i64: 1, 8, 8, 16>}, {transform_indices = @transform_4, window_bounds = array<i64: 1, 8, 8, 16>}, {transform_indices = @transform_5, window_bounds = array<i64: 1, 8, 8, 16>}]} {
    %c0 = arith.constant 0 : index
    %0 = memref.load %arg1[%c0] : memref<1xf32, #tpu.memory_space<smem>>
    %c0_0 = arith.constant 0 : index
    %c0_1 = arith.constant 0 : index
    %c0_2 = arith.constant 0 : index
    %c0_3 = arith.constant 0 : index
    %1 = vector.load %arg2[%c0_0, %c0_1, %c0_2, %c0_3] : memref<1x8x8x2xf32, #tpu.memory_space<vmem>>, vector<1x8x8x2xf32>
    %2 = vector.shape_cast %1 : vector<1x8x8x2xf32> to vector<8x8x2xf32>
    %c0_4 = arith.constant 0 : index
    %c0_5 = arith.constant 0 : index
    %c0_6 = arith.constant 0 : index
    %c0_7 = arith.constant 0 : index
    %3 = vector.load %arg3[%c0_4, %c0_5, %c0_6, %c0_7] : memref<1x8x8x2xf32, #tpu.memory_space<vmem>>, vector<1x8x8x2xf32>
    %4 = vector.shape_cast %3 : vector<1x8x8x2xf32> to vector<8x8x2xf32>
    %c0_8 = arith.constant 0 : index
    %c0_9 = arith.constant 0 : index
    %c0_10 = arith.constant 0 : index
    %c0_11 = arith.constant 0 : index
    %5 = vector.load %arg4[%c0_8, %c0_9, %c0_10, %c0_11] : memref<1x8x8x16xf32, #tpu.memory_space<vmem>>, vector<1x8x8x16xf32>
    %6 = vector.shape_cast %5 : vector<1x8x8x16xf32> to vector<8x8x16xf32>
    %c0_12 = arith.constant 0 : index
    %c0_13 = arith.constant 0 : index
    %c0_14 = arith.constant 0 : index
    %c0_15 = arith.constant 0 : index
    %7 = vector.load %arg5[%c0_12, %c0_13, %c0_14, %c0_15] : memref<1x8x8x16xf32, #tpu.memory_space<vmem>>, vector<1x8x8x16xf32>
    %8 = vector.shape_cast %7 : vector<1x8x8x16xf32> to vector<8x8x16xf32>
    %9 = tpu.transpose %2, [1, 0, 2] : vector<8x8x2xf32> -> vector<8x8x2xf32>
    %10 = tpu.transpose %4, [1, 0, 2] : vector<8x8x2xf32> -> vector<8x8x2xf32>
    %11 = tpu.transpose %6, [1, 0, 2] : vector<8x8x16xf32> -> vector<8x8x16xf32>
    %12 = arith.truncf %2 : vector<8x8x2xf32> to vector<8x8x2xbf16>
    %13 = arith.truncf %4 : vector<8x8x2xf32> to vector<8x8x2xbf16>
    %14 = arith.truncf %9 : vector<8x8x2xf32> to vector<8x8x2xbf16>
    %15 = arith.truncf %10 : vector<8x8x2xf32> to vector<8x8x2xbf16>
    "tpu.trace_start"() <{level = 10 : i32, message = "whc,wgc->whg"}> : () -> ()
    %cst = arith.constant dense<0.000000e+00> : vector<8x8x8xf32>
    %16 = tpu.matmul %14, %15, %cst {dimension_numbers = #tpu.dot_dimension_numbers<[2], [2], [1], [1], [0, 0, 0, 1, 1, 1], [0], [0]>} : vector<8x8x2xbf16>, vector<8x8x2xbf16>, vector<8x8x8xf32> -> vector<8x8x8xf32>
    "tpu.trace_stop"() : () -> ()
    %17 = tpu.iota {dimensions = array<i32: 0>} : vector<8x8xi32>
    %18 = tpu.iota {dimensions = array<i32: 1>} : vector<8x8xi32>
    %19 = arith.cmpi eq, %17, %18 : vector<8x8xi32>
    %20 = vector.shape_cast %19 : vector<8x8xi1> to vector<1x8x8xi1>
    %cst_16 = arith.constant 0xFF800000 : f32
    %21 = vector.shape_cast %20 : vector<1x8x8xi1> to vector<1x8x8xi1>
    %22 = vector.broadcast %21 : vector<1x8x8xi1> to vector<8x8x8xi1>
    %23 = vector.broadcast %cst_16 : f32 to vector<8x8x8xf32>
    %24 = arith.select %22, %23, %16 : vector<8x8x8xi1>, vector<8x8x8xf32>
    "tpu.trace_start"() <{level = 10 : i32, message = "hwc,hgc->hwg"}> : () -> ()
    %cst_17 = arith.constant dense<0.000000e+00> : vector<8x8x8xf32>
    %25 = tpu.matmul %12, %13, %cst_17 {dimension_numbers = #tpu.dot_dimension_numbers<[2], [2], [1], [1], [0, 0, 0, 1, 1, 1], [0], [0]>} : vector<8x8x2xbf16>, vector<8x8x2xbf16>, vector<8x8x8xf32> -> vector<8x8x8xf32>
    "tpu.trace_stop"() : () -> ()
    %cst_18 = arith.constant dense<0xFF800000> : vector<8x8xf32>
    %26 = vector.multi_reduction <maximumf>, %24, %cst_18 [2] : vector<8x8x8xf32> to vector<8x8xf32>
    %27 = tpu.transpose %26, [1, 0] : vector<8x8xf32> -> vector<8x8xf32>
    %cst_19 = arith.constant dense<0xFF800000> : vector<8x8xf32>
    %28 = vector.multi_reduction <maximumf>, %25, %cst_19 [2] : vector<8x8x8xf32> to vector<8x8xf32>
    %29 = arith.maximumf %27, %28 : vector<8x8xf32>
    %30 = tpu.transpose %29, [1, 0] : vector<8x8xf32> -> vector<8x8xf32>
    %31 = vector.shape_cast %30 : vector<8x8xf32> to vector<8x8x1xf32>
    %32 = vector.broadcast %31 : vector<8x8x1xf32> to vector<8x8x8xf32>
    %33 = arith.subf %24, %32 : vector<8x8x8xf32>
    %34 = math.exp %33 : vector<8x8x8xf32>
    %35 = vector.shape_cast %29 : vector<8x8xf32> to vector<8x8x1xf32>
    %36 = vector.broadcast %35 : vector<8x8x1xf32> to vector<8x8x8xf32>
    %37 = arith.subf %25, %36 : vector<8x8x8xf32>
    %38 = math.exp %37 : vector<8x8x8xf32>
    %cst_20 = arith.constant dense<0.000000e+00> : vector<8x8xf32>
    %39 = vector.multi_reduction <add>, %34, %cst_20 [2] : vector<8x8x8xf32> to vector<8x8xf32>
    %40 = tpu.transpose %39, [1, 0] : vector<8x8xf32> -> vector<8x8xf32>
    %cst_21 = arith.constant dense<0.000000e+00> : vector<8x8xf32>
    %41 = vector.multi_reduction <add>, %38, %cst_21 [2] : vector<8x8x8xf32> to vector<8x8xf32>
    %42 = arith.addf %40, %41 : vector<8x8xf32>
    %43 = tpu.reciprocal %42 {approx = true} : vector<8x8xf32> -> vector<8x8xf32>
    %44 = tpu.transpose %43, [1, 0] : vector<8x8xf32> -> vector<8x8xf32>
    %45 = vector.shape_cast %44 : vector<8x8xf32> to vector<8x8x1xf32>
    %46 = vector.broadcast %45 : vector<8x8x1xf32> to vector<8x8x8xf32>
    %47 = arith.mulf %34, %46 : vector<8x8x8xf32>
    %48 = vector.shape_cast %43 : vector<8x8xf32> to vector<8x8x1xf32>
    %49 = vector.broadcast %48 : vector<8x8x1xf32> to vector<8x8x8xf32>
    %50 = arith.mulf %38, %49 : vector<8x8x8xf32>
    "tpu.trace_start"() <{level = 10 : i32, message = "whg,wgc->whc"}> : () -> ()
    %cst_22 = arith.constant dense<0.000000e+00> : vector<8x8x16xf32>
    %51 = tpu.matmul %47, %11, %cst_22 {dimension_numbers = #tpu.dot_dimension_numbers<[2], [1], [1], [2], [0, 0, 0, 1, 1, 2], [0], [0]>} : vector<8x8x8xf32>, vector<8x8x16xf32>, vector<8x8x16xf32> -> vector<8x8x16xf32>
    "tpu.trace_stop"() : () -> ()
    "tpu.trace_start"() <{level = 10 : i32, message = "hwg,hgc->hwc"}> : () -> ()
    %cst_23 = arith.constant dense<0.000000e+00> : vector<8x8x16xf32>
    %52 = tpu.matmul %50, %6, %cst_23 {dimension_numbers = #tpu.dot_dimension_numbers<[2], [1], [1], [2], [0, 0, 0, 1, 1, 2], [0], [0]>} : vector<8x8x8xf32>, vector<8x8x16xf32>, vector<8x8x16xf32> -> vector<8x8x16xf32>
    "tpu.trace_stop"() : () -> ()
    %53 = tpu.transpose %51, [1, 0, 2] : vector<8x8x16xf32> -> vector<8x8x16xf32>
    %54 = arith.addf %53, %52 : vector<8x8x16xf32>
    %55 = vector.broadcast %0 : f32 to vector<8x8x16xf32>
    %56 = arith.mulf %55, %54 : vector<8x8x16xf32>
    %57 = arith.addf %56, %8 : vector<8x8x16xf32>
    %c0_24 = arith.constant 0 : index
    %c0_25 = arith.constant 0 : index
    %c0_26 = arith.constant 0 : index
    %c0_27 = arith.constant 0 : index
    %58 = vector.load %arg6[%c0_24, %c0_25, %c0_26, %c0_27] : memref<1x8x8x16xf32, #tpu.memory_space<vmem>>, vector<1x8x8x16xf32>
    %59 = vector.shape_cast %58 : vector<1x8x8x16xf32> to vector<8x8x16xf32>
    %60 = vector.shape_cast %57 : vector<8x8x16xf32> to vector<1x8x8x16xf32>
    tpu.vector_store %arg6[%c0_24, %c0_25, %c0_26, %c0_27], %60 {strides = array<i32>} : memref<1x8x8x16xf32, #tpu.memory_space<vmem>>, vector<1x8x8x16xf32>,
    return
  }
  func.func @transform_0(%arg0: i32) -> i32 {
    %c0_i32 = arith.constant 0 : i32
    %c0_i32_0 = arith.constant 0 : i32
    return %c0_i32 : i32
  }
  func.func @transform_1(%arg0: i32) -> (i32, i32, i32, i32) {
    %c0_i32 = arith.constant 0 : i32
    %c0_i32_0 = arith.constant 0 : i32
    %c0_i32_1 = arith.constant 0 : i32
    %c0_i32_2 = arith.constant 0 : i32
    return %arg0, %c0_i32, %c0_i32_0, %c0_i32_1 : i32, i32, i32, i32
  }
  func.func @transform_2(%arg0: i32) -> (i32, i32, i32, i32) {
    %c0_i32 = arith.constant 0 : i32
    %c0_i32_0 = arith.constant 0 : i32
    %c0_i32_1 = arith.constant 0 : i32
    %c0_i32_2 = arith.constant 0 : i32
    return %arg0, %c0_i32, %c0_i32_0, %c0_i32_1 : i32, i32, i32, i32
  }
  func.func @transform_3(%arg0: i32) -> (i32, i32, i32, i32) {
    %c0_i32 = arith.constant 0 : i32
    %c0_i32_0 = arith.constant 0 : i32
    %c0_i32_1 = arith.constant 0 : i32
    %c0_i32_2 = arith.constant 0 : i32
    return %arg0, %c0_i32, %c0_i32_0, %c0_i32_1 : i32, i32, i32, i32
  }
  func.func @transform_4(%arg0: i32) -> (i32, i32, i32, i32) {
    %c0_i32 = arith.constant 0 : i32
    %c0_i32_0 = arith.constant 0 : i32
    %c0_i32_1 = arith.constant 0 : i32
    %c0_i32_2 = arith.constant 0 : i32
    return %arg0, %c0_i32, %c0_i32_0, %c0_i32_1 : i32, i32, i32, i32
  }
  func.func @transform_5(%arg0: i32) -> (i32, i32, i32, i32) {
    %c0_i32 = arith.constant 0 : i32
    %c0_i32_0 = arith.constant 0 : i32
    %c0_i32_1 = arith.constant 0 : i32
    %c0_i32_2 = arith.constant 0 : i32
    return %arg0, %c0_i32, %c0_i32_0, %c0_i32_1 : i32, i32, i32, i32
  }
}

</mosaic_0001>

<llo_original>
// kernel: criss_cross_attention.2
$region0: #{criss_cross_attention.2}
  #allocation0 [shape = 'u32[]', space=smem, size = 0x4, offset = 0x4, fixed_abs, tag = 'smem constant byte address 0x4 - core index']
  #allocation1 [shape = 'u32[144,128]{1,0:T(1,128)}', space=vmem, size = 0x12000, scoped, tag = 'internal scratch']
  %s0 = inlined_call_operand.vmem [shape: f32[128,16], index: 0, kind: input, shape index: {}]
  %s1 = inlined_call_operand.vmem [shape: f32[128,16], index: 1, kind: input, shape index: {}]
  %s2 = inlined_call_operand.vmem [shape: f32[16,2], index: 2, kind: input, shape index: {}]
  %s3 = inlined_call_operand.vmem [shape: f32[16,2], index: 3, kind: input, shape index: {}]
  %s4 = inlined_call_operand.vmem [shape: f32[16,16], index: 4, kind: input, shape index: {}]
  %s5 = inlined_call_operand.vmem [shape: f32[1,2], index: 5, kind: input, shape index: {}]
  %s6 = inlined_call_operand.vmem [shape: f32[1,2], index: 6, kind: input, shape index: {}]
  %s7 = inlined_call_operand.vmem [shape: f32[1,16], index: 7, kind: input, shape index: {}]
  %s8 = inlined_call_operand.vmem [shape: f32[128,2], index: 8, kind: output, shape index: {0}]
  %s9 = inlined_call_operand.vmem [shape: f32[128,2], index: 9, kind: output, shape index: {1}]
  %s10 = inlined_call_operand.vmem [shape: f32[128,16], index: 10, kind: output, shape index: {2}]
  %11 = xla_tuple %s8, %s9, %s10
  %s12 = sld [smem:[#allocation0]]
  $region58: #{criss_cross_attention.2} parent=0
    _
  %s14 = ssub.s32 1, %s12
  %s15 = scalar_select 0, %s14, %s12
  // Predicated region
  $region2: #{criss_cross_attention.2} parent=0 // pred_check
    _
  $region3: #{criss_cross_attention.2} parent=0 // pred_check_branch
    %17 = sbr.rel (0) target = $region5
  $region4: #{criss_cross_attention.2} parent=0 // pred_region
    _
  $region5: #{criss_cross_attention.2} parent=0 // pred_fallthru
    _
  // Predicated region
  $region6: #{criss_cross_attention.2} parent=0 // pred_check
    _
  $region7: #{criss_cross_attention.2} parent=0 // pred_check_branch
    %19 = sbr.rel (0) target = $region9
  $region8: #{criss_cross_attention.2} parent=0 // pred_region
    _
  $region9: #{criss_cross_attention.2} parent=0 // pred_fallthru
    _
  // Predicated region
  $region10: #{criss_cross_attention.2} parent=0 // pred_check
    _
  $region11: #{criss_cross_attention.2} parent=0 // pred_check_branch
    %21 = sbr.rel (0) target = $region13
  $region12: #{criss_cross_attention.2} parent=0 // pred_region
    _
  $region13: #{criss_cross_attention.2} parent=0 // pred_fallthru
    _
  // Predicated region
  $region14: #{criss_cross_attention.2} parent=0 // pred_check
    _
  $region15: #{criss_cross_attention.2} parent=0 // pred_check_branch
    %23 = sbr.rel (0) target = $region17
  $region16: #{criss_cross_attention.2} parent=0 // pred_region
    _
  $region17: #{criss_cross_attention.2} parent=0 // pred_fallthru
    _
  // Predicated region
  $region18: #{criss_cross_attention.2} parent=0 // pred_check
    _
  $region19: #{criss_cross_attention.2} parent=0 // pred_check_branch
    %25 = sbr.rel (0) target = $region21
  $region20: #{criss_cross_attention.2} parent=0 // pred_region
    _
  $region21: #{criss_cross_attention.2} parent=0 // pred_fallthru
    _
  // Predicated region
  $region22: #{criss_cross_attention.2} parent=0 // pred_check
    _
  $region23: #{criss_cross_attention.2} parent=0 // pred_check_branch
    %27 = sbr.rel (0) target = $region25
  $region24: #{criss_cross_attention.2} parent=0 // pred_region
    _
  $region25: #{criss_cross_attention.2} parent=0 // pred_fallthru
    _
  // Predicated region
  $region26: #{criss_cross_attention.2} parent=0 // pred_check
    _
  $region27: #{criss_cross_attention.2} parent=0 // pred_check_branch
    %29 = sbr.rel (0) target = $region29
  $region28: #{criss_cross_attention.2} parent=0 // pred_region
    _
  $region29: #{criss_cross_attention.2} parent=0 // pred_fallthru
    _
  // Predicated region
  $region30: #{criss_cross_attention.2} parent=0 // pred_check
    _
  $region31: #{criss_cross_attention.2} parent=0 // pred_check_branch
    %31 = sbr.rel (0) target = $region33
  $region32: #{criss_cross_attention.2} parent=0 // pred_region
    _
  $region33: #{criss_cross_attention.2} parent=0 // pred_fallthru
    _
  %v32 = vld [vmem:[%s0] sm:$0xff]
  %v33 = vld [vmem:[%s0 + $0x8] sm:$0xff]
  %v34 = vld [vmem:[%s0 + $0x10] sm:$0xff]
  %v35 = vld [vmem:[%s0 + $0x18] sm:$0xff]
  %v36 = vld [vmem:[%s0 + $0x20] sm:$0xff]
  %v37 = vld [vmem:[%s0 + $0x28] sm:$0xff]
  %v38 = vld [vmem:[%s0 + $0x30] sm:$0xff]
  %v39 = vld [vmem:[%s0 + $0x38] sm:$0xff]
  %v40 = vld [vmem:[%s0 + $0x40] sm:$0xff]
  %v41 = vld [vmem:[%s0 + $0x48] sm:$0xff]
  %v42 = vld [vmem:[%s0 + $0x50] sm:$0xff]
  %v43 = vld [vmem:[%s0 + $0x58] sm:$0xff]
  %v44 = vld [vmem:[%s0 + $0x60] sm:$0xff]
  %v45 = vld [vmem:[%s0 + $0x68] sm:$0xff]
  %v46 = vld [vmem:[%s0 + $0x70] sm:$0xff]
  %v47 = vld [vmem:[%s0 + $0x78] sm:$0xff]
  %v48 = vld [vmem:[%s1] sm:$0xff]
  %v49 = vld [vmem:[%s1 + $0x8] sm:$0xff]
  %v50 = vld [vmem:[%s1 + $0x10] sm:$0xff]
  %v51 = vld [vmem:[%s1 + $0x18] sm:$0xff]
  %v52 = vld [vmem:[%s1 + $0x20] sm:$0xff]
  %v53 = vld [vmem:[%s1 + $0x28] sm:$0xff]
  %v54 = vld [vmem:[%s1 + $0x30] sm:$0xff]
  %v55 = vld [vmem:[%s1 + $0x38] sm:$0xff]
  %v56 = vld [vmem:[%s1 + $0x40] sm:$0xff]
  %v57 = vld [vmem:[%s1 + $0x48] sm:$0xff]
  %v58 = vld [vmem:[%s1 + $0x50] sm:$0xff]
  %v59 = vld [vmem:[%s1 + $0x58] sm:$0xff]
  %v60 = vld [vmem:[%s1 + $0x60] sm:$0xff]
  %v61 = vld [vmem:[%s1 + $0x68] sm:$0xff]
  %v62 = vld [vmem:[%s1 + $0x70] sm:$0xff]
  %v63 = vld [vmem:[%s1 + $0x78] sm:$0xff]
  %v64 = vld [vmem:[%s2] sm:$0xff]
  %v65 = vld [vmem:[%s2 + $0x8] sm:$0xff]
  %v66 = vld [vmem:[%s5] sm:$0x1]
  %v68 = vlaneseq
  %v69 = vshrl.u32 %v68, 7
  %v70 = vsub.s32 0, %v69
  %v71 = vrot.slane %v66, %v70
  %vm73 = vcmask 130048
  %v75 = vsel %vm73, %v32, 0
  %v78 = vsel %vm73, %v33, 0
  %v81 = vsel %vm73, %v34, 0
  %v84 = vsel %vm73, %v35, 0
  %v87 = vsel %vm73, %v36, 0
  %v90 = vsel %vm73, %v37, 0
  %v93 = vsel %vm73, %v38, 0
  %v96 = vsel %vm73, %v39, 0
  %v99 = vsel %vm73, %v40, 0
  %v102 = vsel %vm73, %v41, 0
  %v105 = vsel %vm73, %v42, 0
  %v108 = vsel %vm73, %v43, 0
  %v111 = vsel %vm73, %v44, 0
  %v114 = vsel %vm73, %v45, 0
  %v117 = vsel %vm73, %v46, 0
  %v120 = vsel %vm73, %v47, 0
  %122 = vmatprep.subr.mxu0 0.0
  %123 = vmatpush1.msra.mxu0 %v64
  %124 = vmatprep.subr.mxu0 0.0
  %125 = vmatpush1.msra.mxu0 %v65
  %126 = vmatprep.subr.mxu0 0.0
  %127 = vmatpush1.msra.mxu0 0.0
  %128 = vmatprep.subr.mxu0 0.0
  %129 = vmatpush1.msra.mxu0 0.0
  %130 = vmatprep.subr.mxu0 0.0
  %131 = vmatpush1.msra.mxu0 0.0
  %132 = vmatprep.subr.mxu0 0.0
  %133 = vmatpush1.msra.mxu0 0.0
  %134 = vmatprep.subr.mxu0 0.0
  %135 = vmatpush1.msra.mxu0 0.0
  %136 = vmatprep.subr.mxu0 0.0
  %137 = vmatpush1.msra.mxu0 0.0
  %138 = vmatprep.subr.mxu0 0.0
  %139 = vmatpush1.msra.mxu0 0.0
  %140 = vmatprep.subr.mxu0 0.0
  %141 = vmatpush1.msra.mxu0 0.0
  %142 = vmatprep.subr.mxu0 0.0
  %143 = vmatpush1.msra.mxu0 0.0
  %144 = vmatprep.subr.mxu0 0.0
  %145 = vmatpush1.msra.mxu0 0.0
  %146 = vmatprep.subr.mxu0 0.0
  %147 = vmatpush1.msra.mxu0 0.0
  %148 = vmatprep.subr.mxu0 0.0
  %149 = vmatpush1.msra.mxu0 0.0
  %150 = vmatprep.subr.mxu0 0.0
  %151 = vmatpush1.msra.mxu0 0.0
  %152 = vmatprep.subr.mxu0 0.0
  %153 = vmatpush1.msra.mxu0 0.0
  %154 = vmatprep.subr.mxu0 0.0
  %155 = vmatpush1.msra.mxu0 0.0
  %156 = vmatprep.subr.mxu0 0.0
  %157 = vmatpush1.msra.mxu0 0.0
  %158 = vmatprep.subr.mxu0 0.0
  %159 = vmatpush1.msra.mxu0 0.0
  %160 = vmatprep.subr.mxu0 0.0
  %161 = vmatpush1.msra.mxu0 0.0
  %162 = vmatprep.subr.mxu0 0.0
  %163 = vmatpush1.msra.mxu0 0.0
  %164 = vmatprep.subr.mxu0 0.0
  %165 = vmatpush1.msra.mxu0 0.0
  %166 = vmatprep.subr.mxu0 0.0
  %167 = vmatpush1.msra.mxu0 0.0
  %168 = vmatprep.subr.mxu0 0.0
  %169 = vmatpush1.msra.mxu0 0.0
  %170 = vmatprep.subr.mxu0 0.0
  %171 = vmatpush1.msra.mxu0 0.0
  %172 = vmatprep.subr.mxu0 0.0
  %173 = vmatpush1.msra.mxu0 0.0
  %174 = vmatprep.subr.mxu0 0.0
  %175 = vmatpush1.msra.mxu0 0.0
  %176 = vmatprep.subr.mxu0 0.0
  %177 = vmatpush1.msra.mxu0 0.0
  %178 = vmatprep.subr.mxu0 0.0
  %179 = vmatpush1.msra.mxu0 0.0
  %180 = vmatprep.subr.mxu0 0.0
  %181 = vmatpush1.msra.mxu0 0.0
  %182 = vmatprep.subr.mxu0 0.0
  %183 = vmatpush1.msra.mxu0 0.0
  %184 = vmatprep.subr.mxu0 0.0
  %185 = vmatpush1.msra.mxu0 0.0
  %186 = vmatprep.mubr.f32.mxu0 0.0
  %187 = vmatmul.mubr.f32.gmra.mrb[0].mxu0 %v75
  %v188 = vpop.f32.mrb[0].mxu0
  %v189 = vadd.f32 %v71, %v188
  %v190 = vpop.f32.mrb[0].mxu0
  %191 = vmatprep.mubr.f32.mxu0 0.0
  %192 = vmatmul.mubr.f32.gmra.mrb[0].mxu0 %v78
  %v193 = vpop.f32.mrb[0].mxu0
  %v194 = vadd.f32 %v71, %v193
  %v195 = vpop.f32.mrb[0].mxu0
  %196 = vmatprep.mubr.f32.mxu0 0.0
  %197 = vmatmul.mubr.f32.gmra.mrb[0].mxu0 %v81
  %v198 = vpop.f32.mrb[0].mxu0
  %v199 = vadd.f32 %v71, %v198
  %v200 = vpop.f32.mrb[0].mxu0
  %201 = vmatprep.mubr.f32.mxu0 0.0
  %202 = vmatmul.mubr.f32.gmra.mrb[0].mxu0 %v84
  %v203 = vpop.f32.mrb[0].mxu0
  %v204 = vadd.f32 %v71, %v203
  %v205 = vpop.f32.mrb[0].mxu0
  %206 = vmatprep.mubr.f32.mxu0 0.0
  %207 = vmatmul.mubr.f32.gmra.mrb[0].mxu0 %v87
  %v208 = vpop.f32.mrb[0].mxu0
  %v209 = vadd.f32 %v71, %v208
  %v210 = vpop.f32.mrb[0].mxu0
  %211 = vmatprep.mubr.f32.mxu0 0.0
  %212 = vmatmul.mubr.f32.gmra.mrb[0].mxu0 %v90
  %v213 = vpop.f32.mrb[0].mxu0
  %v214 = vadd.f32 %v71, %v213
  %v215 = vpop.f32.mrb[0].mxu0
  %216 = vmatprep.mubr.f32.mxu0 0.0
  %217 = vmatmul.mubr.f32.gmra.mrb[0].mxu0 %v93
  %v218 = vpop.f32.mrb[0].mxu0
  %v219 = vadd.f32 %v71, %v218
  %v220 = vpop.f32.mrb[0].mxu0
  %221 = vmatprep.mubr.f32.mxu0 0.0
  %222 = vmatmul.mubr.f32.gmra.mrb[0].mxu0 %v96
  %v223 = vpop.f32.mrb[0].mxu0
  %v224 = vadd.f32 %v71, %v223
  %v225 = vpop.f32.mrb[0].mxu0
  %226 = vmatprep.mubr.f32.mxu0 0.0
  %227 = vmatmul.mubr.f32.gmra.mrb[0].mxu0 %v99
  %v228 = vpop.f32.mrb[0].mxu0
  %v229 = vadd.f32 %v71, %v228
  %v230 = vpop.f32.mrb[0].mxu0
  %231 = vmatprep.mubr.f32.mxu0 0.0
  %232 = vmatmul.mubr.f32.gmra.mrb[0].mxu0 %v102
  %v233 = vpop.f32.mrb[0].mxu0
  %v234 = vadd.f32 %v71, %v233
  %v235 = vpop.f32.mrb[0].mxu0
  %236 = vmatprep.mubr.f32.mxu0 0.0
  %237 = vmatmul.mubr.f32.gmra.mrb[0].mxu0 %v105
  %v238 = vpop.f32.mrb[0].mxu0
  %v239 = vadd.f32 %v71, %v238
  %v240 = vpop.f32.mrb[0].mxu0
  %241 = vmatprep.mubr.f32.mxu0 0.0
  %242 = vmatmul.mubr.f32.gmra.mrb[0].mxu0 %v108
  %v243 = vpop.f32.mrb[0].mxu0
  %v244 = vadd.f32 %v71, %v243
  %v245 = vpop.f32.mrb[0].mxu0
  %246 = vmatprep.mubr.f32.mxu0 0.0
  %247 = vmatmul.mubr.f32.gmra.mrb[0].mxu0 %v111
  %v248 = vpop.f32.mrb[0].mxu0
  %v249 = vadd.f32 %v71, %v248
  %v250 = vpop.f32.mrb[0].mxu0
  %251 = vmatprep.mubr.f32.mxu0 0.0
  %252 = vmatmul.mubr.f32.gmra.mrb[0].mxu0 %v114
  %v253 = vpop.f32.mrb[0].mxu0
  %v254 = vadd.f32 %v71, %v253
  %v255 = vpop.f32.mrb[0].mxu0
  %256 = vmatprep.mubr.f32.mxu0 0.0
  %257 = vmatmul.mubr.f32.gmra.mrb[0].mxu0 %v117
  %v258 = vpop.f32.mrb[0].mxu0
  %v259 = vadd.f32 %v71, %v258
  %v260 = vpop.f32.mrb[0].mxu0
  %261 = vmatprep.mubr.f32.mxu0 0.0
  %262 = vmatmul.mubr.f32.gmra.mrb[0].mxu0 %v120
  %v263 = vpop.f32.mrb[0].mxu0
  %v264 = vadd.f32 %v71, %v263
  %v265 = vpop.f32.mrb[0].mxu0
  %266 = vdwg.mxu0
  %vm267 = vcmask 15360
  %268 = vst.msk [vmem:[%s8] sm:$0xff] %vm267, %v189
  %269 = vst.msk [vmem:[%s8 + $0x8] sm:$0xff] %vm267, %v194
  %270 = vst.msk [vmem:[%s8 + $0x10] sm:$0xff] %vm267, %v199
  %271 = vst.msk [vmem:[%s8 + $0x18] sm:$0xff] %vm267, %v204
  %272 = vst.msk [vmem:[%s8 + $0x20] sm:$0xff] %vm267, %v209
  %273 = vst.msk [vmem:[%s8 + $0x28] sm:$0xff] %vm267, %v214
  %274 = vst.msk [vmem:[%s8 + $0x30] sm:$0xff] %vm267, %v219
  %275 = vst.msk [vmem:[%s8 + $0x38] sm:$0xff] %vm267, %v224
  %276 = vst.msk [vmem:[%s8 + $0x40] sm:$0xff] %vm267, %v229
  %277 = vst.msk [vmem:[%s8 + $0x48] sm:$0xff] %vm267, %v234
  %278 = vst.msk [vmem:[%s8 + $0x50] sm:$0xff] %vm267, %v239
  %279 = vst.msk [vmem:[%s8 + $0x58] sm:$0xff] %vm267, %v244
  %280 = vst.msk [vmem:[%s8 + $0x60] sm:$0xff] %vm267, %v249
  %281 = vst.msk [vmem:[%s8 + $0x68] sm:$0xff] %vm267, %v254
  %282 = vst.msk [vmem:[%s8 + $0x70] sm:$0xff] %vm267, %v259
  %283 = vst.msk [vmem:[%s8 + $0x78] sm:$0xff] %vm267, %v264
  %v284 = vld [vmem:[%s3] sm:$0xff]
  %v285 = vld [vmem:[%s3 + $0x8] sm:$0xff]
  %v286 = vld [vmem:[%s6] sm:$0x1]
  %v288 = vlaneseq
  %v289 = vshrl.u32 %v288, 7
  %v290 = vsub.s32 0, %v289
  %v291 = vrot.slane %v286, %v290
  %v294 = vsel %vm73, %v48, 0
  %v297 = vsel %vm73, %v49, 0
  %v300 = vsel %vm73, %v50, 0
  %v303 = vsel %vm73, %v51, 0
  %v306 = vsel %vm73, %v52, 0
  %v309 = vsel %vm73, %v53, 0
  %v312 = vsel %vm73, %v54, 0
  %v315 = vsel %vm73, %v55, 0
  %v318 = vsel %vm73, %v56, 0
  %v321 = vsel %vm73, %v57, 0
  %v324 = vsel %vm73, %v58, 0
  %v327 = vsel %vm73, %v59, 0
  %v330 = vsel %vm73, %v60, 0
  %v333 = vsel %vm73, %v61, 0
  %v336 = vsel %vm73, %v62, 0
  %v339 = vsel %vm73, %v63, 0
  %341 = vmatprep.subr.mxu0 0.0
  %342 = vmatpush1.msra.mxu0 %v284
  %343 = vmatprep.subr.mxu0 0.0
  %344 = vmatpush1.msra.mxu0 %v285
  %345 = vmatprep.subr.mxu0 0.0
  %346 = vmatpush1.msra.mxu0 0.0
  %347 = vmatprep.subr.mxu0 0.0
  %348 = vmatpush1.msra.mxu0 0.0
  %349 = vmatprep.subr.mxu0 0.0
  %350 = vmatpush1.msra.mxu0 0.0
  %351 = vmatprep.subr.mxu0 0.0
  %352 = vmatpush1.msra.mxu0 0.0
  %353 = vmatprep.subr.mxu0 0.0
  %354 = vmatpush1.msra.mxu0 0.0
  %355 = vmatprep.subr.mxu0 0.0
  %356 = vmatpush1.msra.mxu0 0.0
  %357 = vmatprep.subr.mxu0 0.0
  %358 = vmatpush1.msra.mxu0 0.0
  %359 = vmatprep.subr.mxu0 0.0
  %360 = vmatpush1.msra.mxu0 0.0
  %361 = vmatprep.subr.mxu0 0.0
  %362 = vmatpush1.msra.mxu0 0.0
  %363 = vmatprep.subr.mxu0 0.0
  %364 = vmatpush1.msra.mxu0 0.0
  %365 = vmatprep.subr.mxu0 0.0
  %366 = vmatpush1.msra.mxu0 0.0
  %367 = vmatprep.subr.mxu0 0.0
  %368 = vmatpush1.msra.mxu0 0.0
  %369 = vmatprep.subr.mxu0 0.0
  %370 = vmatpush1.msra.mxu0 0.0
  %371 = vmatprep.subr.mxu0 0.0
  %372 = vmatpush1.msra.mxu0 0.0
  %373 = vmatprep.subr.mxu0 0.0
  %374 = vmatpush1.msra.mxu0 0.0
  %375 = vmatprep.subr.mxu0 0.0
  %376 = vmatpush1.msra.mxu0 0.0
  %377 = vmatprep.subr.mxu0 0.0
  %378 = vmatpush1.msra.mxu0 0.0
  %379 = vmatprep.subr.mxu0 0.0
  %380 = vmatpush1.msra.mxu0 0.0
  %381 = vmatprep.subr.mxu0 0.0
  %382 = vmatpush1.msra.mxu0 0.0
  %383 = vmatprep.subr.mxu0 0.0
  %384 = vmatpush1.msra.mxu0 0.0
  %385 = vmatprep.subr.mxu0 0.0
  %386 = vmatpush1.msra.mxu0 0.0
  %387 = vmatprep.subr.mxu0 0.0
  %388 = vmatpush1.msra.mxu0 0.0
  %389 = vmatprep.subr.mxu0 0.0
  %390 = vmatpush1.msra.mxu0 0.0
  %391 = vmatprep.subr.mxu0 0.0
  %392 = vmatpush1.msra.mxu0 0.0
  %393 = vmatprep.subr.mxu0 0.0
  %394 = vmatpush1.msra.mxu0 0.0
  %395 = vmatprep.subr.mxu0 0.0
  %396 = vmatpush1.msra.mxu0 0.0
  %397 = vmatprep.subr.mxu0 0.0
  %398 = vmatpush1.msra.mxu0 0.0
  %399 = vmatprep.subr.mxu0 0.0
  %400 = vmatpush1.msra.mxu0 0.0
  %401 = vmatprep.subr.mxu0 0.0
  %402 = vmatpush1.msra.mxu0 0.0
  %403 = vmatprep.subr.mxu0 0.0
  %404 = vmatpush1.msra.mxu0 0.0
  %405 = vmatprep.mubr.f32.mxu0 0.0
  %406 = vmatmul.mubr.f32.gmra.mrb[0].mxu0 %v294
  %v407 = vpop.f32.mrb[0].mxu0
  %v408 = vadd.f32 %v291, %v407
  %v409 = vpop.f32.mrb[0].mxu0
  %410 = vmatprep.mubr.f32.mxu0 0.0
  %411 = vmatmul.mubr.f32.gmra.mrb[0].mxu0 %v297
  %v412 = vpop.f32.mrb[0].mxu0
  %v413 = vadd.f32 %v291, %v412
  %v414 = vpop.f32.mrb[0].mxu0
  %415 = vmatprep.mubr.f32.mxu0 0.0
  %416 = vmatmul.mubr.f32.gmra.mrb[0].mxu0 %v300
  %v417 = vpop.f32.mrb[0].mxu0
  %v418 = vadd.f32 %v291, %v417
  %v419 = vpop.f32.mrb[0].mxu0
  %420 = vmatprep.mubr.f32.mxu0 0.0
  %421 = vmatmul.mubr.f32.gmra.mrb[0].mxu0 %v303
  %v422 = vpop.f32.mrb[0].mxu0
  %v423 = vadd.f32 %v291, %v422
  %v424 = vpop.f32.mrb[0].mxu0
  %425 = vmatprep.mubr.f32.mxu0 0.0
  %426 = vmatmul.mubr.f32.gmra.mrb[0].mxu0 %v306
  %v427 = vpop.f32.mrb[0].mxu0
  %v428 = vadd.f32 %v291, %v427
  %v429 = vpop.f32.mrb[0].mxu0
  %430 = vmatprep.mubr.f32.mxu0 0.0
  %431 = vmatmul.mubr.f32.gmra.mrb[0].mxu0 %v309
  %v432 = vpop.f32.mrb[0].mxu0
  %v433 = vadd.f32 %v291, %v432
  %v434 = vpop.f32.mrb[0].mxu0
  %435 = vmatprep.mubr.f32.mxu0 0.0
  %436 = vmatmul.mubr.f32.gmra.mrb[0].mxu0 %v312
  %v437 = vpop.f32.mrb[0].mxu0
  %v438 = vadd.f32 %v291, %v437
  %v439 = vpop.f32.mrb[0].mxu0
  %440 = vmatprep.mubr.f32.mxu0 0.0
  %441 = vmatmul.mubr.f32.gmra.mrb[0].mxu0 %v315
  %v442 = vpop.f32.mrb[0].mxu0
  %v443 = vadd.f32 %v291, %v442
  %v444 = vpop.f32.mrb[0].mxu0
  %445 = vmatprep.mubr.f32.mxu0 0.0
  %446 = vmatmul.mubr.f32.gmra.mrb[0].mxu0 %v318
  %v447 = vpop.f32.mrb[0].mxu0
  %v448 = vadd.f32 %v291, %v447
  %v449 = vpop.f32.mrb[0].mxu0
  %450 = vmatprep.mubr.f32.mxu0 0.0
  %451 = vmatmul.mubr.f32.gmra.mrb[0].mxu0 %v321
  %v452 = vpop.f32.mrb[0].mxu0
  %v453 = vadd.f32 %v291, %v452
  %v454 = vpop.f32.mrb[0].mxu0
  %455 = vmatprep.mubr.f32.mxu0 0.0
  %456 = vmatmul.mubr.f32.gmra.mrb[0].mxu0 %v324
  %v457 = vpop.f32.mrb[0].mxu0
  %v458 = vadd.f32 %v291, %v457
  %v459 = vpop.f32.mrb[0].mxu0
  %460 = vmatprep.mubr.f32.mxu0 0.0
  %461 = vmatmul.mubr.f32.gmra.mrb[0].mxu0 %v327
  %v462 = vpop.f32.mrb[0].mxu0
  %v463 = vadd.f32 %v291, %v462
  %v464 = vpop.f32.mrb[0].mxu0
  %465 = vmatprep.mubr.f32.mxu0 0.0
  %466 = vmatmul.mubr.f32.gmra.mrb[0].mxu0 %v330
  %v467 = vpop.f32.mrb[0].mxu0
  %v468 = vadd.f32 %v291, %v467
  %v469 = vpop.f32.mrb[0].mxu0
  %470 = vmatprep.mubr.f32.mxu0 0.0
  %471 = vmatmul.mubr.f32.gmra.mrb[0].mxu0 %v333
  %v472 = vpop.f32.mrb[0].mxu0
  %v473 = vadd.f32 %v291, %v472
  %v474 = vpop.f32.mrb[0].mxu0
  %475 = vmatprep.mubr.f32.mxu0 0.0
  %476 = vmatmul.mubr.f32.gmra.mrb[0].mxu0 %v336
  %v477 = vpop.f32.mrb[0].mxu0
  %v478 = vadd.f32 %v291, %v477
  %v479 = vpop.f32.mrb[0].mxu0
  %480 = vmatprep.mubr.f32.mxu0 0.0
  %481 = vmatmul.mubr.f32.gmra.mrb[0].mxu0 %v339
  %v482 = vpop.f32.mrb[0].mxu0
  %v483 = vadd.f32 %v291, %v482
  %v484 = vpop.f32.mrb[0].mxu0
  %485 = vdwg.mxu0
  %486 = vst.msk [vmem:[%s9] sm:$0xff] %vm267, %v408
  %487 = vst.msk [vmem:[%s9 + $0x8] sm:$0xff] %vm267, %v413
  %488 = vst.msk [vmem:[%s9 + $0x10] sm:$0xff] %vm267, %v418
  %489 = vst.msk [vmem:[%s9 + $0x18] sm:$0xff] %vm267, %v423
  %490 = vst.msk [vmem:[%s9 + $0x20] sm:$0xff] %vm267, %v428
  %491 = vst.msk [vmem:[%s9 + $0x28] sm:$0xff] %vm267, %v433
  %492 = vst.msk [vmem:[%s9 + $0x30] sm:$0xff] %vm267, %v438
  %493 = vst.msk [vmem:[%s9 + $0x38] sm:$0xff] %vm267, %v443
  %494 = vst.msk [vmem:[%s9 + $0x40] sm:$0xff] %vm267, %v448
  %495 = vst.msk [vmem:[%s9 + $0x48] sm:$0xff] %vm267, %v453
  %496 = vst.msk [vmem:[%s9 + $0x50] sm:$0xff] %vm267, %v458
  %497 = vst.msk [vmem:[%s9 + $0x58] sm:$0xff] %vm267, %v463
  %498 = vst.msk [vmem:[%s9 + $0x60] sm:$0xff] %vm267, %v468
  %499 = vst.msk [vmem:[%s9 + $0x68] sm:$0xff] %vm267, %v473
  %500 = vst.msk [vmem:[%s9 + $0x70] sm:$0xff] %vm267, %v478
  %501 = vst.msk [vmem:[%s9 + $0x78] sm:$0xff] %vm267, %v483
  %v502 = vld [vmem:[%s4] sm:$0xff]
  %v503 = vld [vmem:[%s4 + $0x8] sm:$0xff]
  %v504 = vld [vmem:[%s7] sm:$0x1]
  %v506 = vlaneseq
  %v507 = vshrl.u32 %v506, 7
  %v508 = vsub.s32 0, %v507
  %v509 = vrot.slane %v504, %v508
  %511 = vmatprep.subr.mxu0 0.0
  %512 = vmatpush1.msra.mxu0 %v502
  %513 = vmatprep.subr.mxu0 0.0
  %514 = vmatpush1.msra.mxu0 %v503
  %515 = vmatprep.subr.mxu0 0.0
  %516 = vmatpush1.msra.mxu0 0.0
  %517 = vmatprep.subr.mxu0 0.0
  %518 = vmatpush1.msra.mxu0 0.0
  %519 = vmatprep.subr.mxu0 0.0
  %520 = vmatpush1.msra.mxu0 0.0
  %521 = vmatprep.subr.mxu0 0.0
  %522 = vmatpush1.msra.mxu0 0.0
  %523 = vmatprep.subr.mxu0 0.0
  %524 = vmatpush1.msra.mxu0 0.0
  %525 = vmatprep.subr.mxu0 0.0
  %526 = vmatpush1.msra.mxu0 0.0
  %527 = vmatprep.subr.mxu0 0.0
  %528 = vmatpush1.msra.mxu0 0.0
  %529 = vmatprep.subr.mxu0 0.0
  %530 = vmatpush1.msra.mxu0 0.0
  %531 = vmatprep.subr.mxu0 0.0
  %532 = vmatpush1.msra.mxu0 0.0
  %533 = vmatprep.subr.mxu0 0.0
  %534 = vmatpush1.msra.mxu0 0.0
  %535 = vmatprep.subr.mxu0 0.0
  %536 = vmatpush1.msra.mxu0 0.0
  %537 = vmatprep.subr.mxu0 0.0
  %538 = vmatpush1.msra.mxu0 0.0
  %539 = vmatprep.subr.mxu0 0.0
  %540 = vmatpush1.msra.mxu0 0.0
  %541 = vmatprep.subr.mxu0 0.0
  %542 = vmatpush1.msra.mxu0 0.0
  %543 = vmatprep.subr.mxu0 0.0
  %544 = vmatpush1.msra.mxu0 0.0
  %545 = vmatprep.subr.mxu0 0.0
  %546 = vmatpush1.msra.mxu0 0.0
  %547 = vmatprep.subr.mxu0 0.0
  %548 = vmatpush1.msra.mxu0 0.0
  %549 = vmatprep.subr.mxu0 0.0
  %550 = vmatpush1.msra.mxu0 0.0
  %551 = vmatprep.subr.mxu0 0.0
  %552 = vmatpush1.msra.mxu0 0.0
  %553 = vmatprep.subr.mxu0 0.0
  %554 = vmatpush1.msra.mxu0 0.0
  %555 = vmatprep.subr.mxu0 0.0
  %556 = vmatpush1.msra.mxu0 0.0
  %557 = vmatprep.subr.mxu0 0.0
  %558 = vmatpush1.msra.mxu0 0.0
  %559 = vmatprep.subr.mxu0 0.0
  %560 = vmatpush1.msra.mxu0 0.0
  %561 = vmatprep.subr.mxu0 0.0
  %562 = vmatpush1.msra.mxu0 0.0
  %563 = vmatprep.subr.mxu0 0.0
  %564 = vmatpush1.msra.mxu0 0.0
  %565 = vmatprep.subr.mxu0 0.0
  %566 = vmatpush1.msra.mxu0 0.0
  %567 = vmatprep.subr.mxu0 0.0
  %568 = vmatpush1.msra.mxu0 0.0
  %569 = vmatprep.subr.mxu0 0.0
  %570 = vmatpush1.msra.mxu0 0.0
  %571 = vmatprep.subr.mxu0 0.0
  %572 = vmatpush1.msra.mxu0 0.0
  %573 = vmatprep.subr.mxu0 0.0
  %574 = vmatpush1.msra.mxu0 0.0
  %575 = vmatprep.mubr.f32.mxu0 0.0
  %576 = vmatmul.mubr.f32.gmra.mrb[0].mxu0 %v294
  %v577 = vpop.f32.mrb[0].mxu0
  %v578 = vadd.f32 %v509, %v577
  %v579 = vpop.f32.mrb[0].mxu0
  %580 = vmatprep.mubr.f32.mxu0 0.0
  %581 = vmatmul.mubr.f32.gmra.mrb[0].mxu0 %v297
  %v582 = vpop.f32.mrb[0].mxu0
  %v583 = vadd.f32 %v509, %v582
  %v584 = vpop.f32.mrb[0].mxu0
  %585 = vmatprep.mubr.f32.mxu0 0.0
  %586 = vmatmul.mubr.f32.gmra.mrb[0].mxu0 %v300
  %v587 = vpop.f32.mrb[0].mxu0
  %v588 = vadd.f32 %v509, %v587
  %v589 = vpop.f32.mrb[0].mxu0
  %590 = vmatprep.mubr.f32.mxu0 0.0
  %591 = vmatmul.mubr.f32.gmra.mrb[0].mxu0 %v303
  %v592 = vpop.f32.mrb[0].mxu0
  %v593 = vadd.f32 %v509, %v592
  %v594 = vpop.f32.mrb[0].mxu0
  %595 = vmatprep.mubr.f32.mxu0 0.0
  %596 = vmatmul.mubr.f32.gmra.mrb[0].mxu0 %v306
  %v597 = vpop.f32.mrb[0].mxu0
  %v598 = vadd.f32 %v509, %v597
  %v599 = vpop.f32.mrb[0].mxu0
  %600 = vmatprep.mubr.f32.mxu0 0.0
  %601 = vmatmul.mubr.f32.gmra.mrb[0].mxu0 %v309
  %v602 = vpop.f32.mrb[0].mxu0
  %v603 = vadd.f32 %v509, %v602
  %v604 = vpop.f32.mrb[0].mxu0
  %605 = vmatprep.mubr.f32.mxu0 0.0
  %606 = vmatmul.mubr.f32.gmra.mrb[0].mxu0 %v312
  %v607 = vpop.f32.mrb[0].mxu0
  %v608 = vadd.f32 %v509, %v607
  %v609 = vpop.f32.mrb[0].mxu0
  %610 = vmatprep.mubr.f32.mxu0 0.0
  %611 = vmatmul.mubr.f32.gmra.mrb[0].mxu0 %v315
  %v612 = vpop.f32.mrb[0].mxu0
  %v613 = vadd.f32 %v509, %v612
  %v614 = vpop.f32.mrb[0].mxu0
  %615 = vmatprep.mubr.f32.mxu0 0.0
  %616 = vmatmul.mubr.f32.gmra.mrb[0].mxu0 %v318
  %v617 = vpop.f32.mrb[0].mxu0
  %v618 = vadd.f32 %v509, %v617
  %v619 = vpop.f32.mrb[0].mxu0
  %620 = vmatprep.mubr.f32.mxu0 0.0
  %621 = vmatmul.mubr.f32.gmra.mrb[0].mxu0 %v321
  %v622 = vpop.f32.mrb[0].mxu0
  %v623 = vadd.f32 %v509, %v622
  %v624 = vpop.f32.mrb[0].mxu0
  %625 = vmatprep.mubr.f32.mxu0 0.0
  %626 = vmatmul.mubr.f32.gmra.mrb[0].mxu0 %v324
  %v627 = vpop.f32.mrb[0].mxu0
  %v628 = vadd.f32 %v509, %v627
  %v629 = vpop.f32.mrb[0].mxu0
  %630 = vmatprep.mubr.f32.mxu0 0.0
  %631 = vmatmul.mubr.f32.gmra.mrb[0].mxu0 %v327
  %v632 = vpop.f32.mrb[0].mxu0
  %v633 = vadd.f32 %v509, %v632
  %v634 = vpop.f32.mrb[0].mxu0
  %635 = vmatprep.mubr.f32.mxu0 0.0
  %636 = vmatmul.mubr.f32.gmra.mrb[0].mxu0 %v330
  %v637 = vpop.f32.mrb[0].mxu0
  %v638 = vadd.f32 %v509, %v637
  %v639 = vpop.f32.mrb[0].mxu0
  %640 = vmatprep.mubr.f32.mxu0 0.0
  %641 = vmatmul.mubr.f32.gmra.mrb[0].mxu0 %v333
  %v642 = vpop.f32.mrb[0].mxu0
  %v643 = vadd.f32 %v509, %v642
  %v644 = vpop.f32.mrb[0].mxu0
  %645 = vmatprep.mubr.f32.mxu0 0.0
  %646 = vmatmul.mubr.f32.gmra.mrb[0].mxu0 %v336
  %v647 = vpop.f32.mrb[0].mxu0
  %v648 = vadd.f32 %v509, %v647
  %v649 = vpop.f32.mrb[0].mxu0
  %650 = vmatprep.mubr.f32.mxu0 0.0
  %651 = vmatmul.mubr.f32.gmra.mrb[0].mxu0 %v339
  %v652 = vpop.f32.mrb[0].mxu0
  %v653 = vadd.f32 %v509, %v652
  %v654 = vpop.f32.mrb[0].mxu0
  %655 = vdwg.mxu0
  %656 = vst.msk [vmem:[%s10] sm:$0xff] %vm73, %v578
  %657 = vst.msk [vmem:[%s10 + $0x8] sm:$0xff] %vm73, %v583
  %658 = vst.msk [vmem:[%s10 + $0x10] sm:$0xff] %vm73, %v588
  %659 = vst.msk [vmem:[%s10 + $0x18] sm:$0xff] %vm73, %v593
  %660 = vst.msk [vmem:[%s10 + $0x20] sm:$0xff] %vm73, %v598
  %661 = vst.msk [vmem:[%s10 + $0x28] sm:$0xff] %vm73, %v603
  %662 = vst.msk [vmem:[%s10 + $0x30] sm:$0xff] %vm73, %v608
  %663 = vst.msk [vmem:[%s10 + $0x38] sm:$0xff] %vm73, %v613
  %664 = vst.msk [vmem:[%s10 + $0x40] sm:$0xff] %vm73, %v618
  %665 = vst.msk [vmem:[%s10 + $0x48] sm:$0xff] %vm73, %v623
  %666 = vst.msk [vmem:[%s10 + $0x50] sm:$0xff] %vm73, %v628
  %667 = vst.msk [vmem:[%s10 + $0x58] sm:$0xff] %vm73, %v633
  %668 = vst.msk [vmem:[%s10 + $0x60] sm:$0xff] %vm73, %v638
  %669 = vst.msk [vmem:[%s10 + $0x68] sm:$0xff] %vm73, %v643
  %670 = vst.msk [vmem:[%s10 + $0x70] sm:$0xff] %vm73, %v648
  %671 = vst.msk [vmem:[%s10 + $0x78] sm:$0xff] %vm73, %v653
  // Predicated region
  $region34: #{criss_cross_attention.2} parent=0 // pred_check
    _
  $region35: #{criss_cross_attention.2} parent=0 // pred_check_branch
    %673 = sbr.rel (0) target = $region37
  $region36: #{criss_cross_attention.2} parent=0 // pred_region
    _
  $region37: #{criss_cross_attention.2} parent=0 // pred_fallthru
    _
  // Predicated region
  $region38: #{criss_cross_attention.2} parent=0 // pred_check
    _
  $region39: #{criss_cross_attention.2} parent=0 // pred_check_branch
    %675 = sbr.rel (0) target = $region41
  $region40: #{criss_cross_attention.2} parent=0 // pred_region
    _
  $region41: #{criss_cross_attention.2} parent=0 // pred_fallthru
    _
  // Predicated region
  $region42: #{criss_cross_attention.2} parent=0 // pred_check
    _
  $region43: #{criss_cross_attention.2} parent=0 // pred_check_branch
    %677 = sbr.rel (0) target = $region45
  $region44: #{criss_cross_attention.2} parent=0 // pred_region
    _
  $region45: #{criss_cross_attention.2} parent=0 // pred_fallthru
    _
  // Predicated region
  $region46: #{criss_cross_attention.2} parent=0 // pred_check
    _
  $region47: #{criss_cross_attention.2} parent=0 // pred_check_branch
    %679 = sbr.rel (0) target = $region49
  $region48: #{criss_cross_attention.2} parent=0 // pred_region
    _
  $region49: #{criss_cross_attention.2} parent=0 // pred_fallthru
    _
  // Predicated region
  $region50: #{criss_cross_attention.2} parent=0 // pred_check
    _
  $region51: #{criss_cross_attention.2} parent=0 // pred_check_branch
    %681 = sbr.rel (0) target = $region53
  $region52: #{criss_cross_attention.2} parent=0 // pred_region
    _
  $region53: #{criss_cross_attention.2} parent=0 // pred_fallthru
    _
  // Predicated region
  $region54: #{criss_cross_attention.2} parent=0 // pred_check
    _
  $region55: #{criss_cross_attention.2} parent=0 // pred_check_branch
    %683 = sbr.rel (0) target = $region57
  $region56: #{criss_cross_attention.2} parent=0 // pred_region
    _
  $region57: #{criss_cross_attention.2} parent=0 // pred_fallthru
    _

// kernel: criss_cross_attention.3
$region0: #{criss_cross_attention.3}
  #allocation0 [shape = 'u32[]', space=smem, size = 0x4, offset = 0x4, fixed_abs, tag = 'smem constant byte address 0x4 - core index']
  #allocation1 [shape = 'u32[144,128]{1,0:T(1,128)}', space=vmem, size = 0x12000, scoped, tag = 'internal scratch']
  #allocation2 [shape = 'f32[1]{0:T(128)S(6)}', space=smem, size = 0x200, scoped, tag = 'scoped memory for criss_cross_attention.3']
  %s0 = inlined_call_operand.<no memory space> [shape: f32[1], index: 0, kind: input, shape index: {}]
  %s1 = inlined_call_operand.vmem [shape: f32[2,8,8,2], index: 1, kind: input, shape index: {}]
  %s2 = inlined_call_operand.vmem [shape: f32[2,8,8,2], index: 2, kind: input, shape index: {}]
  %s3 = inlined_call_operand.vmem [shape: f32[2,8,8,16], index: 3, kind: input, shape index: {}]
  %s4 = inlined_call_operand.vmem [shape: f32[2,8,8,16], index: 4, kind: input, shape index: {}, may-alias: {4,5}]
  %s5 = inlined_call_operand.vmem [shape: f32[2,8,8,16], index: 5, kind: output, shape index: {}, may-alias: {4,5}]
  %s6 = sld [smem:[#allocation0]]
  $region53: #{criss_cross_attention.3} parent=0
    _
  %s8 = ssub.s32 1, %s6
  %s9 = scalar_select 0, %s8, %s6
  %10 = sst [smem:[#allocation2]] %s0
  loop: start=0, step=1, limit=4
  $region2: #{criss_cross_attention.3} parent=0 // loop_pre_header
    _
  $region3: #{criss_cross_attention.3} parent=0 // loop_header
    %s12 = sphi 0, %s16
    %p13 = scmp.ge.s32.totalorder %s12, 4
    %s20 = sphi 0, %s20
    %s22 = sphi 0, %s20
    %s23 = sphi 0, %s22
    %s37 = sphi 0, %s23
    %s43 = sphi 0, %s45
    %s46 = sphi 0, %s43
    %s47 = sphi 0, %s46
    %s63 = sphi 0, %s47
    %s69 = sphi 0, %s71
    %s72 = sphi 0, %s69
    %s73 = sphi 0, %s72
    %s89 = sphi 0, %s73
    %s95 = sphi 0, %s97
    %s98 = sphi 0, %s95
    %s99 = sphi 0, %s98
    %s115 = sphi 0, %s99
    %s121 = sphi 0, %s123
    %s124 = sphi 0, %s121
    %s125 = sphi 0, %s124
    %s141 = sphi 0, %s125
    %s147 = sphi 0, %s149
    %s150 = sphi 0, %s147
    %s151 = sphi 0, %s150
    %s167 = sphi 0, %s151
  $region4: #{criss_cross_attention.3} parent=0 // loop_header_branch
    %15 = sbr.rel (%p13) target = $region8
  $region5: #{criss_cross_attention.3} parent=0 // loop_body
    %s17 = ssub.s32 %s12, 1
    %s18 = ssub.s32 %s12, 2
    %s19 = sadd.s32 %s12, 1
    %s21 = sadd.s32 %s20, 1
    %p24 = scmp.eq.s32.totalorder %s12, 1
    %p25 = scmp.ne.s32.totalorder %s20, %s22
    %p26 = scmp.eq.s32.totalorder %s12, 0
    %p27 = por %p25, %p26
    %p28 = scmp.ne.s32.totalorder %s20, %s22
    %p29 = scmp.eq.s32.totalorder %s17, 1
    %p30 = por %p28, %p29
    %p31 = scmp.ne.s32.totalorder %s22, %s23
    %p32 = scmp.eq.s32.totalorder %s17, 0
    %p33 = por %p31, %p32
    %p34 = scmp.ne.s32.totalorder %s22, %s23
    %p35 = scmp.eq.s32.totalorder %s18, 1
    %p36 = por %p34, %p35
    %p38 = scmp.ne.s32.totalorder %s23, %s37
    %p39 = scmp.eq.s32.totalorder %s18, 0
    %p40 = por %p38, %p39
    %s41 = ssub.s32 %s12, %s19
    %p42 = scmp.eq.s32.totalorder %s41, 0
    %s44 = sadd.s32 %s43, 1
    %s45 = scalar_select %p42, %s43, %s44
    %p48 = pneg %p42
    %p49 = scmp.eq.s32.totalorder %s12, 1
    %p50 = por %p48, %p49
    %p51 = scmp.ne.s32.totalorder %s43, %s46
    %p52 = scmp.eq.s32.totalorder %s12, 0
    %p53 = por %p51, %p52
    %p54 = scmp.ne.s32.totalorder %s43, %s46
    %p55 = scmp.eq.s32.totalorder %s17, 1
    %p56 = por %p54, %p55
    %p57 = scmp.ne.s32.totalorder %s46, %s47
    %p58 = scmp.eq.s32.totalorder %s17, 0
    %p59 = por %p57, %p58
    %p60 = scmp.ne.s32.totalorder %s46, %s47
    %p61 = scmp.eq.s32.totalorder %s18, 1
    %p62 = por %p60, %p61
    %p64 = scmp.ne.s32.totalorder %s47, %s63
    %p65 = scmp.eq.s32.totalorder %s18, 0
    %p66 = por %p64, %p65
    %s67 = ssub.s32 %s12, %s19
    %p68 = scmp.eq.s32.totalorder %s67, 0
    %s70 = sadd.s32 %s69, 1
    %s71 = scalar_select %p68, %s69, %s70
    %p74 = pneg %p68
    %p75 = scmp.eq.s32.totalorder %s12, 1
    %p76 = por %p74, %p75
    %p77 = scmp.ne.s32.totalorder %s69, %s72
    %p78 = scmp.eq.s32.totalorder %s12, 0
    %p79 = por %p77, %p78
    %p80 = scmp.ne.s32.totalorder %s69, %s72
    %p81 = scmp.eq.s32.totalorder %s17, 1
    %p82 = por %p80, %p81
    %p83 = scmp.ne.s32.totalorder %s72, %s73
    %p84 = scmp.eq.s32.totalorder %s17, 0
    %p85 = por %p83, %p84
    %p86 = scmp.ne.s32.totalorder %s72, %s73
    %p87 = scmp.eq.s32.totalorder %s18, 1
    %p88 = por %p86, %p87
    %p90 = scmp.ne.s32.totalorder %s73, %s89
    %p91 = scmp.eq.s32.totalorder %s18, 0
    %p92 = por %p90, %p91
    %s93 = ssub.s32 %s12, %s19
    %p94 = scmp.eq.s32.totalorder %s93, 0
    %s96 = sadd.s32 %s95, 1
    %s97 = scalar_select %p94, %s95, %s96
    %p100 = pneg %p94
    %p101 = scmp.eq.s32.totalorder %s12, 1
    %p102 = por %p100, %p101
    %p103 = scmp.ne.s32.totalorder %s95, %s98
    %p104 = scmp.eq.s32.totalorder %s12, 0
    %p105 = por %p103, %p104
    %p106 = scmp.ne.s32.totalorder %s95, %s98
    %p107 = scmp.eq.s32.totalorder %s17, 1
    %p108 = por %p106, %p107
    %p109 = scmp.ne.s32.totalorder %s98, %s99
    %p110 = scmp.eq.s32.totalorder %s17, 0
    %p111 = por %p109, %p110
    %p112 = scmp.ne.s32.totalorder %s98, %s99
    %p113 = scmp.eq.s32.totalorder %s18, 1
    %p114 = por %p112, %p113
    %p116 = scmp.ne.s32.totalorder %s99, %s115
    %p117 = scmp.eq.s32.totalorder %s18, 0
    %p118 = por %p116, %p117
    %s119 = ssub.s32 %s12, %s19
    %p120 = scmp.eq.s32.totalorder %s119, 0
    %s122 = sadd.s32 %s121, 1
    %s123 = scalar_select %p120, %s121, %s122
    %p126 = pneg %p120
    %p127 = scmp.eq.s32.totalorder %s12, 1
    %p128 = por %p126, %p127
    %p129 = scmp.ne.s32.totalorder %s121, %s124
    %p130 = scmp.eq.s32.totalorder %s12, 0
    %p131 = por %p129, %p130
    %p132 = scmp.ne.s32.totalorder %s121, %s124
    %p133 = scmp.eq.s32.totalorder %s17, 1
    %p134 = por %p132, %p133
    %p135 = scmp.ne.s32.totalorder %s124, %s125
    %p136 = scmp.eq.s32.totalorder %s17, 0
    %p137 = por %p135, %p136
    %p138 = scmp.ne.s32.totalorder %s124, %s125
    %p139 = scmp.eq.s32.totalorder %s18, 1
    %p140 = por %p138, %p139
    %p142 = scmp.ne.s32.totalorder %s125, %s141
    %p143 = scmp.eq.s32.totalorder %s18, 0
    %p144 = por %p142, %p143
    %s145 = ssub.s32 %s12, %s19
    %p146 = scmp.eq.s32.totalorder %s145, 0
    %s148 = sadd.s32 %s147, 1
    %s149 = scalar_select %p146, %s147, %s148
    %p152 = pneg %p146
    %p153 = scmp.eq.s32.totalorder %s12, 1
    %p154 = por %p152, %p153
    %p155 = scmp.ne.s32.totalorder %s147, %s150
    %p156 = scmp.eq.s32.totalorder %s12, 0
    %p157 = por %p155, %p156
    %p158 = scmp.ne.s32.totalorder %s147, %s150
    %p159 = scmp.eq.s32.totalorder %s17, 1
    %p160 = por %p158, %p159
    %p161 = scmp.ne.s32.totalorder %s150, %s151
    %p162 = scmp.eq.s32.totalorder %s17, 0
    %p163 = por %p161, %p162
    %p164 = scmp.ne.s32.totalorder %s150, %s151
    %p165 = scmp.eq.s32.totalorder %s18, 1
    %p166 = por %p164, %p165
    %p168 = scmp.ne.s32.totalorder %s151, %s167
    %p169 = scmp.eq.s32.totalorder %s18, 0
    %p170 = por %p168, %p169
    %p171 = scmp.le.s32.totalorder 1, %s12
    %p172 = scmp.lt.s32.totalorder %s12, 3
    %p173 = pnand %p171, %p172
    %p174 = pneg %p173
    // Predicated region
    $region9: #{criss_cross_attention.3} parent=5 // pred_check
      _
    $region10: #{criss_cross_attention.3} parent=5 // pred_check_branch
      %176 = sbr.rel (%p173) target = $region12
    $region11: #{criss_cross_attention.3} parent=5 // pred_region
      %s177 = ssub.s32 %s12, 1
      // Predicated region
      $region13: #{criss_cross_attention.3} parent=11 // pred_check
        %p178 = pneg %p33
      $region14: #{criss_cross_attention.3} parent=11 // pred_check_branch
        %180 = sbr.rel (%p178) target = $region16
      $region15: #{criss_cross_attention.3} parent=11 // pred_region
        _
      $region16: #{criss_cross_attention.3} parent=11 // pred_fallthru
        _
    $region12: #{criss_cross_attention.3} parent=5 // pred_fallthru
      _
    %p181 = scmp.lt.s32.totalorder %s12, 2
    // Predicated region
    $region17: #{criss_cross_attention.3} parent=5 // pred_check
      %p182 = pneg %p181
    $region18: #{criss_cross_attention.3} parent=5 // pred_check_branch
      %184 = sbr.rel (%p182) target = $region20
    $region19: #{criss_cross_attention.3} parent=5 // pred_region
      // Predicated region
      $region21: #{criss_cross_attention.3} parent=19 // pred_check
        %p185 = pneg %p53
      $region22: #{criss_cross_attention.3} parent=19 // pred_check_branch
        %187 = sbr.rel (%p185) target = $region24
      $region23: #{criss_cross_attention.3} parent=19 // pred_region
        %p188 = scmp.lt.s32.totalorder %s12, 1
        %s189 = scalar_select %p188, %s12, 1
        %s190 = smul.addr %s189, 8
        %s191 = smul.addr %s190, 8
        %s192 = scalar_lea.vmem %s1, %s191
      $region24: #{criss_cross_attention.3} parent=19 // pred_fallthru
        _
      // Predicated region
      $region25: #{criss_cross_attention.3} parent=19 // pred_check
        %p193 = pneg %p79
      $region26: #{criss_cross_attention.3} parent=19 // pred_check_branch
        %195 = sbr.rel (%p193) target = $region28
      $region27: #{criss_cross_attention.3} parent=19 // pred_region
        %p196 = scmp.lt.s32.totalorder %s12, 1
        %s197 = scalar_select %p196, %s12, 1
        %s198 = smul.addr %s197, 8
        %s199 = smul.addr %s198, 8
        %s200 = scalar_lea.vmem %s2, %s199
      $region28: #{criss_cross_attention.3} parent=19 // pred_fallthru
        _
      // Predicated region
      $region29: #{criss_cross_attention.3} parent=19 // pred_check
        %p201 = pneg %p105
      $region30: #{criss_cross_attention.3} parent=19 // pred_check_branch
        %203 = sbr.rel (%p201) target = $region32
      $region31: #{criss_cross_attention.3} parent=19 // pred_region
        %p204 = scmp.lt.s32.totalorder %s12, 1
        %s205 = scalar_select %p204, %s12, 1
        %s206 = smul.addr %s205, 8
        %s207 = smul.addr %s206, 8
        %s208 = scalar_lea.vmem %s3, %s207
      $region32: #{criss_cross_attention.3} parent=19 // pred_fallthru
        _
      // Predicated region
      $region33: #{criss_cross_attention.3} parent=19 // pred_check
        %p209 = pneg %p131
      $region34: #{criss_cross_attention.3} parent=19 // pred_check_branch
        %211 = sbr.rel (%p209) target = $region36
      $region35: #{criss_cross_attention.3} parent=19 // pred_region
        %p212 = scmp.lt.s32.totalorder %s12, 1
        %s213 = scalar_select %p212, %s12, 1
        %s214 = smul.addr %s213, 8
        %s215 = smul.addr %s214, 8
        %s216 = scalar_lea.vmem %s4, %s215
      $region36: #{criss_cross_attention.3} parent=19 // pred_fallthru
        _
    $region20: #{criss_cross_attention.3} parent=5 // pred_fallthru
      _
    %p217 = scmp.le.s32.totalorder 1, %s12
    %p218 = scmp.lt.s32.totalorder %s12, 3
    %p219 = pnand %p217, %p218
    %p220 = pneg %p219
    // Predicated region
    $region37: #{criss_cross_attention.3} parent=5 // pred_check
      _
    $region38: #{criss_cross_attention.3} parent=5 // pred_check_branch
      %222 = sbr.rel (%p219) target = $region40
    $region39: #{criss_cross_attention.3} parent=5 // pred_region
      %s223 = ssub.s32 %s12, 1
      %p224 = pneg %p33
      %p225 = pneg %p30
      %p226 = scmp.lt.s32.totalorder %s17, 1
      %s227 = scalar_select %p226, %s17, 1
      %s228 = smul.addr %s227, 8
      %s229 = smul.addr %s228, 8
      %s230 = scalar_lea.vmem %s1, %s229
      %p231 = pneg %p59
      %p232 = pneg %p56
      %p233 = scmp.lt.s32.totalorder %s17, 1
      %s234 = scalar_select %p233, %s17, 1
      %s235 = smul.addr %s234, 8
      %s236 = smul.addr %s235, 8
      %s237 = scalar_lea.vmem %s2, %s236
      %p238 = pneg %p85
      %p239 = pneg %p82
      %p240 = scmp.lt.s32.totalorder %s17, 1
      %s241 = scalar_select %p240, %s17, 1
      %s242 = smul.addr %s241, 8
      %s243 = smul.addr %s242, 8
      %s244 = scalar_lea.vmem %s3, %s243
      %p245 = pneg %p111
      %p246 = pneg %p108
      %p247 = scmp.lt.s32.totalorder %s17, 1
      %s248 = scalar_select %p247, %s17, 1
      %s249 = smul.addr %s248, 8
      %s250 = smul.addr %s249, 8
      %s251 = scalar_lea.vmem %s4, %s250
      %p252 = pneg %p137
      %p253 = pneg %p134
      %p254 = pneg %p163
      %p255 = pneg %p160
      %p256 = scmp.lt.s32.totalorder %s17, 1
      %s257 = scalar_select %p256, %s17, 1
      %s258 = smul.addr %s257, 8
      %s259 = smul.addr %s258, 8
      %s260 = scalar_lea.vmem %s5, %s259
      %p261 = scmp.lt.s32.totalorder %s17, 1
      %s262 = scalar_select %p261, %s17, 1
      %s263 = smul.addr %s262, 8
      %s264 = smul.addr %s263, 8
      %s265 = scalar_lea.vmem %s1, %s264
      %p266 = scmp.lt.s32.totalorder %s17, 1
      %s267 = scalar_select %p266, %s17, 1
      %s268 = smul.addr %s267, 8
      %s269 = smul.addr %s268, 8
      %s270 = scalar_lea.vmem %s2, %s269
      %p271 = scmp.lt.s32.totalorder %s17, 1
      %s272 = scalar_select %p271, %s17, 1
      %s273 = smul.addr %s272, 8
      %s274 = smul.addr %s273, 8
      %s275 = scalar_lea.vmem %s3, %s274
      %p276 = scmp.lt.s32.totalorder %s17, 1
      %s277 = scalar_select %p276, %s17, 1
      %s278 = smul.addr %s277, 8
      %s279 = smul.addr %s278, 8
      %s280 = scalar_lea.vmem %s4, %s279
      %p281 = scmp.lt.s32.totalorder %s17, 1
      %s282 = scalar_select %p281, %s17, 1
      %s283 = smul.addr %s282, 8
      %s284 = smul.addr %s283, 8
      %s285 = scalar_lea.vmem %s5, %s284
      %s287 = sld [smem:[#allocation2]]
      %v288 = vld [vmem:[%s265] sm:$0xff]
      %v289 = vld [vmem:[%s265 + $0x8] sm:$0xff]
      %v290 = vld [vmem:[%s265 + $0x10] sm:$0xff]
      %v291 = vld [vmem:[%s265 + $0x18] sm:$0xff]
      %v292 = vld [vmem:[%s265 + $0x20] sm:$0xff]
      %v293 = vld [vmem:[%s265 + $0x28] sm:$0xff]
      %v294 = vld [vmem:[%s265 + $0x30] sm:$0xff]
      %v295 = vld [vmem:[%s265 + $0x38] sm:$0xff]
      %v296 = vld [vmem:[%s270] sm:$0xff]
      %v297 = vld [vmem:[%s270 + $0x8] sm:$0xff]
      %v298 = vld [vmem:[%s270 + $0x10] sm:$0xff]
      %v299 = vld [vmem:[%s270 + $0x18] sm:$0xff]
      %v300 = vld [vmem:[%s270 + $0x20] sm:$0xff]
      %v301 = vld [vmem:[%s270 + $0x28] sm:$0xff]
      %v302 = vld [vmem:[%s270 + $0x30] sm:$0xff]
      %v303 = vld [vmem:[%s270 + $0x38] sm:$0xff]
      %v304 = vld [vmem:[%s275] sm:$0xff]
      %v305 = vld [vmem:[%s275 + $0x8] sm:$0xff]
      %v306 = vld [vmem:[%s275 + $0x10] sm:$0xff]
      %v307 = vld [vmem:[%s275 + $0x18] sm:$0xff]
      %v308 = vld [vmem:[%s275 + $0x20] sm:$0xff]
      %v309 = vld [vmem:[%s275 + $0x28] sm:$0xff]
      %v310 = vld [vmem:[%s275 + $0x30] sm:$0xff]
      %v311 = vld [vmem:[%s275 + $0x38] sm:$0xff]
      %v312 = vld [vmem:[%s280] sm:$0xff]
      %v313 = vld [vmem:[%s280 + $0x8] sm:$0xff]
      %v314 = vld [vmem:[%s280 + $0x10] sm:$0xff]
      %v315 = vld [vmem:[%s280 + $0x18] sm:$0xff]
      %v316 = vld [vmem:[%s280 + $0x20] sm:$0xff]
      %v317 = vld [vmem:[%s280 + $0x28] sm:$0xff]
      %v318 = vld [vmem:[%s280 + $0x30] sm:$0xff]
      %v319 = vld [vmem:[%s280 + $0x38] sm:$0xff]
      %v320 = vcombine.low %v288, %v290
      %v321 = vcombine.high %v288, %v290
      %v323 = vunpack.c.l.s4 1983009808
      %v324 = vunpack.c.0.s8 %v323
      %v325 = vlaneseq
      %v326 = vshrl.u32 %v325, 7
      %v327 = vsub.s32 %v324, %v326
      %v328 = vrot.slane %v320, %v327
      %v330 = vunpack.c.l.s4 1983009808
      %v331 = vunpack.c.0.s8 %v330
      %v332 = vlaneseq
      %v333 = vshrl.u32 %v332, 7
      %v334 = vsub.s32 %v331, %v333
      %v335 = vrot.slane %v321, %v334
      %v336 = vcombine.low %v289, %v291
      %v337 = vcombine.high %v289, %v291
      %v339 = vunpack.c.l.s4 1983009808
      %v340 = vunpack.c.0.s8 %v339
      %v341 = vlaneseq
      %v342 = vshrl.u32 %v341, 7
      %v343 = vsub.s32 %v340, %v342
      %v344 = vrot.slane %v336, %v343
      %v346 = vunpack.c.l.s4 1983009808
      %v347 = vunpack.c.0.s8 %v346
      %v348 = vlaneseq
      %v349 = vshrl.u32 %v348, 7
      %v350 = vsub.s32 %v347, %v349
      %v351 = vrot.slane %v337, %v350
      %v352 = vcombine.low %v292, %v294
      %v353 = vcombine.high %v292, %v294
      %v355 = vunpack.c.l.s4 1983009808
      %v356 = vunpack.c.0.s8 %v355
      %v357 = vlaneseq
      %v358 = vshrl.u32 %v357, 7
      %v359 = vsub.s32 %v356, %v358
      %v360 = vrot.slane %v352, %v359
      %v362 = vunpack.c.l.s4 1983009808
      %v363 = vunpack.c.0.s8 %v362
      %v364 = vlaneseq
      %v365 = vshrl.u32 %v364, 7
      %v366 = vsub.s32 %v363, %v365
      %v367 = vrot.slane %v353, %v366
      %v368 = vcombine.low %v293, %v295
      %v369 = vcombine.high %v293, %v295
      %v371 = vunpack.c.l.s4 1983009808
      %v372 = vunpack.c.0.s8 %v371
      %v373 = vlaneseq
      %v374 = vshrl.u32 %v373, 7
      %v375 = vsub.s32 %v372, %v374
      %v376 = vrot.slane %v368, %v375
      %v378 = vunpack.c.l.s4 1983009808
      %v379 = vunpack.c.0.s8 %v378
      %v380 = vlaneseq
      %v381 = vshrl.u32 %v380, 7
      %v382 = vsub.s32 %v379, %v381
      %v383 = vrot.slane %v369, %v382
      %v384 = vcombine.low %v328, %v344
      %v385 = vcombine.high %v328, %v344
      %v387 = vunpack.c.l.s4 1934713408
      %v388 = vunpack.c.0.s8 %v387
      %v389 = vlaneseq
      %v390 = vshrl.u32 %v389, 7
      %v391 = vsub.s32 %v388, %v390
      %v392 = vrot.slane %v384, %v391
      %v394 = vunpack.c.l.s4 1934713408
      %v395 = vunpack.c.0.s8 %v394
      %v396 = vlaneseq
      %v397 = vshrl.u32 %v396, 7
      %v398 = vsub.s32 %v395, %v397
      %v399 = vrot.slane %v385, %v398
      %v400 = vcombine.low %v335, %v351
      %v401 = vcombine.high %v335, %v351
      %v403 = vunpack.c.l.s4 1934713408
      %v404 = vunpack.c.0.s8 %v403
      %v405 = vlaneseq
      %v406 = vshrl.u32 %v405, 7
      %v407 = vsub.s32 %v404, %v406
      %v408 = vrot.slane %v400, %v407
      %v410 = vunpack.c.l.s4 1934713408
      %v411 = vunpack.c.0.s8 %v410
      %v412 = vlaneseq
      %v413 = vshrl.u32 %v412, 7
      %v414 = vsub.s32 %v411, %v413
      %v415 = vrot.slane %v401, %v414
      %v416 = vcombine.low %v360, %v376
      %v417 = vcombine.high %v360, %v376
      %v419 = vunpack.c.l.s4 1934713408
      %v420 = vunpack.c.0.s8 %v419
      %v421 = vlaneseq
      %v422 = vshrl.u32 %v421, 7
      %v423 = vsub.s32 %v420, %v422
      %v424 = vrot.slane %v416, %v423
      %v426 = vunpack.c.l.s4 1934713408
      %v427 = vunpack.c.0.s8 %v426
      %v428 = vlaneseq
      %v429 = vshrl.u32 %v428, 7
      %v430 = vsub.s32 %v427, %v429
      %v431 = vrot.slane %v417, %v430
      %v432 = vcombine.low %v367, %v383
      %v433 = vcombine.high %v367, %v383
      %v435 = vunpack.c.l.s4 1934713408
      %v436 = vunpack.c.0.s8 %v435
      %v437 = vlaneseq
      %v438 = vshrl.u32 %v437, 7
      %v439 = vsub.s32 %v436, %v438
      %v440 = vrot.slane %v432, %v439
      %v442 = vunpack.c.l.s4 1934713408
      %v443 = vunpack.c.0.s8 %v442
      %v444 = vlaneseq
      %v445 = vshrl.u32 %v444, 7
      %v446 = vsub.s32 %v443, %v445
      %v447 = vrot.slane %v433, %v446
      %v448 = vcombine.low %v392, %v424
      %v449 = vcombine.high %v392, %v424
      %v450 = vcombine.low %v399, %v431
      %v451 = vcombine.high %v399, %v431
      %v452 = vcombine.low %v408, %v440
      %v453 = vcombine.high %v408, %v440
      %v454 = vcombine.low %v415, %v447
      %v455 = vcombine.high %v415, %v447
      %v456 = vcombine.low %v296, %v298
      %v457 = vcombine.high %v296, %v298
      %v459 = vunpack.c.l.s4 1983009808
      %v460 = vunpack.c.0.s8 %v459
      %v461 = vlaneseq
      %v462 = vshrl.u32 %v461, 7
      %v463 = vsub.s32 %v460, %v462
      %v464 = vrot.slane %v456, %v463
      %v466 = vunpack.c.l.s4 1983009808
      %v467 = vunpack.c.0.s8 %v466
      %v468 = vlaneseq
      %v469 = vshrl.u32 %v468, 7
      %v470 = vsub.s32 %v467, %v469
      %v471 = vrot.slane %v457, %v470
      %v472 = vcombine.low %v297, %v299
      %v473 = vcombine.high %v297, %v299
      %v475 = vunpack.c.l.s4 1983009808
      %v476 = vunpack.c.0.s8 %v475
      %v477 = vlaneseq
      %v478 = vshrl.u32 %v477, 7
      %v479 = vsub.s32 %v476, %v478
      %v480 = vrot.slane %v472, %v479
      %v482 = vunpack.c.l.s4 1983009808
      %v483 = vunpack.c.0.s8 %v482
      %v484 = vlaneseq
      %v485 = vshrl.u32 %v484, 7
      %v486 = vsub.s32 %v483, %v485
      %v487 = vrot.slane %v473, %v486
      %v488 = vcombine.low %v300, %v302
      %v489 = vcombine.high %v300, %v302
      %v491 = vunpack.c.l.s4 1983009808
      %v492 = vunpack.c.0.s8 %v491
      %v493 = vlaneseq
      %v494 = vshrl.u32 %v493, 7
      %v495 = vsub.s32 %v492, %v494
      %v496 = vrot.slane %v488, %v495
      %v498 = vunpack.c.l.s4 1983009808
      %v499 = vunpack.c.0.s8 %v498
      %v500 = vlaneseq
      %v501 = vshrl.u32 %v500, 7
      %v502 = vsub.s32 %v499, %v501
      %v503 = vrot.slane %v489, %v502
      %v504 = vcombine.low %v301, %v303
      %v505 = vcombine.high %v301, %v303
      %v507 = vunpack.c.l.s4 1983009808
      %v508 = vunpack.c.0.s8 %v507
      %v509 = vlaneseq
      %v510 = vshrl.u32 %v509, 7
      %v511 = vsub.s32 %v508, %v510
      %v512 = vrot.slane %v504, %v511
      %v514 = vunpack.c.l.s4 1983009808
      %v515 = vunpack.c.0.s8 %v514
      %v516 = vlaneseq
      %v517 = vshrl.u32 %v516, 7
      %v518 = vsub.s32 %v515, %v517
      %v519 = vrot.slane %v505, %v518
      %v520 = vcombine.low %v464, %v480
      %v521 = vcombine.high %v464, %v480
      %v523 = vunpack.c.l.s4 1934713408
      %v524 = vunpack.c.0.s8 %v523
      %v525 = vlaneseq
      %v526 = vshrl.u32 %v525, 7
      %v527 = vsub.s32 %v524, %v526
      %v528 = vrot.slane %v520, %v527
      %v530 = vunpack.c.l.s4 1934713408
      %v531 = vunpack.c.0.s8 %v530
      %v532 = vlaneseq
      %v533 = vshrl.u32 %v532, 7
      %v534 = vsub.s32 %v531, %v533
      %v535 = vrot.slane %v521, %v534
      %v536 = vcombine.low %v471, %v487
      %v537 = vcombine.high %v471, %v487
      %v539 = vunpack.c.l.s4 1934713408
      %v540 = vunpack.c.0.s8 %v539
      %v541 = vlaneseq
      %v542 = vshrl.u32 %v541, 7
      %v543 = vsub.s32 %v540, %v542
      %v544 = vrot.slane %v536, %v543
      %v546 = vunpack.c.l.s4 1934713408
      %v547 = vunpack.c.0.s8 %v546
      %v548 = vlaneseq
      %v549 = vshrl.u32 %v548, 7
      %v550 = vsub.s32 %v547, %v549
      %v551 = vrot.slane %v537, %v550
      %v552 = vcombine.low %v496, %v512
      %v553 = vcombine.high %v496, %v512
      %v555 = vunpack.c.l.s4 1934713408
      %v556 = vunpack.c.0.s8 %v555
      %v557 = vlaneseq
      %v558 = vshrl.u32 %v557, 7
      %v559 = vsub.s32 %v556, %v558
      %v560 = vrot.slane %v552, %v559
      %v562 = vunpack.c.l.s4 1934713408
      %v563 = vunpack.c.0.s8 %v562
      %v564 = vlaneseq
      %v565 = vshrl.u32 %v564, 7
      %v566 = vsub.s32 %v563, %v565
      %v567 = vrot.slane %v553, %v566
      %v568 = vcombine.low %v503, %v519
      %v569 = vcombine.high %v503, %v519
      %v571 = vunpack.c.l.s4 1934713408
      %v572 = vunpack.c.0.s8 %v571
      %v573 = vlaneseq
      %v574 = vshrl.u32 %v573, 7
      %v575 = vsub.s32 %v572, %v574
      %v576 = vrot.slane %v568, %v575
      %v578 = vunpack.c.l.s4 1934713408
      %v579 = vunpack.c.0.s8 %v578
      %v580 = vlaneseq
      %v581 = vshrl.u32 %v580, 7
      %v582 = vsub.s32 %v579, %v581
      %v583 = vrot.slane %v569, %v582
      %v584 = vcombine.low %v528, %v560
      %v585 = vcombine.high %v528, %v560
      %v586 = vcombine.low %v535, %v567
      %v587 = vcombine.high %v535, %v567
      %v588 = vcombine.low %v544, %v576
      %v589 = vcombine.high %v544, %v576
      %v590 = vcombine.low %v551, %v583
      %v591 = vcombine.high %v551, %v583
      %v592 = vcombine.low %v304, %v306
      %v593 = vcombine.high %v304, %v306
      %v595 = vunpack.c.l.s4 1983009808
      %v596 = vunpack.c.0.s8 %v595
      %v597 = vlaneseq
      %v598 = vshrl.u32 %v597, 7
      %v599 = vsub.s32 %v596, %v598
      %v600 = vrot.slane %v592, %v599
      %v602 = vunpack.c.l.s4 1983009808
      %v603 = vunpack.c.0.s8 %v602
      %v604 = vlaneseq
      %v605 = vshrl.u32 %v604, 7
      %v606 = vsub.s32 %v603, %v605
      %v607 = vrot.slane %v593, %v606
      %v608 = vcombine.low %v305, %v307
      %v609 = vcombine.high %v305, %v307
      %v611 = vunpack.c.l.s4 1983009808
      %v612 = vunpack.c.0.s8 %v611
      %v613 = vlaneseq
      %v614 = vshrl.u32 %v613, 7
      %v615 = vsub.s32 %v612, %v614
      %v616 = vrot.slane %v608, %v615
      %v618 = vunpack.c.l.s4 1983009808
      %v619 = vunpack.c.0.s8 %v618
      %v620 = vlaneseq
      %v621 = vshrl.u32 %v620, 7
      %v622 = vsub.s32 %v619, %v621
      %v623 = vrot.slane %v609, %v622
      %v624 = vcombine.low %v308, %v310
      %v625 = vcombine.high %v308, %v310
      %v627 = vunpack.c.l.s4 1983009808
      %v628 = vunpack.c.0.s8 %v627
      %v629 = vlaneseq
      %v630 = vshrl.u32 %v629, 7
      %v631 = vsub.s32 %v628, %v630
      %v632 = vrot.slane %v624, %v631
      %v634 = vunpack.c.l.s4 1983009808
      %v635 = vunpack.c.0.s8 %v634
      %v636 = vlaneseq
      %v637 = vshrl.u32 %v636, 7
      %v638 = vsub.s32 %v635, %v637
      %v639 = vrot.slane %v625, %v638
      %v640 = vcombine.low %v309, %v311
      %v641 = vcombine.high %v309, %v311
      %v643 = vunpack.c.l.s4 1983009808
      %v644 = vunpack.c.0.s8 %v643
      %v645 = vlaneseq
      %v646 = vshrl.u32 %v645, 7
      %v647 = vsub.s32 %v644, %v646
      %v648 = vrot.slane %v640, %v647
      %v650 = vunpack.c.l.s4 1983009808
      %v651 = vunpack.c.0.s8 %v650
      %v652 = vlaneseq
      %v653 = vshrl.u32 %v652, 7
      %v654 = vsub.s32 %v651, %v653
      %v655 = vrot.slane %v641, %v654
      %v656 = vcombine.low %v600, %v616
      %v657 = vcombine.high %v600, %v616
      %v659 = vunpack.c.l.s4 1934713408
      %v660 = vunpack.c.0.s8 %v659
      %v661 = vlaneseq
      %v662 = vshrl.u32 %v661, 7
      %v663 = vsub.s32 %v660, %v662
      %v664 = vrot.slane %v656, %v663
      %v666 = vunpack.c.l.s4 1934713408
      %v667 = vunpack.c.0.s8 %v666
      %v668 = vlaneseq
      %v669 = vshrl.u32 %v668, 7
      %v670 = vsub.s32 %v667, %v669
      %v671 = vrot.slane %v657, %v670
      %v672 = vcombine.low %v607, %v623
      %v673 = vcombine.high %v607, %v623
      %v675 = vunpack.c.l.s4 1934713408
      %v676 = vunpack.c.0.s8 %v675
      %v677 = vlaneseq
      %v678 = vshrl.u32 %v677, 7
      %v679 = vsub.s32 %v676, %v678
      %v680 = vrot.slane %v672, %v679
      %v682 = vunpack.c.l.s4 1934713408
      %v683 = vunpack.c.0.s8 %v682
      %v684 = vlaneseq
      %v685 = vshrl.u32 %v684, 7
      %v686 = vsub.s32 %v683, %v685
      %v687 = vrot.slane %v673, %v686
      %v688 = vcombine.low %v632, %v648
      %v689 = vcombine.high %v632, %v648
      %v691 = vunpack.c.l.s4 1934713408
      %v692 = vunpack.c.0.s8 %v691
      %v693 = vlaneseq
      %v694 = vshrl.u32 %v693, 7
      %v695 = vsub.s32 %v692, %v694
      %v696 = vrot.slane %v688, %v695
      %v698 = vunpack.c.l.s4 1934713408
      %v699 = vunpack.c.0.s8 %v698
      %v700 = vlaneseq
      %v701 = vshrl.u32 %v700, 7
      %v702 = vsub.s32 %v699, %v701
      %v703 = vrot.slane %v689, %v702
      %v704 = vcombine.low %v639, %v655
      %v705 = vcombine.high %v639, %v655
      %v707 = vunpack.c.l.s4 1934713408
      %v708 = vunpack.c.0.s8 %v707
      %v709 = vlaneseq
      %v710 = vshrl.u32 %v709, 7
      %v711 = vsub.s32 %v708, %v710
      %v712 = vrot.slane %v704, %v711
      %v714 = vunpack.c.l.s4 1934713408
      %v715 = vunpack.c.0.s8 %v714
      %v716 = vlaneseq
      %v717 = vshrl.u32 %v716, 7
      %v718 = vsub.s32 %v715, %v717
      %v719 = vrot.slane %v705, %v718
      %v720 = vcombine.low %v664, %v696
      %v721 = vcombine.high %v664, %v696
      %v722 = vcombine.low %v671, %v703
      %v723 = vcombine.high %v671, %v703
      %v724 = vcombine.low %v680, %v712
      %v725 = vcombine.high %v680, %v712
      %v726 = vcombine.low %v687, %v719
      %v727 = vcombine.high %v687, %v719
      %v728 = vpack.c.bf16 %v288, %v288
      %v729 = vpack.c.bf16 %v289, %v289
      %v730 = vpack.c.bf16 %v290, %v290
      %v731 = vpack.c.bf16 %v291, %v291
      %v732 = vpack.c.bf16 %v292, %v292
      %v733 = vpack.c.bf16 %v293, %v293
      %v734 = vpack.c.bf16 %v294, %v294
      %v735 = vpack.c.bf16 %v295, %v295
      %v736 = vpack.c.bf16 %v296, %v296
      %v737 = vpack.c.bf16 %v297, %v297
      %v738 = vpack.c.bf16 %v298, %v298
      %v739 = vpack.c.bf16 %v299, %v299
      %v740 = vpack.c.bf16 %v300, %v300
      %v741 = vpack.c.bf16 %v301, %v301
      %v742 = vpack.c.bf16 %v302, %v302
      %v743 = vpack.c.bf16 %v303, %v303
      %v744 = vpack.c.bf16 %v448, %v448
      %v745 = vpack.c.bf16 %v449, %v449
      %v746 = vpack.c.bf16 %v450, %v450
      %v747 = vpack.c.bf16 %v451, %v451
      %v748 = vpack.c.bf16 %v452, %v452
      %v749 = vpack.c.bf16 %v453, %v453
      %v750 = vpack.c.bf16 %v454, %v454
      %v751 = vpack.c.bf16 %v455, %v455
      %v752 = vpack.c.bf16 %v584, %v584
      %v753 = vpack.c.bf16 %v585, %v585
      %v754 = vpack.c.bf16 %v586, %v586
      %v755 = vpack.c.bf16 %v587, %v587
      %v756 = vpack.c.bf16 %v588, %v588
      %v757 = vpack.c.bf16 %v589, %v589
      %v758 = vpack.c.bf16 %v590, %v590
      %v759 = vpack.c.bf16 %v591, %v591
      %vm760 = vcmask 15360
      %v762 = vsel %vm760, %v744, 0
      %v765 = vsel %vm760, %v752, 0
      %767 = vmatprep.subr.bf16.mxu0 0
      %768 = vmatpush1.bf16.xpose.msra.mxu0 %v765
      %769 = vmatprep.subr.bf16.mxu0 0
      %770 = vmatpush1.bf16.xpose.msra.mxu0 0
      %771 = vmatprep.subr.bf16.mxu0 0
      %772 = vmatpush1.bf16.xpose.msra.mxu0 0
      %773 = vmatprep.subr.bf16.mxu0 0
      %774 = vmatpush1.bf16.xpose.msra.mxu0 0
      %775 = vmatprep.subr.bf16.mxu0 0
      %776 = vmatpush1.bf16.xpose.msra.mxu0 0
      %777 = vmatprep.subr.bf16.mxu0 0
      %778 = vmatpush1.bf16.xpose.msra.mxu0 0
      %779 = vmatprep.subr.bf16.mxu0 0
      %780 = vmatpush1.bf16.xpose.msra.mxu0 0
      %781 = vmatprep.subr.bf16.mxu0 0
      %782 = vmatpush1.bf16.xpose.msra.mxu0 0
      %783 = vmatprep.subr.bf16.mxu0 0
      %784 = vmatpush1.bf16.xpose.msra.mxu0 0
      %785 = vmatprep.subr.bf16.mxu0 0
      %786 = vmatpush1.bf16.xpose.msra.mxu0 0
      %787 = vmatprep.subr.bf16.mxu0 0
      %788 = vmatpush1.bf16.xpose.msra.mxu0 0
      %789 = vmatprep.subr.bf16.mxu0 0
      %790 = vmatpush1.bf16.xpose.msra.mxu0 0
      %791 = vmatprep.subr.bf16.mxu0 0
      %792 = vmatpush1.bf16.xpose.msra.mxu0 0
      %793 = vmatprep.subr.bf16.mxu0 0
      %794 = vmatpush1.bf16.xpose.msra.mxu0 0
      %795 = vmatprep.subr.bf16.mxu0 0
      %796 = vmatpush1.bf16.xpose.msra.mxu0 0
      %797 = vmatprep.subr.bf16.mxu0 0
      %798 = vmatpush1.bf16.xpose.msra.mxu0 0
      %799 = vmatprep.mubr.bf16.mxu0 0
      %800 = vmatmul.mubr.bf16.gmra.mrb[0].mxu0 %v762
      %v801 = vpop.f32.mrb[0].mxu0
      %v802 = vadd.f32 0.0, %v801
      %v803 = vpop.f32.mrb[0].mxu0
      %v804 = vpop.f32.mrb[0].mxu0
      %v805 = vpop.f32.mrb[0].mxu0
      %806 = vdwg.mxu0
      %v808 = vsel %vm760, %v745, 0
      %v811 = vsel %vm760, %v753, 0
      %813 = vmatprep.subr.bf16.mxu0 0
      %814 = vmatpush1.bf16.xpose.msra.mxu0 %v811
      %815 = vmatprep.subr.bf16.mxu0 0
      %816 = vmatpush1.bf16.xpose.msra.mxu0 0
      %817 = vmatprep.subr.bf16.mxu0 0
      %818 = vmatpush1.bf16.xpose.msra.mxu0 0
      %819 = vmatprep.subr.bf16.mxu0 0
      %820 = vmatpush1.bf16.xpose.msra.mxu0 0
      %821 = vmatprep.subr.bf16.mxu0 0
      %822 = vmatpush1.bf16.xpose.msra.mxu0 0
      %823 = vmatprep.subr.bf16.mxu0 0
      %824 = vmatpush1.bf16.xpose.msra.mxu0 0
      %825 = vmatprep.subr.bf16.mxu0 0
      %826 = vmatpush1.bf16.xpose.msra.mxu0 0
      %827 = vmatprep.subr.bf16.mxu0 0
      %828 = vmatpush1.bf16.xpose.msra.mxu0 0
      %829 = vmatprep.subr.bf16.mxu0 0
      %830 = vmatpush1.bf16.xpose.msra.mxu0 0
      %831 = vmatprep.subr.bf16.mxu0 0
      %832 = vmatpush1.bf16.xpose.msra.mxu0 0
      %833 = vmatprep.subr.bf16.mxu0 0
      %834 = vmatpush1.bf16.xpose.msra.mxu0 0
      %835 = vmatprep.subr.bf16.mxu0 0
      %836 = vmatpush1.bf16.xpose.msra.mxu0 0
      %837 = vmatprep.subr.bf16.mxu0 0
      %838 = vmatpush1.bf16.xpose.msra.mxu0 0
      %839 = vmatprep.subr.bf16.mxu0 0
      %840 = vmatpush1.bf16.xpose.msra.mxu0 0
      %841 = vmatprep.subr.bf16.mxu0 0
      %842 = vmatpush1.bf16.xpose.msra.mxu0 0
      %843 = vmatprep.subr.bf16.mxu0 0
      %844 = vmatpush1.bf16.xpose.msra.mxu0 0
      %845 = vmatprep.mubr.bf16.mxu0 0
      %846 = vmatmul.mubr.bf16.gmra.mrb[0].mxu0 %v808
      %v847 = vpop.f32.mrb[0].mxu0
      %v848 = vadd.f32 0.0, %v847
      %v849 = vpop.f32.mrb[0].mxu0
      %v850 = vpop.f32.mrb[0].mxu0
      %v851 = vpop.f32.mrb[0].mxu0
      %852 = vdwg.mxu0
      %v854 = vsel %vm760, %v746, 0
      %v857 = vsel %vm760, %v754, 0
      %859 = vmatprep.subr.bf16.mxu0 0
      %860 = vmatpush1.bf16.xpose.msra.mxu0 %v857
      %861 = vmatprep.subr.bf16.mxu0 0
      %862 = vmatpush1.bf16.xpose.msra.mxu0 0
      %863 = vmatprep.subr.bf16.mxu0 0
      %864 = vmatpush1.bf16.xpose.msra.mxu0 0
      %865 = vmatprep.subr.bf16.mxu0 0
      %866 = vmatpush1.bf16.xpose.msra.mxu0 0
      %867 = vmatprep.subr.bf16.mxu0 0
      %868 = vmatpush1.bf16.xpose.msra.mxu0 0
      %869 = vmatprep.subr.bf16.mxu0 0
      %870 = vmatpush1.bf16.xpose.msra.mxu0 0
      %871 = vmatprep.subr.bf16.mxu0 0
      %872 = vmatpush1.bf16.xpose.msra.mxu0 0
      %873 = vmatprep.subr.bf16.mxu0 0
      %874 = vmatpush1.bf16.xpose.msra.mxu0 0
      %875 = vmatprep.subr.bf16.mxu0 0
      %876 = vmatpush1.bf16.xpose.msra.mxu0 0
      %877 = vmatprep.subr.bf16.mxu0 0
      %878 = vmatpush1.bf16.xpose.msra.mxu0 0
      %879 = vmatprep.subr.bf16.mxu0 0
      %880 = vmatpush1.bf16.xpose.msra.mxu0 0
      %881 = vmatprep.subr.bf16.mxu0 0
      %882 = vmatpush1.bf16.xpose.msra.mxu0 0
      %883 = vmatprep.subr.bf16.mxu0 0
      %884 = vmatpush1.bf16.xpose.msra.mxu0 0
      %885 = vmatprep.subr.bf16.mxu0 0
      %886 = vmatpush1.bf16.xpose.msra.mxu0 0
      %887 = vmatprep.subr.bf16.mxu0 0
      %888 = vmatpush1.bf16.xpose.msra.mxu0 0
      %889 = vmatprep.subr.bf16.mxu0 0
      %890 = vmatpush1.bf16.xpose.msra.mxu0 0
      %891 = vmatprep.mubr.bf16.mxu0 0
      %892 = vmatmul.mubr.bf16.gmra.mrb[0].mxu0 %v854
      %v893 = vpop.f32.mrb[0].mxu0
      %v894 = vadd.f32 0.0, %v893
      %v895 = vpop.f32.mrb[0].mxu0
      %v896 = vpop.f32.mrb[0].mxu0
      %v897 = vpop.f32.mrb[0].mxu0
      %898 = vdwg.mxu0
      %v900 = vsel %vm760, %v747, 0
      %v903 = vsel %vm760, %v755, 0
      %905 = vmatprep.subr.bf16.mxu0 0
      %906 = vmatpush1.bf16.xpose.msra.mxu0 %v903
      %907 = vmatprep.subr.bf16.mxu0 0
      %908 = vmatpush1.bf16.xpose.msra.mxu0 0
      %909 = vmatprep.subr.bf16.mxu0 0
      %910 = vmatpush1.bf16.xpose.msra.mxu0 0
      %911 = vmatprep.subr.bf16.mxu0 0
      %912 = vmatpush1.bf16.xpose.msra.mxu0 0
      %913 = vmatprep.subr.bf16.mxu0 0
      %914 = vmatpush1.bf16.xpose.msra.mxu0 0
      %915 = vmatprep.subr.bf16.mxu0 0
      %916 = vmatpush1.bf16.xpose.msra.mxu0 0
      %917 = vmatprep.subr.bf16.mxu0 0
      %918 = vmatpush1.bf16.xpose.msra.mxu0 0
      %919 = vmatprep.subr.bf16.mxu0 0
      %920 = vmatpush1.bf16.xpose.msra.mxu0 0
      %921 = vmatprep.subr.bf16.mxu0 0
      %922 = vmatpush1.bf16.xpose.msra.mxu0 0
      %923 = vmatprep.subr.bf16.mxu0 0
      %924 = vmatpush1.bf16.xpose.msra.mxu0 0
      %925 = vmatprep.subr.bf16.mxu0 0
      %926 = vmatpush1.bf16.xpose.msra.mxu0 0
      %927 = vmatprep.subr.bf16.mxu0 0
      %928 = vmatpush1.bf16.xpose.msra.mxu0 0
      %929 = vmatprep.subr.bf16.mxu0 0
      %930 = vmatpush1.bf16.xpose.msra.mxu0 0
      %931 = vmatprep.subr.bf16.mxu0 0
      %932 = vmatpush1.bf16.xpose.msra.mxu0 0
      %933 = vmatprep.subr.bf16.mxu0 0
      %934 = vmatpush1.bf16.xpose.msra.mxu0 0
      %935 = vmatprep.subr.bf16.mxu0 0
      %936 = vmatpush1.bf16.xpose.msra.mxu0 0
      %937 = vmatprep.mubr.bf16.mxu0 0
      %938 = vmatmul.mubr.bf16.gmra.mrb[0].mxu0 %v900
      %v939 = vpop.f32.mrb[0].mxu0
      %v940 = vadd.f32 0.0, %v939
      %v941 = vpop.f32.mrb[0].mxu0
      %v942 = vpop.f32.mrb[0].mxu0
      %v943 = vpop.f32.mrb[0].mxu0
      %944 = vdwg.mxu0
      %v946 = vsel %vm760, %v748, 0
      %v949 = vsel %vm760, %v756, 0
      %951 = vmatprep.subr.bf16.mxu0 0
      %952 = vmatpush1.bf16.xpose.msra.mxu0 %v949
      %953 = vmatprep.subr.bf16.mxu0 0
      %954 = vmatpush1.bf16.xpose.msra.mxu0 0
      %955 = vmatprep.subr.bf16.mxu0 0
      %956 = vmatpush1.bf16.xpose.msra.mxu0 0
      %957 = vmatprep.subr.bf16.mxu0 0
      %958 = vmatpush1.bf16.xpose.msra.mxu0 0
      %959 = vmatprep.subr.bf16.mxu0 0
      %960 = vmatpush1.bf16.xpose.msra.mxu0 0
      %961 = vmatprep.subr.bf16.mxu0 0
      %962 = vmatpush1.bf16.xpose.msra.mxu0 0
      %963 = vmatprep.subr.bf16.mxu0 0
      %964 = vmatpush1.bf16.xpose.msra.mxu0 0
      %965 = vmatprep.subr.bf16.mxu0 0
      %966 = vmatpush1.bf16.xpose.msra.mxu0 0
      %967 = vmatprep.subr.bf16.mxu0 0
      %968 = vmatpush1.bf16.xpose.msra.mxu0 0
      %969 = vmatprep.subr.bf16.mxu0 0
      %970 = vmatpush1.bf16.xpose.msra.mxu0 0
      %971 = vmatprep.subr.bf16.mxu0 0
      %972 = vmatpush1.bf16.xpose.msra.mxu0 0
      %973 = vmatprep.subr.bf16.mxu0 0
      %974 = vmatpush1.bf16.xpose.msra.mxu0 0
      %975 = vmatprep.subr.bf16.mxu0 0
      %976 = vmatpush1.bf16.xpose.msra.mxu0 0
      %977 = vmatprep.subr.bf16.mxu0 0
      %978 = vmatpush1.bf16.xpose.msra.mxu0 0
      %979 = vmatprep.subr.bf16.mxu0 0
      %980 = vmatpush1.bf16.xpose.msra.mxu0 0
      %981 = vmatprep.subr.bf16.mxu0 0
      %982 = vmatpush1.bf16.xpose.msra.mxu0 0
      %983 = vmatprep.mubr.bf16.mxu0 0
      %984 = vmatmul.mubr.bf16.gmra.mrb[0].mxu0 %v946
      %v985 = vpop.f32.mrb[0].mxu0
      %v986 = vadd.f32 0.0, %v985
      %v987 = vpop.f32.mrb[0].mxu0
      %v988 = vpop.f32.mrb[0].mxu0
      %v989 = vpop.f32.mrb[0].mxu0
      %990 = vdwg.mxu0
      %v992 = vsel %vm760, %v749, 0
      %v995 = vsel %vm760, %v757, 0
      %997 = vmatprep.subr.bf16.mxu0 0
      %998 = vmatpush1.bf16.xpose.msra.mxu0 %v995
      %999 = vmatprep.subr.bf16.mxu0 0
      %1000 = vmatpush1.bf16.xpose.msra.mxu0 0
      %1001 = vmatprep.subr.bf16.mxu0 0
      %1002 = vmatpush1.bf16.xpose.msra.mxu0 0
      %1003 = vmatprep.subr.bf16.mxu0 0
      %1004 = vmatpush1.bf16.xpose.msra.mxu0 0
      %1005 = vmatprep.subr.bf16.mxu0 0
      %1006 = vmatpush1.bf16.xpose.msra.mxu0 0
      %1007 = vmatprep.subr.bf16.mxu0 0
      %1008 = vmatpush1.bf16.xpose.msra.mxu0 0
      %1009 = vmatprep.subr.bf16.mxu0 0
      %1010 = vmatpush1.bf16.xpose.msra.mxu0 0
      %1011 = vmatprep.subr.bf16.mxu0 0
      %1012 = vmatpush1.bf16.xpose.msra.mxu0 0
      %1013 = vmatprep.subr.bf16.mxu0 0
      %1014 = vmatpush1.bf16.xpose.msra.mxu0 0
      %1015 = vmatprep.subr.bf16.mxu0 0
      %1016 = vmatpush1.bf16.xpose.msra.mxu0 0
      %1017 = vmatprep.subr.bf16.mxu0 0
      %1018 = vmatpush1.bf16.xpose.msra.mxu0 0
      %1019 = vmatprep.subr.bf16.mxu0 0
      %1020 = vmatpush1.bf16.xpose.msra.mxu0 0
      %1021 = vmatprep.subr.bf16.mxu0 0
      %1022 = vmatpush1.bf16.xpose.msra.mxu0 0
      %1023 = vmatprep.subr.bf16.mxu0 0
      %1024 = vmatpush1.bf16.xpose.msra.mxu0 0
      %1025 = vmatprep.subr.bf16.mxu0 0
      %1026 = vmatpush1.bf16.xpose.msra.mxu0 0
      %1027 = vmatprep.subr.bf16.mxu0 0
      %1028 = vmatpush1.bf16.xpose.msra.mxu0 0
      %1029 = vmatprep.mubr.bf16.mxu0 0
      %1030 = vmatmul.mubr.bf16.gmra.mrb[0].mxu0 %v992
      %v1031 = vpop.f32.mrb[0].mxu0
      %v1032 = vadd.f32 0.0, %v1031
      %v1033 = vpop.f32.mrb[0].mxu0
      %v1034 = vpop.f32.mrb[0].mxu0
      %v1035 = vpop.f32.mrb[0].mxu0
      %1036 = vdwg.mxu0
      %v1038 = vsel %vm760, %v750, 0
      %v1041 = vsel %vm760, %v758, 0
      %1043 = vmatprep.subr.bf16.mxu0 0
      %1044 = vmatpush1.bf16.xpose.msra.mxu0 %v1041
      %1045 = vmatprep.subr.bf16.mxu0 0
      %1046 = vmatpush1.bf16.xpose.msra.mxu0 0
      %1047 = vmatprep.subr.bf16.mxu0 0
      %1048 = vmatpush1.bf16.xpose.msra.mxu0 0
      %1049 = vmatprep.subr.bf16.mxu0 0
      %1050 = vmatpush1.bf16.xpose.msra.mxu0 0
      %1051 = vmatprep.subr.bf16.mxu0 0
      %1052 = vmatpush1.bf16.xpose.msra.mxu0 0
      %1053 = vmatprep.subr.bf16.mxu0 0
      %1054 = vmatpush1.bf16.xpose.msra.mxu0 0
      %1055 = vmatprep.subr.bf16.mxu0 0
      %1056 = vmatpush1.bf16.xpose.msra.mxu0 0
      %1057 = vmatprep.subr.bf16.mxu0 0
      %1058 = vmatpush1.bf16.xpose.msra.mxu0 0
      %1059 = vmatprep.subr.bf16.mxu0 0
      %1060 = vmatpush1.bf16.xpose.msra.mxu0 0
      %1061 = vmatprep.subr.bf16.mxu0 0
      %1062 = vmatpush1.bf16.xpose.msra.mxu0 0
      %1063 = vmatprep.subr.bf16.mxu0 0
      %1064 = vmatpush1.bf16.xpose.msra.mxu0 0
      %1065 = vmatprep.subr.bf16.mxu0 0
      %1066 = vmatpush1.bf16.xpose.msra.mxu0 0
      %1067 = vmatprep.subr.bf16.mxu0 0
      %1068 = vmatpush1.bf16.xpose.msra.mxu0 0
      %1069 = vmatprep.subr.bf16.mxu0 0
      %1070 = vmatpush1.bf16.xpose.msra.mxu0 0
      %1071 = vmatprep.subr.bf16.mxu0 0
      %1072 = vmatpush1.bf16.xpose.msra.mxu0 0
      %1073 = vmatprep.subr.bf16.mxu0 0
      %1074 = vmatpush1.bf16.xpose.msra.mxu0 0
      %1075 = vmatprep.mubr.bf16.mxu0 0
      %1076 = vmatmul.mubr.bf16.gmra.mrb[0].mxu0 %v1038
      %v1077 = vpop.f32.mrb[0].mxu0
      %v1078 = vadd.f32 0.0, %v1077
      %v1079 = vpop.f32.mrb[0].mxu0
      %v1080 = vpop.f32.mrb[0].mxu0
      %v1081 = vpop.f32.mrb[0].mxu0
      %1082 = vdwg.mxu0
      %v1084 = vsel %vm760, %v751, 0
      %v1087 = vsel %vm760, %v759, 0
      %1089 = vmatprep.subr.bf16.mxu0 0
      %1090 = vmatpush1.bf16.xpose.msra.mxu0 %v1087
      %1091 = vmatprep.subr.bf16.mxu0 0
      %1092 = vmatpush1.bf16.xpose.msra.mxu0 0
      %1093 = vmatprep.subr.bf16.mxu0 0
      %1094 = vmatpush1.bf16.xpose.msra.mxu0 0
      %1095 = vmatprep.subr.bf16.mxu0 0
      %1096 = vmatpush1.bf16.xpose.msra.mxu0 0
      %1097 = vmatprep.subr.bf16.mxu0 0
      %1098 = vmatpush1.bf16.xpose.msra.mxu0 0
      %1099 = vmatprep.subr.bf16.mxu0 0
      %1100 = vmatpush1.bf16.xpose.msra.mxu0 0
      %1101 = vmatprep.subr.bf16.mxu0 0
      %1102 = vmatpush1.bf16.xpose.msra.mxu0 0
      %1103 = vmatprep.subr.bf16.mxu0 0
      %1104 = vmatpush1.bf16.xpose.msra.mxu0 0
      %1105 = vmatprep.subr.bf16.mxu0 0
      %1106 = vmatpush1.bf16.xpose.msra.mxu0 0
      %1107 = vmatprep.subr.bf16.mxu0 0
      %1108 = vmatpush1.bf16.xpose.msra.mxu0 0
      %1109 = vmatprep.subr.bf16.mxu0 0
      %1110 = vmatpush1.bf16.xpose.msra.mxu0 0
      %1111 = vmatprep.subr.bf16.mxu0 0
      %1112 = vmatpush1.bf16.xpose.msra.mxu0 0
      %1113 = vmatprep.subr.bf16.mxu0 0
      %1114 = vmatpush1.bf16.xpose.msra.mxu0 0
      %1115 = vmatprep.subr.bf16.mxu0 0
      %1116 = vmatpush1.bf16.xpose.msra.mxu0 0
      %1117 = vmatprep.subr.bf16.mxu0 0
      %1118 = vmatpush1.bf16.xpose.msra.mxu0 0
      %1119 = vmatprep.subr.bf16.mxu0 0
      %1120 = vmatpush1.bf16.xpose.msra.mxu0 0
      %1121 = vmatprep.mubr.bf16.mxu0 0
      %1122 = vmatmul.mubr.bf16.gmra.mrb[0].mxu0 %v1084
      %v1123 = vpop.f32.mrb[0].mxu0
      %v1124 = vadd.f32 0.0, %v1123
      %v1125 = vpop.f32.mrb[0].mxu0
      %v1126 = vpop.f32.mrb[0].mxu0
      %v1127 = vpop.f32.mrb[0].mxu0
      %1128 = vdwg.mxu0
      %v1129 = vlaneseq
      %v1130 = vshrl.u32 %v1129, 7
      %v1131 = vlaneseq
      %v1132 = vand.u32 %v1131, 127
      %vm1133 = vcmp.eq.s32.totalorder %v1130, %v1132
      %v1134 = vsel %vm1133, 1, 0
      %vm1135 = vcmp.eq.s32.totalorder %v1134, 1
      %v1136 = vsel %vm1135, -inf, %v802
      %v1137 = vsel %vm1135, -inf, %v848
      %v1138 = vsel %vm1135, -inf, %v894
      %v1139 = vsel %vm1135, -inf, %v940
      %v1140 = vsel %vm1135, -inf, %v986
      %v1141 = vsel %vm1135, -inf, %v1032
      %v1142 = vsel %vm1135, -inf, %v1078
      %v1143 = vsel %vm1135, -inf, %v1124
      %v1145 = vsel %vm760, %v728, 0
      %v1148 = vsel %vm760, %v736, 0
      %1150 = vmatprep.subr.bf16.mxu0 0
      %1151 = vmatpush1.bf16.xpose.msra.mxu0 %v1148
      %1152 = vmatprep.subr.bf16.mxu0 0
      %1153 = vmatpush1.bf16.xpose.msra.mxu0 0
      %1154 = vmatprep.subr.bf16.mxu0 0
      %1155 = vmatpush1.bf16.xpose.msra.mxu0 0
      %1156 = vmatprep.subr.bf16.mxu0 0
      %1157 = vmatpush1.bf16.xpose.msra.mxu0 0
      %1158 = vmatprep.subr.bf16.mxu0 0
      %1159 = vmatpush1.bf16.xpose.msra.mxu0 0
      %1160 = vmatprep.subr.bf16.mxu0 0
      %1161 = vmatpush1.bf16.xpose.msra.mxu0 0
      %1162 = vmatprep.subr.bf16.mxu0 0
      %1163 = vmatpush1.bf16.xpose.msra.mxu0 0
      %1164 = vmatprep.subr.bf16.mxu0 0
      %1165 = vmatpush1.bf16.xpose.msra.mxu0 0
      %1166 = vmatprep.subr.bf16.mxu0 0
      %1167 = vmatpush1.bf16.xpose.msra.mxu0 0
      %1168 = vmatprep.subr.bf16.mxu0 0
      %1169 = vmatpush1.bf16.xpose.msra.mxu0 0
      %1170 = vmatprep.subr.bf16.mxu0 0
      %1171 = vmatpush1.bf16.xpose.msra.mxu0 0
      %1172 = vmatprep.subr.bf16.mxu0 0
      %1173 = vmatpush1.bf16.xpose.msra.mxu0 0
      %1174 = vmatprep.subr.bf16.mxu0 0
      %1175 = vmatpush1.bf16.xpose.msra.mxu0 0
      %1176 = vmatprep.subr.bf16.mxu0 0
      %1177 = vmatpush1.bf16.xpose.msra.mxu0 0
      %1178 = vmatprep.subr.bf16.mxu0 0
      %1179 = vmatpush1.bf16.xpose.msra.mxu0 0
      %1180 = vmatprep.subr.bf16.mxu0 0
      %1181 = vmatpush1.bf16.xpose.msra.mxu0 0
      %1182 = vmatprep.mubr.bf16.mxu0 0
      %1183 = vmatmul.mubr.bf16.gmra.mrb[0].mxu0 %v1145
      %v1184 = vpop.f32.mrb[0].mxu0
      %v1185 = vadd.f32 0.0, %v1184
      %v1186 = vpop.f32.mrb[0].mxu0
      %v1187 = vpop.f32.mrb[0].mxu0
      %v1188 = vpop.f32.mrb[0].mxu0
      %1189 = vdwg.mxu0
      %v1191 = vsel %vm760, %v729, 0
      %v1194 = vsel %vm760, %v737, 0
      %1196 = vmatprep.subr.bf16.mxu0 0
      %1197 = vmatpush1.bf16.xpose.msra.mxu0 %v1194
      %1198 = vmatprep.subr.bf16.mxu0 0
      %1199 = vmatpush1.bf16.xpose.msra.mxu0 0
      %1200 = vmatprep.subr.bf16.mxu0 0
      %1201 = vmatpush1.bf16.xpose.msra.mxu0 0
      %1202 = vmatprep.subr.bf16.mxu0 0
      %1203 = vmatpush1.bf16.xpose.msra.mxu0 0
      %1204 = vmatprep.subr.bf16.mxu0 0
      %1205 = vmatpush1.bf16.xpose.msra.mxu0 0
      %1206 = vmatprep.subr.bf16.mxu0 0
      %1207 = vmatpush1.bf16.xpose.msra.mxu0 0
      %1208 = vmatprep.subr.bf16.mxu0 0
      %1209 = vmatpush1.bf16.xpose.msra.mxu0 0
      %1210 = vmatprep.subr.bf16.mxu0 0
      %1211 = vmatpush1.bf16.xpose.msra.mxu0 0
      %1212 = vmatprep.subr.bf16.mxu0 0
      %1213 = vmatpush1.bf16.xpose.msra.mxu0 0
      %1214 = vmatprep.subr.bf16.mxu0 0
      %1215 = vmatpush1.bf16.xpose.msra.mxu0 0
      %1216 = vmatprep.subr.bf16.mxu0 0
      %1217 = vmatpush1.bf16.xpose.msra.mxu0 0
      %1218 = vmatprep.subr.bf16.mxu0 0
      %1219 = vmatpush1.bf16.xpose.msra.mxu0 0
      %1220 = vmatprep.subr.bf16.mxu0 0
      %1221 = vmatpush1.bf16.xpose.msra.mxu0 0
      %1222 = vmatprep.subr.bf16.mxu0 0
      %1223 = vmatpush1.bf16.xpose.msra.mxu0 0
      %1224 = vmatprep.subr.bf16.mxu0 0
      %1225 = vmatpush1.bf16.xpose.msra.mxu0 0
      %1226 = vmatprep.subr.bf16.mxu0 0
      %1227 = vmatpush1.bf16.xpose.msra.mxu0 0
      %1228 = vmatprep.mubr.bf16.mxu0 0
      %1229 = vmatmul.mubr.bf16.gmra.mrb[0].mxu0 %v1191
      %v1230 = vpop.f32.mrb[0].mxu0
      %v1231 = vadd.f32 0.0, %v1230
      %v1232 = vpop.f32.mrb[0].mxu0
      %v1233 = vpop.f32.mrb[0].mxu0
      %v1234 = vpop.f32.mrb[0].mxu0
      %1235 = vdwg.mxu0
      %v1237 = vsel %vm760, %v730, 0
      %v1240 = vsel %vm760, %v738, 0
      %1242 = vmatprep.subr.bf16.mxu0 0
      %1243 = vmatpush1.bf16.xpose.msra.mxu0 %v1240
      %1244 = vmatprep.subr.bf16.mxu0 0
      %1245 = vmatpush1.bf16.xpose.msra.mxu0 0
      %1246 = vmatprep.subr.bf16.mxu0 0
      %1247 = vmatpush1.bf16.xpose.msra.mxu0 0
      %1248 = vmatprep.subr.bf16.mxu0 0
      %1249 = vmatpush1.bf16.xpose.msra.mxu0 0
      %1250 = vmatprep.subr.bf16.mxu0 0
      %1251 = vmatpush1.bf16.xpose.msra.mxu0 0
      %1252 = vmatprep.subr.bf16.mxu0 0
      %1253 = vmatpush1.bf16.xpose.msra.mxu0 0
      %1254 = vmatprep.subr.bf16.mxu0 0
      %1255 = vmatpush1.bf16.xpose.msra.mxu0 0
      %1256 = vmatprep.subr.bf16.mxu0 0
      %1257 = vmatpush1.bf16.xpose.msra.mxu0 0
      %1258 = vmatprep.subr.bf16.mxu0 0
      %1259 = vmatpush1.bf16.xpose.msra.mxu0 0
      %1260 = vmatprep.subr.bf16.mxu0 0
      %1261 = vmatpush1.bf16.xpose.msra.mxu0 0
      %1262 = vmatprep.subr.bf16.mxu0 0
      %1263 = vmatpush1.bf16.xpose.msra.mxu0 0
      %1264 = vmatprep.subr.bf16.mxu0 0
      %1265 = vmatpush1.bf16.xpose.msra.mxu0 0
      %1266 = vmatprep.subr.bf16.mxu0 0
      %1267 = vmatpush1.bf16.xpose.msra.mxu0 0
      %1268 = vmatprep.subr.bf16.mxu0 0
      %1269 = vmatpush1.bf16.xpose.msra.mxu0 0
      %1270 = vmatprep.subr.bf16.mxu0 0
      %1271 = vmatpush1.bf16.xpose.msra.mxu0 0
      %1272 = vmatprep.subr.bf16.mxu0 0
      %1273 = vmatpush1.bf16.xpose.msra.mxu0 0
      %1274 = vmatprep.mubr.bf16.mxu0 0
      %1275 = vmatmul.mubr.bf16.gmra.mrb[0].mxu0 %v1237
      %v1276 = vpop.f32.mrb[0].mxu0
      %v1277 = vadd.f32 0.0, %v1276
      %v1278 = vpop.f32.mrb[0].mxu0
      %v1279 = vpop.f32.mrb[0].mxu0
      %v1280 = vpop.f32.mrb[0].mxu0
      %1281 = vdwg.mxu0
      %v1283 = vsel %vm760, %v731, 0
      %v1286 = vsel %vm760, %v739, 0
      %1288 = vmatprep.subr.bf16.mxu0 0
      %1289 = vmatpush1.bf16.xpose.msra.mxu0 %v1286
      %1290 = vmatprep.subr.bf16.mxu0 0
      %1291 = vmatpush1.bf16.xpose.msra.mxu0 0
      %1292 = vmatprep.subr.bf16.mxu0 0
      %1293 = vmatpush1.bf16.xpose.msra.mxu0 0
      %1294 = vmatprep.subr.bf16.mxu0 0
      %1295 = vmatpush1.bf16.xpose.msra.mxu0 0
      %1296 = vmatprep.subr.bf16.mxu0 0
      %1297 = vmatpush1.bf16.xpose.msra.mxu0 0
      %1298 = vmatprep.subr.bf16.mxu0 0
      %1299 = vmatpush1.bf16.xpose.msra.mxu0 0
      %1300 = vmatprep.subr.bf16.mxu0 0
      %1301 = vmatpush1.bf16.xpose.msra.mxu0 0
      %1302 = vmatprep.subr.bf16.mxu0 0
      %1303 = vmatpush1.bf16.xpose.msra.mxu0 0
      %1304 = vmatprep.subr.bf16.mxu0 0
      %1305 = vmatpush1.bf16.xpose.msra.mxu0 0
      %1306 = vmatprep.subr.bf16.mxu0 0
      %1307 = vmatpush1.bf16.xpose.msra.mxu0 0
      %1308 = vmatprep.subr.bf16.mxu0 0
      %1309 = vmatpush1.bf16.xpose.msra.mxu0 0
      %1310 = vmatprep.subr.bf16.mxu0 0
      %1311 = vmatpush1.bf16.xpose.msra.mxu0 0
      %1312 = vmatprep.subr.bf16.mxu0 0
      %1313 = vmatpush1.bf16.xpose.msra.mxu0 0
      %1314 = vmatprep.subr.bf16.mxu0 0
      %1315 = vmatpush1.bf16.xpose.msra.mxu0 0
      %1316 = vmatprep.subr.bf16.mxu0 0
      %1317 = vmatpush1.bf16.xpose.msra.mxu0 0
      %1318 = vmatprep.subr.bf16.mxu0 0
      %1319 = vmatpush1.bf16.xpose.msra.mxu0 0
      %1320 = vmatprep.mubr.bf16.mxu0 0
      %1321 = vmatmul.mubr.bf16.gmra.mrb[0].mxu0 %v1283
      %v1322 = vpop.f32.mrb[0].mxu0
      %v1323 = vadd.f32 0.0, %v1322
      %v1324 = vpop.f32.mrb[0].mxu0
      %v1325 = vpop.f32.mrb[0].mxu0
      %v1326 = vpop.f32.mrb[0].mxu0
      %1327 = vdwg.mxu0
      %v1329 = vsel %vm760, %v732, 0
      %v1332 = vsel %vm760, %v740, 0
      %1334 = vmatprep.subr.bf16.mxu0 0
      %1335 = vmatpush1.bf16.xpose.msra.mxu0 %v1332
      %1336 = vmatprep.subr.bf16.mxu0 0
      %1337 = vmatpush1.bf16.xpose.msra.mxu0 0
      %1338 = vmatprep.subr.bf16.mxu0 0
      %1339 = vmatpush1.bf16.xpose.msra.mxu0 0
      %1340 = vmatprep.subr.bf16.mxu0 0
      %1341 = vmatpush1.bf16.xpose.msra.mxu0 0
      %1342 = vmatprep.subr.bf16.mxu0 0
      %1343 = vmatpush1.bf16.xpose.msra.mxu0 0
      %1344 = vmatprep.subr.bf16.mxu0 0
      %1345 = vmatpush1.bf16.xpose.msra.mxu0 0
      %1346 = vmatprep.subr.bf16.mxu0 0
      %1347 = vmatpush1.bf16.xpose.msra.mxu0 0
      %1348 = vmatprep.subr.bf16.mxu0 0
      %1349 = vmatpush1.bf16.xpose.msra.mxu0 0
      %1350 = vmatprep.subr.bf16.mxu0 0
      %1351 = vmatpush1.bf16.xpose.msra.mxu0 0
      %1352 = vmatprep.subr.bf16.mxu0 0
      %1353 = vmatpush1.bf16.xpose.msra.mxu0 0
      %1354 = vmatprep.subr.bf16.mxu0 0
      %1355 = vmatpush1.bf16.xpose.msra.mxu0 0
      %1356 = vmatprep.subr.bf16.mxu0 0
      %1357 = vmatpush1.bf16.xpose.msra.mxu0 0
      %1358 = vmatprep.subr.bf16.mxu0 0
      %1359 = vmatpush1.bf16.xpose.msra.mxu0 0
      %1360 = vmatprep.subr.bf16.mxu0 0
      %1361 = vmatpush1.bf16.xpose.msra.mxu0 0
      %1362 = vmatprep.subr.bf16.mxu0 0
      %1363 = vmatpush1.bf16.xpose.msra.mxu0 0
      %1364 = vmatprep.subr.bf16.mxu0 0
      %1365 = vmatpush1.bf16.xpose.msra.mxu0 0
      %1366 = vmatprep.mubr.bf16.mxu0 0
      %1367 = vmatmul.mubr.bf16.gmra.mrb[0].mxu0 %v1329
      %v1368 = vpop.f32.mrb[0].mxu0
      %v1369 = vadd.f32 0.0, %v1368
      %v1370 = vpop.f32.mrb[0].mxu0
      %v1371 = vpop.f32.mrb[0].mxu0
      %v1372 = vpop.f32.mrb[0].mxu0
      %1373 = vdwg.mxu0
      %v1375 = vsel %vm760, %v733, 0
      %v1378 = vsel %vm760, %v741, 0
      %1380 = vmatprep.subr.bf16.mxu0 0
      %1381 = vmatpush1.bf16.xpose.msra.mxu0 %v1378
      %1382 = vmatprep.subr.bf16.mxu0 0
      %1383 = vmatpush1.bf16.xpose.msra.mxu0 0
      %1384 = vmatprep.subr.bf16.mxu0 0
      %1385 = vmatpush1.bf16.xpose.msra.mxu0 0
      %1386 = vmatprep.subr.bf16.mxu0 0
      %1387 = vmatpush1.bf16.xpose.msra.mxu0 0
      %1388 = vmatprep.subr.bf16.mxu0 0
      %1389 = vmatpush1.bf16.xpose.msra.mxu0 0
      %1390 = vmatprep.subr.bf16.mxu0 0
      %1391 = vmatpush1.bf16.xpose.msra.mxu0 0
      %1392 = vmatprep.subr.bf16.mxu0 0
      %1393 = vmatpush1.bf16.xpose.msra.mxu0 0
      %1394 = vmatprep.subr.bf16.mxu0 0
      %1395 = vmatpush1.bf16.xpose.msra.mxu0 0
      %1396 = vmatprep.subr.bf16.mxu0 0
      %1397 = vmatpush1.bf16.xpose.msra.mxu0 0
      %1398 = vmatprep.subr.bf16.mxu0 0
      %1399 = vmatpush1.bf16.xpose.msra.mxu0 0
      %1400 = vmatprep.subr.bf16.mxu0 0
      %1401 = vmatpush1.bf16.xpose.msra.mxu0 0
      %1402 = vmatprep.subr.bf16.mxu0 0
      %1403 = vmatpush1.bf16.xpose.msra.mxu0 0
      %1404 = vmatprep.subr.bf16.mxu0 0
      %1405 = vmatpush1.bf16.xpose.msra.mxu0 0
      %1406 = vmatprep.subr.bf16.mxu0 0
      %1407 = vmatpush1.bf16.xpose.msra.mxu0 0
      %1408 = vmatprep.subr.bf16.mxu0 0
      %1409 = vmatpush1.bf16.xpose.msra.mxu0 0
      %1410 = vmatprep.subr.bf16.mxu0 0
      %1411 = vmatpush1.bf16.xpose.msra.mxu0 0
      %1412 = vmatprep.mubr.bf16.mxu0 0
      %1413 = vmatmul.mubr.bf16.gmra.mrb[0].mxu0 %v1375
      %v1414 = vpop.f32.mrb[0].mxu0
      %v1415 = vadd.f32 0.0, %v1414
      %v1416 = vpop.f32.mrb[0].mxu0
      %v1417 = vpop.f32.mrb[0].mxu0
      %v1418 = vpop.f32.mrb[0].mxu0
      %1419 = vdwg.mxu0
      %v1421 = vsel %vm760, %v734, 0
      %v1424 = vsel %vm760, %v742, 0
      %1426 = vmatprep.subr.bf16.mxu0 0
      %1427 = vmatpush1.bf16.xpose.msra.mxu0 %v1424
      %1428 = vmatprep.subr.bf16.mxu0 0
      %1429 = vmatpush1.bf16.xpose.msra.mxu0 0
      %1430 = vmatprep.subr.bf16.mxu0 0
      %1431 = vmatpush1.bf16.xpose.msra.mxu0 0
      %1432 = vmatprep.subr.bf16.mxu0 0
      %1433 = vmatpush1.bf16.xpose.msra.mxu0 0
      %1434 = vmatprep.subr.bf16.mxu0 0
      %1435 = vmatpush1.bf16.xpose.msra.mxu0 0
      %1436 = vmatprep.subr.bf16.mxu0 0
      %1437 = vmatpush1.bf16.xpose.msra.mxu0 0
      %1438 = vmatprep.subr.bf16.mxu0 0
      %1439 = vmatpush1.bf16.xpose.msra.mxu0 0
      %1440 = vmatprep.subr.bf16.mxu0 0
      %1441 = vmatpush1.bf16.xpose.msra.mxu0 0
      %1442 = vmatprep.subr.bf16.mxu0 0
      %1443 = vmatpush1.bf16.xpose.msra.mxu0 0
      %1444 = vmatprep.subr.bf16.mxu0 0
      %1445 = vmatpush1.bf16.xpose.msra.mxu0 0
      %1446 = vmatprep.subr.bf16.mxu0 0
      %1447 = vmatpush1.bf16.xpose.msra.mxu0 0
      %1448 = vmatprep.subr.bf16.mxu0 0
      %1449 = vmatpush1.bf16.xpose.msra.mxu0 0
      %1450 = vmatprep.subr.bf16.mxu0 0
      %1451 = vmatpush1.bf16.xpose.msra.mxu0 0
      %1452 = vmatprep.subr.bf16.mxu0 0
      %1453 = vmatpush1.bf16.xpose.msra.mxu0 0
      %1454 = vmatprep.subr.bf16.mxu0 0
      %1455 = vmatpush1.bf16.xpose.msra.mxu0 0
      %1456 = vmatprep.subr.bf16.mxu0 0
      %1457 = vmatpush1.bf16.xpose.msra.mxu0 0
      %1458 = vmatprep.mubr.bf16.mxu0 0
      %1459 = vmatmul.mubr.bf16.gmra.mrb[0].mxu0 %v1421
      %v1460 = vpop.f32.mrb[0].mxu0
      %v1461 = vadd.f32 0.0, %v1460
      %v1462 = vpop.f32.mrb[0].mxu0
      %v1463 = vpop.f32.mrb[0].mxu0
      %v1464 = vpop.f32.mrb[0].mxu0
      %1465 = vdwg.mxu0
      %v1467 = vsel %vm760, %v735, 0
      %v1470 = vsel %vm760, %v743, 0
      %1472 = vmatprep.subr.bf16.mxu0 0
      %1473 = vmatpush1.bf16.xpose.msra.mxu0 %v1470
      %1474 = vmatprep.subr.bf16.mxu0 0
      %1475 = vmatpush1.bf16.xpose.msra.mxu0 0
      %1476 = vmatprep.subr.bf16.mxu0 0
      %1477 = vmatpush1.bf16.xpose.msra.mxu0 0
      %1478 = vmatprep.subr.bf16.mxu0 0
      %1479 = vmatpush1.bf16.xpose.msra.mxu0 0
      %1480 = vmatprep.subr.bf16.mxu0 0
      %1481 = vmatpush1.bf16.xpose.msra.mxu0 0
      %1482 = vmatprep.subr.bf16.mxu0 0
      %1483 = vmatpush1.bf16.xpose.msra.mxu0 0
      %1484 = vmatprep.subr.bf16.mxu0 0
      %1485 = vmatpush1.bf16.xpose.msra.mxu0 0
      %1486 = vmatprep.subr.bf16.mxu0 0
      %1487 = vmatpush1.bf16.xpose.msra.mxu0 0
      %1488 = vmatprep.subr.bf16.mxu0 0
      %1489 = vmatpush1.bf16.xpose.msra.mxu0 0
      %1490 = vmatprep.subr.bf16.mxu0 0
      %1491 = vmatpush1.bf16.xpose.msra.mxu0 0
      %1492 = vmatprep.subr.bf16.mxu0 0
      %1493 = vmatpush1.bf16.xpose.msra.mxu0 0
      %1494 = vmatprep.subr.bf16.mxu0 0
      %1495 = vmatpush1.bf16.xpose.msra.mxu0 0
      %1496 = vmatprep.subr.bf16.mxu0 0
      %1497 = vmatpush1.bf16.xpose.msra.mxu0 0
      %1498 = vmatprep.subr.bf16.mxu0 0
      %1499 = vmatpush1.bf16.xpose.msra.mxu0 0
      %1500 = vmatprep.subr.bf16.mxu0 0
      %1501 = vmatpush1.bf16.xpose.msra.mxu0 0
      %1502 = vmatprep.subr.bf16.mxu0 0
      %1503 = vmatpush1.bf16.xpose.msra.mxu0 0
      %1504 = vmatprep.mubr.bf16.mxu0 0
      %1505 = vmatmul.mubr.bf16.gmra.mrb[0].mxu0 %v1467
      %v1506 = vpop.f32.mrb[0].mxu0
      %v1507 = vadd.f32 0.0, %v1506
      %v1508 = vpop.f32.mrb[0].mxu0
      %v1509 = vpop.f32.mrb[0].mxu0
      %v1510 = vpop.f32.mrb[0].mxu0
      %1511 = vdwg.mxu0
      %vm1512 = vcmask 64512
      %v1513 = vsel %vm1512, %v1136, -inf
      %1514 = vmax.xlane.f32.xlu0 %v1513
      %v1515 = vpop.xlane.xlu0 %1514
      %v1516 = vsel %vm1512, %v1137, -inf
      %1517 = vmax.xlane.f32.xlu0 %v1516
      %v1518 = vpop.xlane.xlu0 %1517
      %v1519 = vsel %vm1512, %v1138, -inf
      %1520 = vmax.xlane.f32.xlu0 %v1519
      %v1521 = vpop.xlane.xlu0 %1520
      %v1522 = vsel %vm1512, %v1139, -inf
      %1523 = vmax.xlane.f32.xlu0 %v1522
      %v1524 = vpop.xlane.xlu0 %1523
      %v1525 = vsel %vm1512, %v1140, -inf
      %1526 = vmax.xlane.f32.xlu0 %v1525
      %v1527 = vpop.xlane.xlu0 %1526
      %v1528 = vsel %vm1512, %v1141, -inf
      %1529 = vmax.xlane.f32.xlu0 %v1528
      %v1530 = vpop.xlane.xlu0 %1529
      %v1531 = vsel %vm1512, %v1142, -inf
      %1532 = vmax.xlane.f32.xlu0 %v1531
      %v1533 = vpop.xlane.xlu0 %1532
      %v1534 = vsel %vm1512, %v1143, -inf
      %1535 = vmax.xlane.f32.xlu0 %v1534
      %v1536 = vpop.xlane.xlu0 %1535
      %v1545 = vlaneseq
      %v1546 = vshrl.u32 %v1545, 7
      %v1547 = vsub.s32 %v1132, %v1546
      %v1548 = vrot.slane %v1515, %v1547
      %v1549 = vlaneseq
      %v1550 = vshrl.u32 %v1549, 7
      %v1551 = vsub.s32 %v1132, %v1550
      %v1552 = vrot.slane %v1518, %v1551
      %v1553 = vlaneseq
      %v1554 = vshrl.u32 %v1553, 7
      %v1555 = vsub.s32 %v1132, %v1554
      %v1556 = vrot.slane %v1521, %v1555
      %v1557 = vlaneseq
      %v1558 = vshrl.u32 %v1557, 7
      %v1559 = vsub.s32 %v1132, %v1558
      %v1560 = vrot.slane %v1524, %v1559
      %v1561 = vlaneseq
      %v1562 = vshrl.u32 %v1561, 7
      %v1563 = vsub.s32 %v1132, %v1562
      %v1564 = vrot.slane %v1527, %v1563
      %v1565 = vlaneseq
      %v1566 = vshrl.u32 %v1565, 7
      %v1567 = vsub.s32 %v1132, %v1566
      %v1568 = vrot.slane %v1530, %v1567
      %v1569 = vlaneseq
      %v1570 = vshrl.u32 %v1569, 7
      %v1571 = vsub.s32 %v1132, %v1570
      %v1572 = vrot.slane %v1533, %v1571
      %v1573 = vlaneseq
      %v1574 = vshrl.u32 %v1573, 7
      %v1575 = vsub.s32 %v1132, %v1574
      %v1576 = vrot.slane %v1536, %v1575
      %vm1577 = vcmask 1041409
      %v1578 = vsel %vm1577, %v1552, %v1548
      %vm1579 = vcmask 1042434
      %v1580 = vsel %vm1579, %v1556, %v1578
      %vm1581 = vcmask 1043459
      %v1582 = vsel %vm1581, %v1560, %v1580
      %vm1583 = vcmask 1044484
      %v1584 = vsel %vm1583, %v1564, %v1582
      %vm1585 = vcmask 1045509
      %v1586 = vsel %vm1585, %v1568, %v1584
      %vm1587 = vcmask 1046534
      %v1588 = vsel %vm1587, %v1572, %v1586
      %vm1589 = vcmask 1047559
      %v1590 = vsel %vm1589, %v1576, %v1588
      %1592 = vxpose.xlu0.b32.start [1/16] %v1590, 128
      %1593 = vxpose.xlu0.b32.cont [2/16] 0.0, 128
      %1594 = vxpose.xlu0.b32.cont [3/16] 0.0, 128
      %1595 = vxpose.xlu0.b32.cont [4/16] 0.0, 128
      %1596 = vxpose.xlu0.b32.cont [5/16] 0.0, 128
      %1597 = vxpose.xlu0.b32.cont [6/16] 0.0, 128
      %1598 = vxpose.xlu0.b32.cont [7/16] 0.0, 128
      %1599 = vxpose.xlu0.b32.cont [8/16] 0.0, 128
      %1600 = vxpose.xlu0.b32.cont [9/16] 0.0, 128
      %1601 = vxpose.xlu0.b32.cont [10/16] 0.0, 128
      %1602 = vxpose.xlu0.b32.cont [11/16] 0.0, 128
      %1603 = vxpose.xlu0.b32.cont [12/16] 0.0, 128
      %1604 = vxpose.xlu0.b32.cont [13/16] 0.0, 128
      %1605 = vxpose.xlu0.b32.cont [14/16] 0.0, 128
      %1606 = vxpose.xlu0.b32.cont [15/16] 0.0, 128
      %1607 = vxpose.xlu0.b32.end [16/16] 0.0, 128
      %v1608 = vpop.trf.xlu0
      %v1609 = vpop.trf.xlu0
      %v1610 = vpop.trf.xlu0
      %v1611 = vpop.trf.xlu0
      %v1612 = vpop.trf.xlu0
      %v1613 = vpop.trf.xlu0
      %v1614 = vpop.trf.xlu0
      %v1615 = vpop.trf.xlu0
      %v1616 = vpop.trf.xlu0
      %v1617 = vpop.trf.xlu0
      %v1618 = vpop.trf.xlu0
      %v1619 = vpop.trf.xlu0
      %v1620 = vpop.trf.xlu0
      %v1621 = vpop.trf.xlu0
      %v1622 = vpop.trf.xlu0
      %v1623 = vpop.trf.xlu0
      %v1624 = vsel %vm1512, %v1185, -inf
      %1625 = vmax.xlane.f32.xlu0 %v1624
      %v1626 = vpop.xlane.xlu0 %1625
      %v1627 = vsel %vm1512, %v1231, -inf
      %1628 = vmax.xlane.f32.xlu0 %v1627
      %v1629 = vpop.xlane.xlu0 %1628
      %v1630 = vsel %vm1512, %v1277, -inf
      %1631 = vmax.xlane.f32.xlu0 %v1630
      %v1632 = vpop.xlane.xlu0 %1631
      %v1633 = vsel %vm1512, %v1323, -inf
      %1634 = vmax.xlane.f32.xlu0 %v1633
      %v1635 = vpop.xlane.xlu0 %1634
      %v1636 = vsel %vm1512, %v1369, -inf
      %1637 = vmax.xlane.f32.xlu0 %v1636
      %v1638 = vpop.xlane.xlu0 %1637
      %v1639 = vsel %vm1512, %v1415, -inf
      %1640 = vmax.xlane.f32.xlu0 %v1639
      %v1641 = vpop.xlane.xlu0 %1640
      %v1642 = vsel %vm1512, %v1461, -inf
      %1643 = vmax.xlane.f32.xlu0 %v1642
      %v1644 = vpop.xlane.xlu0 %1643
      %v1645 = vsel %vm1512, %v1507, -inf
      %1646 = vmax.xlane.f32.xlu0 %v1645
      %v1647 = vpop.xlane.xlu0 %1646
      %v1656 = vlaneseq
      %v1657 = vshrl.u32 %v1656, 7
      %v1658 = vsub.s32 %v1132, %v1657
      %v1659 = vrot.slane %v1626, %v1658
      %v1660 = vlaneseq
      %v1661 = vshrl.u32 %v1660, 7
      %v1662 = vsub.s32 %v1132, %v1661
      %v1663 = vrot.slane %v1629, %v1662
      %v1664 = vlaneseq
      %v1665 = vshrl.u32 %v1664, 7
      %v1666 = vsub.s32 %v1132, %v1665
      %v1667 = vrot.slane %v1632, %v1666
      %v1668 = vlaneseq
      %v1669 = vshrl.u32 %v1668, 7
      %v1670 = vsub.s32 %v1132, %v1669
      %v1671 = vrot.slane %v1635, %v1670
      %v1672 = vlaneseq
      %v1673 = vshrl.u32 %v1672, 7
      %v1674 = vsub.s32 %v1132, %v1673
      %v1675 = vrot.slane %v1638, %v1674
      %v1676 = vlaneseq
      %v1677 = vshrl.u32 %v1676, 7
      %v1678 = vsub.s32 %v1132, %v1677
      %v1679 = vrot.slane %v1641, %v1678
      %v1680 = vlaneseq
      %v1681 = vshrl.u32 %v1680, 7
      %v1682 = vsub.s32 %v1132, %v1681
      %v1683 = vrot.slane %v1644, %v1682
      %v1684 = vlaneseq
      %v1685 = vshrl.u32 %v1684, 7
      %v1686 = vsub.s32 %v1132, %v1685
      %v1687 = vrot.slane %v1647, %v1686
      %v1688 = vsel %vm1577, %v1663, %v1659
      %v1689 = vsel %vm1579, %v1667, %v1688
      %v1690 = vsel %vm1581, %v1671, %v1689
      %v1691 = vsel %vm1583, %v1675, %v1690
      %v1692 = vsel %vm1585, %v1679, %v1691
      %v1693 = vsel %vm1587, %v1683, %v1692
      %v1694 = vsel %vm1589, %v1687, %v1693
      %v1696 = vmax.f32 %v1608, %v1694
      %1697 = vxpose.xlu0.b32.start [1/16] %v1696, 128
      %1698 = vxpose.xlu0.b32.cont [2/16] 0.0, 128
      %1699 = vxpose.xlu0.b32.cont [3/16] 0.0, 128
      %1700 = vxpose.xlu0.b32.cont [4/16] 0.0, 128
      %1701 = vxpose.xlu0.b32.cont [5/16] 0.0, 128
      %1702 = vxpose.xlu0.b32.cont [6/16] 0.0, 128
      %1703 = vxpose.xlu0.b32.cont [7/16] 0.0, 128
      %1704 = vxpose.xlu0.b32.cont [8/16] 0.0, 128
      %1705 = vxpose.xlu0.b32.cont [9/16] 0.0, 128
      %1706 = vxpose.xlu0.b32.cont [10/16] 0.0, 128
      %1707 = vxpose.xlu0.b32.cont [11/16] 0.0, 128
      %1708 = vxpose.xlu0.b32.cont [12/16] 0.0, 128
      %1709 = vxpose.xlu0.b32.cont [13/16] 0.0, 128
      %1710 = vxpose.xlu0.b32.cont [14/16] 0.0, 128
      %1711 = vxpose.xlu0.b32.cont [15/16] 0.0, 128
      %1712 = vxpose.xlu0.b32.end [16/16] 0.0, 128
      %v1713 = vpop.trf.xlu0
      %v1714 = vpop.trf.xlu0
      %v1715 = vpop.trf.xlu0
      %v1716 = vpop.trf.xlu0
      %v1717 = vpop.trf.xlu0
      %v1718 = vpop.trf.xlu0
      %v1719 = vpop.trf.xlu0
      %v1720 = vpop.trf.xlu0
      %v1721 = vpop.trf.xlu0
      %v1722 = vpop.trf.xlu0
      %v1723 = vpop.trf.xlu0
      %v1724 = vpop.trf.xlu0
      %v1725 = vpop.trf.xlu0
      %v1726 = vpop.trf.xlu0
      %v1727 = vpop.trf.xlu0
      %v1728 = vpop.trf.xlu0
      %v1729 = vlaneseq
      %v1730 = vshrl.u32 %v1729, 7
      %v1731 = vsub.s32 0, %v1730
      %v1732 = vrot.slane %v1713, %v1731
      %1734 = vbcast.lane.b32.xlu0 %v1732, 256
      %v1735 = vpop.permute.xlu0 %1734
      %v1736 = vlaneseq
      %v1737 = vshrl.u32 %v1736, 7
      %v1738 = vsub.s32 1, %v1737
      %v1739 = vrot.slane %v1713, %v1738
      %1741 = vbcast.lane.b32.xlu0 %v1739, 256
      %v1742 = vpop.permute.xlu0 %1741
      %v1743 = vlaneseq
      %v1744 = vshrl.u32 %v1743, 7
      %v1745 = vsub.s32 2, %v1744
      %v1746 = vrot.slane %v1713, %v1745
      %1748 = vbcast.lane.b32.xlu0 %v1746, 256
      %v1749 = vpop.permute.xlu0 %1748
      %v1750 = vlaneseq
      %v1751 = vshrl.u32 %v1750, 7
      %v1752 = vsub.s32 3, %v1751
      %v1753 = vrot.slane %v1713, %v1752
      %1755 = vbcast.lane.b32.xlu0 %v1753, 256
      %v1756 = vpop.permute.xlu0 %1755
      %v1757 = vlaneseq
      %v1758 = vshrl.u32 %v1757, 7
      %v1759 = vsub.s32 4, %v1758
      %v1760 = vrot.slane %v1713, %v1759
      %1762 = vbcast.lane.b32.xlu0 %v1760, 256
      %v1763 = vpop.permute.xlu0 %1762
      %v1764 = vlaneseq
      %v1765 = vshrl.u32 %v1764, 7
      %v1766 = vsub.s32 5, %v1765
      %v1767 = vrot.slane %v1713, %v1766
      %1769 = vbcast.lane.b32.xlu0 %v1767, 256
      %v1770 = vpop.permute.xlu0 %1769
      %v1771 = vlaneseq
      %v1772 = vshrl.u32 %v1771, 7
      %v1773 = vsub.s32 6, %v1772
      %v1774 = vrot.slane %v1713, %v1773
      %1776 = vbcast.lane.b32.xlu0 %v1774, 256
      %v1777 = vpop.permute.xlu0 %1776
      %v1778 = vlaneseq
      %v1779 = vshrl.u32 %v1778, 7
      %v1780 = vsub.s32 7, %v1779
      %v1781 = vrot.slane %v1713, %v1780
      %1783 = vbcast.lane.b32.xlu0 %v1781, 256
      %v1784 = vpop.permute.xlu0 %1783
      %v1785 = vsub.f32 %v1136, %v1735
      %v1786 = vsub.f32 %v1137, %v1742
      %v1787 = vsub.f32 %v1138, %v1749
      %v1788 = vsub.f32 %v1139, %v1756
      %v1789 = vsub.f32 %v1140, %v1763
      %v1790 = vsub.f32 %v1141, %v1770
      %v1791 = vsub.f32 %v1142, %v1777
      %v1792 = vsub.f32 %v1143, %v1784
      %v1793 = vmul.f32 %v1785, 1.442695
      %v1794 = vpow.pop %v1793
      %v1795 = vmul.f32 %v1786, 1.442695
      %v1796 = vpow.pop %v1795
      %v1797 = vmul.f32 %v1787, 1.442695
      %v1798 = vpow.pop %v1797
      %v1799 = vmul.f32 %v1788, 1.442695
      %v1800 = vpow.pop %v1799
      %v1801 = vmul.f32 %v1789, 1.442695
      %v1802 = vpow.pop %v1801
      %v1803 = vmul.f32 %v1790, 1.442695
      %v1804 = vpow.pop %v1803
      %v1805 = vmul.f32 %v1791, 1.442695
      %v1806 = vpow.pop %v1805
      %v1807 = vmul.f32 %v1792, 1.442695
      %v1808 = vpow.pop %v1807
      %v1809 = vlaneseq
      %v1810 = vshrl.u32 %v1809, 7
      %v1811 = vsub.s32 0, %v1810
      %v1812 = vrot.slane %v1696, %v1811
      %1814 = vbcast.lane.b32.xlu0 %v1812, 256
      %v1815 = vpop.permute.xlu0 %1814
      %v1816 = vlaneseq
      %v1817 = vshrl.u32 %v1816, 7
      %v1818 = vsub.s32 1, %v1817
      %v1819 = vrot.slane %v1696, %v1818
      %1821 = vbcast.lane.b32.xlu0 %v1819, 256
      %v1822 = vpop.permute.xlu0 %1821
      %v1823 = vlaneseq
      %v1824 = vshrl.u32 %v1823, 7
      %v1825 = vsub.s32 2, %v1824
      %v1826 = vrot.slane %v1696, %v1825
      %1828 = vbcast.lane.b32.xlu0 %v1826, 256
      %v1829 = vpop.permute.xlu0 %1828
      %v1830 = vlaneseq
      %v1831 = vshrl.u32 %v1830, 7
      %v1832 = vsub.s32 3, %v1831
      %v1833 = vrot.slane %v1696, %v1832
      %1835 = vbcast.lane.b32.xlu0 %v1833, 256
      %v1836 = vpop.permute.xlu0 %1835
      %v1837 = vlaneseq
      %v1838 = vshrl.u32 %v1837, 7
      %v1839 = vsub.s32 4, %v1838
      %v1840 = vrot.slane %v1696, %v1839
      %1842 = vbcast.lane.b32.xlu0 %v1840, 256
      %v1843 = vpop.permute.xlu0 %1842
      %v1844 = vlaneseq
      %v1845 = vshrl.u32 %v1844, 7
      %v1846 = vsub.s32 5, %v1845
      %v1847 = vrot.slane %v1696, %v1846
      %1849 = vbcast.lane.b32.xlu0 %v1847, 256
      %v1850 = vpop.permute.xlu0 %1849
      %v1851 = vlaneseq
      %v1852 = vshrl.u32 %v1851, 7
      %v1853 = vsub.s32 6, %v1852
      %v1854 = vrot.slane %v1696, %v1853
      %1856 = vbcast.lane.b32.xlu0 %v1854, 256
      %v1857 = vpop.permute.xlu0 %1856
      %v1858 = vlaneseq
      %v1859 = vshrl.u32 %v1858, 7
      %v1860 = vsub.s32 7, %v1859
      %v1861 = vrot.slane %v1696, %v1860
      %1863 = vbcast.lane.b32.xlu0 %v1861, 256
      %v1864 = vpop.permute.xlu0 %1863
      %v1865 = vsub.f32 %v1185, %v1815
      %v1866 = vsub.f32 %v1231, %v1822
      %v1867 = vsub.f32 %v1277, %v1829
      %v1868 = vsub.f32 %v1323, %v1836
      %v1869 = vsub.f32 %v1369, %v1843
      %v1870 = vsub.f32 %v1415, %v1850
      %v1871 = vsub.f32 %v1461, %v1857
      %v1872 = vsub.f32 %v1507, %v1864
      %v1873 = vmul.f32 %v1865, 1.442695
      %v1874 = vpow.pop %v1873
      %v1875 = vmul.f32 %v1866, 1.442695
      %v1876 = vpow.pop %v1875
      %v1877 = vmul.f32 %v1867, 1.442695
      %v1878 = vpow.pop %v1877
      %v1879 = vmul.f32 %v1868, 1.442695
      %v1880 = vpow.pop %v1879
      %v1881 = vmul.f32 %v1869, 1.442695
      %v1882 = vpow.pop %v1881
      %v1883 = vmul.f32 %v1870, 1.442695
      %v1884 = vpow.pop %v1883
      %v1885 = vmul.f32 %v1871, 1.442695
      %v1886 = vpow.pop %v1885
      %v1887 = vmul.f32 %v1872, 1.442695
      %v1888 = vpow.pop %v1887
      %v1889 = vsel %vm1512, %v1794, 0.0
      %1890 = vadd.xlane.f32.xlu0 %v1889
      %v1891 = vpop.xlane.xlu0 %1890
      %v1892 = vsel %vm1512, %v1796, 0.0
      %1893 = vadd.xlane.f32.xlu0 %v1892
      %v1894 = vpop.xlane.xlu0 %1893
      %v1895 = vsel %vm1512, %v1798, 0.0
      %1896 = vadd.xlane.f32.xlu0 %v1895
      %v1897 = vpop.xlane.xlu0 %1896
      %v1898 = vsel %vm1512, %v1800, 0.0
      %1899 = vadd.xlane.f32.xlu0 %v1898
      %v1900 = vpop.xlane.xlu0 %1899
      %v1901 = vsel %vm1512, %v1802, 0.0
      %1902 = vadd.xlane.f32.xlu0 %v1901
      %v1903 = vpop.xlane.xlu0 %1902
      %v1904 = vsel %vm1512, %v1804, 0.0
      %1905 = vadd.xlane.f32.xlu0 %v1904
      %v1906 = vpop.xlane.xlu0 %1905
      %v1907 = vsel %vm1512, %v1806, 0.0
      %1908 = vadd.xlane.f32.xlu0 %v1907
      %v1909 = vpop.xlane.xlu0 %1908
      %v1910 = vsel %vm1512, %v1808, 0.0
      %1911 = vadd.xlane.f32.xlu0 %v1910
      %v1912 = vpop.xlane.xlu0 %1911
      %v1921 = vlaneseq
      %v1922 = vshrl.u32 %v1921, 7
      %v1923 = vsub.s32 %v1132, %v1922
      %v1924 = vrot.slane %v1891, %v1923
      %v1925 = vlaneseq
      %v1926 = vshrl.u32 %v1925, 7
      %v1927 = vsub.s32 %v1132, %v1926
      %v1928 = vrot.slane %v1894, %v1927
      %v1929 = vlaneseq
      %v1930 = vshrl.u32 %v1929, 7
      %v1931 = vsub.s32 %v1132, %v1930
      %v1932 = vrot.slane %v1897, %v1931
      %v1933 = vlaneseq
      %v1934 = vshrl.u32 %v1933, 7
      %v1935 = vsub.s32 %v1132, %v1934
      %v1936 = vrot.slane %v1900, %v1935
      %v1937 = vlaneseq
      %v1938 = vshrl.u32 %v1937, 7
      %v1939 = vsub.s32 %v1132, %v1938
      %v1940 = vrot.slane %v1903, %v1939
      %v1941 = vlaneseq
      %v1942 = vshrl.u32 %v1941, 7
      %v1943 = vsub.s32 %v1132, %v1942
      %v1944 = vrot.slane %v1906, %v1943
      %v1945 = vlaneseq
      %v1946 = vshrl.u32 %v1945, 7
      %v1947 = vsub.s32 %v1132, %v1946
      %v1948 = vrot.slane %v1909, %v1947
      %v1949 = vlaneseq
      %v1950 = vshrl.u32 %v1949, 7
      %v1951 = vsub.s32 %v1132, %v1950
      %v1952 = vrot.slane %v1912, %v1951
      %v1953 = vsel %vm1577, %v1928, %v1924
      %v1954 = vsel %vm1579, %v1932, %v1953
      %v1955 = vsel %vm1581, %v1936, %v1954
      %v1956 = vsel %vm1583, %v1940, %v1955
      %v1957 = vsel %vm1585, %v1944, %v1956
      %v1958 = vsel %vm1587, %v1948, %v1957
      %v1959 = vsel %vm1589, %v1952, %v1958
      %1961 = vxpose.xlu0.b32.start [1/16] %v1959, 128
      %1962 = vxpose.xlu0.b32.cont [2/16] 0.0, 128
      %1963 = vxpose.xlu0.b32.cont [3/16] 0.0, 128
      %1964 = vxpose.xlu0.b32.cont [4/16] 0.0, 128
      %1965 = vxpose.xlu0.b32.cont [5/16] 0.0, 128
      %1966 = vxpose.xlu0.b32.cont [6/16] 0.0, 128
      %1967 = vxpose.xlu0.b32.cont [7/16] 0.0, 128
      %1968 = vxpose.xlu0.b32.cont [8/16] 0.0, 128
      %1969 = vxpose.xlu0.b32.cont [9/16] 0.0, 128
      %1970 = vxpose.xlu0.b32.cont [10/16] 0.0, 128
      %1971 = vxpose.xlu0.b32.cont [11/16] 0.0, 128
      %1972 = vxpose.xlu0.b32.cont [12/16] 0.0, 128
      %1973 = vxpose.xlu0.b32.cont [13/16] 0.0, 128
      %1974 = vxpose.xlu0.b32.cont [14/16] 0.0, 128
      %1975 = vxpose.xlu0.b32.cont [15/16] 0.0, 128
      %1976 = vxpose.xlu0.b32.end [16/16] 0.0, 128
      %v1977 = vpop.trf.xlu0
      %v1978 = vpop.trf.xlu0
      %v1979 = vpop.trf.xlu0
      %v1980 = vpop.trf.xlu0
      %v1981 = vpop.trf.xlu0
      %v1982 = vpop.trf.xlu0
      %v1983 = vpop.trf.xlu0
      %v1984 = vpop.trf.xlu0
      %v1985 = vpop.trf.xlu0
      %v1986 = vpop.trf.xlu0
      %v1987 = vpop.trf.xlu0
      %v1988 = vpop.trf.xlu0
      %v1989 = vpop.trf.xlu0
      %v1990 = vpop.trf.xlu0
      %v1991 = vpop.trf.xlu0
      %v1992 = vpop.trf.xlu0
      %v1993 = vsel %vm1512, %v1874, 0.0
      %1994 = vadd.xlane.f32.xlu0 %v1993
      %v1995 = vpop.xlane.xlu0 %1994
      %v1996 = vsel %vm1512, %v1876, 0.0
      %1997 = vadd.xlane.f32.xlu0 %v1996
      %v1998 = vpop.xlane.xlu0 %1997
      %v1999 = vsel %vm1512, %v1878, 0.0
      %2000 = vadd.xlane.f32.xlu0 %v1999
      %v2001 = vpop.xlane.xlu0 %2000
      %v2002 = vsel %vm1512, %v1880, 0.0
      %2003 = vadd.xlane.f32.xlu0 %v2002
      %v2004 = vpop.xlane.xlu0 %2003
      %v2005 = vsel %vm1512, %v1882, 0.0
      %2006 = vadd.xlane.f32.xlu0 %v2005
      %v2007 = vpop.xlane.xlu0 %2006
      %v2008 = vsel %vm1512, %v1884, 0.0
      %2009 = vadd.xlane.f32.xlu0 %v2008
      %v2010 = vpop.xlane.xlu0 %2009
      %v2011 = vsel %vm1512, %v1886, 0.0
      %2012 = vadd.xlane.f32.xlu0 %v2011
      %v2013 = vpop.xlane.xlu0 %2012
      %v2014 = vsel %vm1512, %v1888, 0.0
      %2015 = vadd.xlane.f32.xlu0 %v2014
      %v2016 = vpop.xlane.xlu0 %2015
      %v2025 = vlaneseq
      %v2026 = vshrl.u32 %v2025, 7
      %v2027 = vsub.s32 %v1132, %v2026
      %v2028 = vrot.slane %v1995, %v2027
      %v2029 = vlaneseq
      %v2030 = vshrl.u32 %v2029, 7
      %v2031 = vsub.s32 %v1132, %v2030
      %v2032 = vrot.slane %v1998, %v2031
      %v2033 = vlaneseq
      %v2034 = vshrl.u32 %v2033, 7
      %v2035 = vsub.s32 %v1132, %v2034
      %v2036 = vrot.slane %v2001, %v2035
      %v2037 = vlaneseq
      %v2038 = vshrl.u32 %v2037, 7
      %v2039 = vsub.s32 %v1132, %v2038
      %v2040 = vrot.slane %v2004, %v2039
      %v2041 = vlaneseq
      %v2042 = vshrl.u32 %v2041, 7
      %v2043 = vsub.s32 %v1132, %v2042
      %v2044 = vrot.slane %v2007, %v2043
      %v2045 = vlaneseq
      %v2046 = vshrl.u32 %v2045, 7
      %v2047 = vsub.s32 %v1132, %v2046
      %v2048 = vrot.slane %v2010, %v2047
      %v2049 = vlaneseq
      %v2050 = vshrl.u32 %v2049, 7
      %v2051 = vsub.s32 %v1132, %v2050
      %v2052 = vrot.slane %v2013, %v2051
      %v2053 = vlaneseq
      %v2054 = vshrl.u32 %v2053, 7
      %v2055 = vsub.s32 %v1132, %v2054
      %v2056 = vrot.slane %v2016, %v2055
      %v2057 = vsel %vm1577, %v2032, %v2028
      %v2058 = vsel %vm1579, %v2036, %v2057
      %v2059 = vsel %vm1581, %v2040, %v2058
      %v2060 = vsel %vm1583, %v2044, %v2059
      %v2061 = vsel %vm1585, %v2048, %v2060
      %v2062 = vsel %vm1587, %v2052, %v2061
      %v2063 = vsel %vm1589, %v2056, %v2062
      %v2065 = vadd.f32 %v1977, %v2063
      %v2066 = vrcp.pop %v2065
      %2067 = vxpose.xlu0.b32.start [1/16] %v2066, 128
      %2068 = vxpose.xlu0.b32.cont [2/16] 0.0, 128
      %2069 = vxpose.xlu0.b32.cont [3/16] 0.0, 128
      %2070 = vxpose.xlu0.b32.cont [4/16] 0.0, 128
      %2071 = vxpose.xlu0.b32.cont [5/16] 0.0, 128
      %2072 = vxpose.xlu0.b32.cont [6/16] 0.0, 128
      %2073 = vxpose.xlu0.b32.cont [7/16] 0.0, 128
      %2074 = vxpose.xlu0.b32.cont [8/16] 0.0, 128
      %2075 = vxpose.xlu0.b32.cont [9/16] 0.0, 128
      %2076 = vxpose.xlu0.b32.cont [10/16] 0.0, 128
      %2077 = vxpose.xlu0.b32.cont [11/16] 0.0, 128
      %2078 = vxpose.xlu0.b32.cont [12/16] 0.0, 128
      %2079 = vxpose.xlu0.b32.cont [13/16] 0.0, 128
      %2080 = vxpose.xlu0.b32.cont [14/16] 0.0, 128
      %2081 = vxpose.xlu0.b32.cont [15/16] 0.0, 128
      %2082 = vxpose.xlu0.b32.end [16/16] 0.0, 128
      %v2083 = vpop.trf.xlu0
      %v2084 = vpop.trf.xlu0
      %v2085 = vpop.trf.xlu0
      %v2086 = vpop.trf.xlu0
      %v2087 = vpop.trf.xlu0
      %v2088 = vpop.trf.xlu0
      %v2089 = vpop.trf.xlu0
      %v2090 = vpop.trf.xlu0
      %v2091 = vpop.trf.xlu0
      %v2092 = vpop.trf.xlu0
      %v2093 = vpop.trf.xlu0
      %v2094 = vpop.trf.xlu0
      %v2095 = vpop.trf.xlu0
      %v2096 = vpop.trf.xlu0
      %v2097 = vpop.trf.xlu0
      %v2098 = vpop.trf.xlu0
      %v2099 = vlaneseq
      %v2100 = vshrl.u32 %v2099, 7
      %v2101 = vsub.s32 0, %v2100
      %v2102 = vrot.slane %v2083, %v2101
      %2104 = vbcast.lane.b32.xlu0 %v2102, 256
      %v2105 = vpop.permute.xlu0 %2104
      %v2106 = vlaneseq
      %v2107 = vshrl.u32 %v2106, 7
      %v2108 = vsub.s32 1, %v2107
      %v2109 = vrot.slane %v2083, %v2108
      %2111 = vbcast.lane.b32.xlu0 %v2109, 256
      %v2112 = vpop.permute.xlu0 %2111
      %v2113 = vlaneseq
      %v2114 = vshrl.u32 %v2113, 7
      %v2115 = vsub.s32 2, %v2114
      %v2116 = vrot.slane %v2083, %v2115
      %2118 = vbcast.lane.b32.xlu0 %v2116, 256
      %v2119 = vpop.permute.xlu0 %2118
      %v2120 = vlaneseq
      %v2121 = vshrl.u32 %v2120, 7
      %v2122 = vsub.s32 3, %v2121
      %v2123 = vrot.slane %v2083, %v2122
      %2125 = vbcast.lane.b32.xlu0 %v2123, 256
      %v2126 = vpop.permute.xlu0 %2125
      %v2127 = vlaneseq
      %v2128 = vshrl.u32 %v2127, 7
      %v2129 = vsub.s32 4, %v2128
      %v2130 = vrot.slane %v2083, %v2129
      %2132 = vbcast.lane.b32.xlu0 %v2130, 256
      %v2133 = vpop.permute.xlu0 %2132
      %v2134 = vlaneseq
      %v2135 = vshrl.u32 %v2134, 7
      %v2136 = vsub.s32 5, %v2135
      %v2137 = vrot.slane %v2083, %v2136
      %2139 = vbcast.lane.b32.xlu0 %v2137, 256
      %v2140 = vpop.permute.xlu0 %2139
      %v2141 = vlaneseq
      %v2142 = vshrl.u32 %v2141, 7
      %v2143 = vsub.s32 6, %v2142
      %v2144 = vrot.slane %v2083, %v2143
      %2146 = vbcast.lane.b32.xlu0 %v2144, 256
      %v2147 = vpop.permute.xlu0 %2146
      %v2148 = vlaneseq
      %v2149 = vshrl.u32 %v2148, 7
      %v2150 = vsub.s32 7, %v2149
      %v2151 = vrot.slane %v2083, %v2150
      %2153 = vbcast.lane.b32.xlu0 %v2151, 256
      %v2154 = vpop.permute.xlu0 %2153
      %v2155 = vmul.f32 %v1794, %v2105
      %v2156 = vmul.f32 %v1796, %v2112
      %v2157 = vmul.f32 %v1798, %v2119
      %v2158 = vmul.f32 %v1800, %v2126
      %v2159 = vmul.f32 %v1802, %v2133
      %v2160 = vmul.f32 %v1804, %v2140
      %v2161 = vmul.f32 %v1806, %v2147
      %v2162 = vmul.f32 %v1808, %v2154
      %v2163 = vlaneseq
      %v2164 = vshrl.u32 %v2163, 7
      %v2165 = vsub.s32 0, %v2164
      %v2166 = vrot.slane %v2066, %v2165
      %2168 = vbcast.lane.b32.xlu0 %v2166, 256
      %v2169 = vpop.permute.xlu0 %2168
      %v2170 = vlaneseq
      %v2171 = vshrl.u32 %v2170, 7
      %v2172 = vsub.s32 1, %v2171
      %v2173 = vrot.slane %v2066, %v2172
      %2175 = vbcast.lane.b32.xlu0 %v2173, 256
      %v2176 = vpop.permute.xlu0 %2175
      %v2177 = vlaneseq
      %v2178 = vshrl.u32 %v2177, 7
      %v2179 = vsub.s32 2, %v2178
      %v2180 = vrot.slane %v2066, %v2179
      %2182 = vbcast.lane.b32.xlu0 %v2180, 256
      %v2183 = vpop.permute.xlu0 %2182
      %v2184 = vlaneseq
      %v2185 = vshrl.u32 %v2184, 7
      %v2186 = vsub.s32 3, %v2185
      %v2187 = vrot.slane %v2066, %v2186
      %2189 = vbcast.lane.b32.xlu0 %v2187, 256
      %v2190 = vpop.permute.xlu0 %2189
      %v2191 = vlaneseq
      %v2192 = vshrl.u32 %v2191, 7
      %v2193 = vsub.s32 4, %v2192
      %v2194 = vrot.slane %v2066, %v2193
      %2196 = vbcast.lane.b32.xlu0 %v2194, 256
      %v2197 = vpop.permute.xlu0 %2196
      %v2198 = vlaneseq
      %v2199 = vshrl.u32 %v2198, 7
      %v2200 = vsub.s32 5, %v2199
      %v2201 = vrot.slane %v2066, %v2200
      %2203 = vbcast.lane.b32.xlu0 %v2201, 256
      %v2204 = vpop.permute.xlu0 %2203
      %v2205 = vlaneseq
      %v2206 = vshrl.u32 %v2205, 7
      %v2207 = vsub.s32 6, %v2206
      %v2208 = vrot.slane %v2066, %v2207
      %2210 = vbcast.lane.b32.xlu0 %v2208, 256
      %v2211 = vpop.permute.xlu0 %2210
      %v2212 = vlaneseq
      %v2213 = vshrl.u32 %v2212, 7
      %v2214 = vsub.s32 7, %v2213
      %v2215 = vrot.slane %v2066, %v2214
      %2217 = vbcast.lane.b32.xlu0 %v2215, 256
      %v2218 = vpop.permute.xlu0 %2217
      %v2219 = vmul.f32 %v1874, %v2169
      %v2220 = vmul.f32 %v1876, %v2176
      %v2221 = vmul.f32 %v1878, %v2183
      %v2222 = vmul.f32 %v1880, %v2190
      %v2223 = vmul.f32 %v1882, %v2197
      %v2224 = vmul.f32 %v1884, %v2204
      %v2225 = vmul.f32 %v1886, %v2211
      %v2226 = vmul.f32 %v1888, %v2218
      %v2228 = vsel %vm1512, %v2155, 0
      %2230 = vmatprep.subr.mxu0 0.0
      %2231 = vmatpush1.msra.mxu0 %v720
      %2232 = vmatprep.subr.mxu0 0.0
      %2233 = vmatpush1.msra.mxu0 0.0
      %2234 = vmatprep.subr.mxu0 0.0
      %2235 = vmatpush1.msra.mxu0 0.0
      %2236 = vmatprep.subr.mxu0 0.0
      %2237 = vmatpush1.msra.mxu0 0.0
      %2238 = vmatprep.subr.mxu0 0.0
      %2239 = vmatpush1.msra.mxu0 0.0
      %2240 = vmatprep.subr.mxu0 0.0
      %2241 = vmatpush1.msra.mxu0 0.0
      %2242 = vmatprep.subr.mxu0 0.0
      %2243 = vmatpush1.msra.mxu0 0.0
      %2244 = vmatprep.subr.mxu0 0.0
      %2245 = vmatpush1.msra.mxu0 0.0
      %2246 = vmatprep.subr.mxu0 0.0
      %2247 = vmatpush1.msra.mxu0 0.0
      %2248 = vmatprep.subr.mxu0 0.0
      %2249 = vmatpush1.msra.mxu0 0.0
      %2250 = vmatprep.subr.mxu0 0.0
      %2251 = vmatpush1.msra.mxu0 0.0
      %2252 = vmatprep.subr.mxu0 0.0
      %2253 = vmatpush1.msra.mxu0 0.0
      %2254 = vmatprep.subr.mxu0 0.0
      %2255 = vmatpush1.msra.mxu0 0.0
      %2256 = vmatprep.subr.mxu0 0.0
      %2257 = vmatpush1.msra.mxu0 0.0
      %2258 = vmatprep.subr.mxu0 0.0
      %2259 = vmatpush1.msra.mxu0 0.0
      %2260 = vmatprep.subr.mxu0 0.0
      %2261 = vmatpush1.msra.mxu0 0.0
      %2262 = vmatprep.subr.mxu0 0.0
      %2263 = vmatpush1.msra.mxu0 0.0
      %2264 = vmatprep.subr.mxu0 0.0
      %2265 = vmatpush1.msra.mxu0 0.0
      %2266 = vmatprep.subr.mxu0 0.0
      %2267 = vmatpush1.msra.mxu0 0.0
      %2268 = vmatprep.subr.mxu0 0.0
      %2269 = vmatpush1.msra.mxu0 0.0
      %2270 = vmatprep.subr.mxu0 0.0
      %2271 = vmatpush1.msra.mxu0 0.0
      %2272 = vmatprep.subr.mxu0 0.0
      %2273 = vmatpush1.msra.mxu0 0.0
      %2274 = vmatprep.subr.mxu0 0.0
      %2275 = vmatpush1.msra.mxu0 0.0
      %2276 = vmatprep.subr.mxu0 0.0
      %2277 = vmatpush1.msra.mxu0 0.0
      %2278 = vmatprep.subr.mxu0 0.0
      %2279 = vmatpush1.msra.mxu0 0.0
      %2280 = vmatprep.subr.mxu0 0.0
      %2281 = vmatpush1.msra.mxu0 0.0
      %2282 = vmatprep.subr.mxu0 0.0
      %2283 = vmatpush1.msra.mxu0 0.0
      %2284 = vmatprep.subr.mxu0 0.0
      %2285 = vmatpush1.msra.mxu0 0.0
      %2286 = vmatprep.subr.mxu0 0.0
      %2287 = vmatpush1.msra.mxu0 0.0
      %2288 = vmatprep.subr.mxu0 0.0
      %2289 = vmatpush1.msra.mxu0 0.0
      %2290 = vmatprep.subr.mxu0 0.0
      %2291 = vmatpush1.msra.mxu0 0.0
      %2292 = vmatprep.subr.mxu0 0.0
      %2293 = vmatpush1.msra.mxu0 0.0
      %2294 = vmatprep.mubr.f32.mxu0 0.0
      %2295 = vmatmul.mubr.f32.gmra.mrb[0].mxu0 %v2228
      %v2296 = vpop.f32.mrb[0].mxu0
      %v2297 = vadd.f32 0.0, %v2296
      %v2298 = vpop.f32.mrb[0].mxu0
      %2299 = vdwg.mxu0
      %v2301 = vsel %vm1512, %v2156, 0
      %2303 = vmatprep.subr.mxu0 0.0
      %2304 = vmatpush1.msra.mxu0 %v721
      %2305 = vmatprep.subr.mxu0 0.0
      %2306 = vmatpush1.msra.mxu0 0.0
      %2307 = vmatprep.subr.mxu0 0.0
      %2308 = vmatpush1.msra.mxu0 0.0
      %2309 = vmatprep.subr.mxu0 0.0
      %2310 = vmatpush1.msra.mxu0 0.0
      %2311 = vmatprep.subr.mxu0 0.0
      %2312 = vmatpush1.msra.mxu0 0.0
      %2313 = vmatprep.subr.mxu0 0.0
      %2314 = vmatpush1.msra.mxu0 0.0
      %2315 = vmatprep.subr.mxu0 0.0
      %2316 = vmatpush1.msra.mxu0 0.0
      %2317 = vmatprep.subr.mxu0 0.0
      %2318 = vmatpush1.msra.mxu0 0.0
      %2319 = vmatprep.subr.mxu0 0.0
      %2320 = vmatpush1.msra.mxu0 0.0
      %2321 = vmatprep.subr.mxu0 0.0
      %2322 = vmatpush1.msra.mxu0 0.0
      %2323 = vmatprep.subr.mxu0 0.0
      %2324 = vmatpush1.msra.mxu0 0.0
      %2325 = vmatprep.subr.mxu0 0.0
      %2326 = vmatpush1.msra.mxu0 0.0
      %2327 = vmatprep.subr.mxu0 0.0
      %2328 = vmatpush1.msra.mxu0 0.0
      %2329 = vmatprep.subr.mxu0 0.0
      %2330 = vmatpush1.msra.mxu0 0.0
      %2331 = vmatprep.subr.mxu0 0.0
      %2332 = vmatpush1.msra.mxu0 0.0
      %2333 = vmatprep.subr.mxu0 0.0
      %2334 = vmatpush1.msra.mxu0 0.0
      %2335 = vmatprep.subr.mxu0 0.0
      %2336 = vmatpush1.msra.mxu0 0.0
      %2337 = vmatprep.subr.mxu0 0.0
      %2338 = vmatpush1.msra.mxu0 0.0
      %2339 = vmatprep.subr.mxu0 0.0
      %2340 = vmatpush1.msra.mxu0 0.0
      %2341 = vmatprep.subr.mxu0 0.0
      %2342 = vmatpush1.msra.mxu0 0.0
      %2343 = vmatprep.subr.mxu0 0.0
      %2344 = vmatpush1.msra.mxu0 0.0
      %2345 = vmatprep.subr.mxu0 0.0
      %2346 = vmatpush1.msra.mxu0 0.0
      %2347 = vmatprep.subr.mxu0 0.0
      %2348 = vmatpush1.msra.mxu0 0.0
      %2349 = vmatprep.subr.mxu0 0.0
      %2350 = vmatpush1.msra.mxu0 0.0
      %2351 = vmatprep.subr.mxu0 0.0
      %2352 = vmatpush1.msra.mxu0 0.0
      %2353 = vmatprep.subr.mxu0 0.0
      %2354 = vmatpush1.msra.mxu0 0.0
      %2355 = vmatprep.subr.mxu0 0.0
      %2356 = vmatpush1.msra.mxu0 0.0
      %2357 = vmatprep.subr.mxu0 0.0
      %2358 = vmatpush1.msra.mxu0 0.0
      %2359 = vmatprep.subr.mxu0 0.0
      %2360 = vmatpush1.msra.mxu0 0.0
      %2361 = vmatprep.subr.mxu0 0.0
      %2362 = vmatpush1.msra.mxu0 0.0
      %2363 = vmatprep.subr.mxu0 0.0
      %2364 = vmatpush1.msra.mxu0 0.0
      %2365 = vmatprep.subr.mxu0 0.0
      %2366 = vmatpush1.msra.mxu0 0.0
      %2367 = vmatprep.mubr.f32.mxu0 0.0
      %2368 = vmatmul.mubr.f32.gmra.mrb[0].mxu0 %v2301
      %v2369 = vpop.f32.mrb[0].mxu0
      %v2370 = vadd.f32 0.0, %v2369
      %v2371 = vpop.f32.mrb[0].mxu0
      %2372 = vdwg.mxu0
      %v2374 = vsel %vm1512, %v2157, 0
      %2376 = vmatprep.subr.mxu0 0.0
      %2377 = vmatpush1.msra.mxu0 %v722
      %2378 = vmatprep.subr.mxu0 0.0
      %2379 = vmatpush1.msra.mxu0 0.0
      %2380 = vmatprep.subr.mxu0 0.0
      %2381 = vmatpush1.msra.mxu0 0.0
      %2382 = vmatprep.subr.mxu0 0.0
      %2383 = vmatpush1.msra.mxu0 0.0
      %2384 = vmatprep.subr.mxu0 0.0
      %2385 = vmatpush1.msra.mxu0 0.0
      %2386 = vmatprep.subr.mxu0 0.0
      %2387 = vmatpush1.msra.mxu0 0.0
      %2388 = vmatprep.subr.mxu0 0.0
      %2389 = vmatpush1.msra.mxu0 0.0
      %2390 = vmatprep.subr.mxu0 0.0
      %2391 = vmatpush1.msra.mxu0 0.0
      %2392 = vmatprep.subr.mxu0 0.0
      %2393 = vmatpush1.msra.mxu0 0.0
      %2394 = vmatprep.subr.mxu0 0.0
      %2395 = vmatpush1.msra.mxu0 0.0
      %2396 = vmatprep.subr.mxu0 0.0
      %2397 = vmatpush1.msra.mxu0 0.0
      %2398 = vmatprep.subr.mxu0 0.0
      %2399 = vmatpush1.msra.mxu0 0.0
      %2400 = vmatprep.subr.mxu0 0.0
      %2401 = vmatpush1.msra.mxu0 0.0
      %2402 = vmatprep.subr.mxu0 0.0
      %2403 = vmatpush1.msra.mxu0 0.0
      %2404 = vmatprep.subr.mxu0 0.0
      %2405 = vmatpush1.msra.mxu0 0.0
      %2406 = vmatprep.subr.mxu0 0.0
      %2407 = vmatpush1.msra.mxu0 0.0
      %2408 = vmatprep.subr.mxu0 0.0
      %2409 = vmatpush1.msra.mxu0 0.0
      %2410 = vmatprep.subr.mxu0 0.0
      %2411 = vmatpush1.msra.mxu0 0.0
      %2412 = vmatprep.subr.mxu0 0.0
      %2413 = vmatpush1.msra.mxu0 0.0
      %2414 = vmatprep.subr.mxu0 0.0
      %2415 = vmatpush1.msra.mxu0 0.0
      %2416 = vmatprep.subr.mxu0 0.0
      %2417 = vmatpush1.msra.mxu0 0.0
      %2418 = vmatprep.subr.mxu0 0.0
      %2419 = vmatpush1.msra.mxu0 0.0
      %2420 = vmatprep.subr.mxu0 0.0
      %2421 = vmatpush1.msra.mxu0 0.0
      %2422 = vmatprep.subr.mxu0 0.0
      %2423 = vmatpush1.msra.mxu0 0.0
      %2424 = vmatprep.subr.mxu0 0.0
      %2425 = vmatpush1.msra.mxu0 0.0
      %2426 = vmatprep.subr.mxu0 0.0
      %2427 = vmatpush1.msra.mxu0 0.0
      %2428 = vmatprep.subr.mxu0 0.0
      %2429 = vmatpush1.msra.mxu0 0.0
      %2430 = vmatprep.subr.mxu0 0.0
      %2431 = vmatpush1.msra.mxu0 0.0
      %2432 = vmatprep.subr.mxu0 0.0
      %2433 = vmatpush1.msra.mxu0 0.0
      %2434 = vmatprep.subr.mxu0 0.0
      %2435 = vmatpush1.msra.mxu0 0.0
      %2436 = vmatprep.subr.mxu0 0.0
      %2437 = vmatpush1.msra.mxu0 0.0
      %2438 = vmatprep.subr.mxu0 0.0
      %2439 = vmatpush1.msra.mxu0 0.0
      %2440 = vmatprep.mubr.f32.mxu0 0.0
      %2441 = vmatmul.mubr.f32.gmra.mrb[0].mxu0 %v2374
      %v2442 = vpop.f32.mrb[0].mxu0
      %v2443 = vadd.f32 0.0, %v2442
      %v2444 = vpop.f32.mrb[0].mxu0
      %2445 = vdwg.mxu0
      %v2447 = vsel %vm1512, %v2158, 0
      %2449 = vmatprep.subr.mxu0 0.0
      %2450 = vmatpush1.msra.mxu0 %v723
      %2451 = vmatprep.subr.mxu0 0.0
      %2452 = vmatpush1.msra.mxu0 0.0
      %2453 = vmatprep.subr.mxu0 0.0
      %2454 = vmatpush1.msra.mxu0 0.0
      %2455 = vmatprep.subr.mxu0 0.0
      %2456 = vmatpush1.msra.mxu0 0.0
      %2457 = vmatprep.subr.mxu0 0.0
      %2458 = vmatpush1.msra.mxu0 0.0
      %2459 = vmatprep.subr.mxu0 0.0
      %2460 = vmatpush1.msra.mxu0 0.0
      %2461 = vmatprep.subr.mxu0 0.0
      %2462 = vmatpush1.msra.mxu0 0.0
      %2463 = vmatprep.subr.mxu0 0.0
      %2464 = vmatpush1.msra.mxu0 0.0
      %2465 = vmatprep.subr.mxu0 0.0
      %2466 = vmatpush1.msra.mxu0 0.0
      %2467 = vmatprep.subr.mxu0 0.0
      %2468 = vmatpush1.msra.mxu0 0.0
      %2469 = vmatprep.subr.mxu0 0.0
      %2470 = vmatpush1.msra.mxu0 0.0
      %2471 = vmatprep.subr.mxu0 0.0
      %2472 = vmatpush1.msra.mxu0 0.0
      %2473 = vmatprep.subr.mxu0 0.0
      %2474 = vmatpush1.msra.mxu0 0.0
      %2475 = vmatprep.subr.mxu0 0.0
      %2476 = vmatpush1.msra.mxu0 0.0
      %2477 = vmatprep.subr.mxu0 0.0
      %2478 = vmatpush1.msra.mxu0 0.0
      %2479 = vmatprep.subr.mxu0 0.0
      %2480 = vmatpush1.msra.mxu0 0.0
      %2481 = vmatprep.subr.mxu0 0.0
      %2482 = vmatpush1.msra.mxu0 0.0
      %2483 = vmatprep.subr.mxu0 0.0
      %2484 = vmatpush1.msra.mxu0 0.0
      %2485 = vmatprep.subr.mxu0 0.0
      %2486 = vmatpush1.msra.mxu0 0.0
      %2487 = vmatprep.subr.mxu0 0.0
      %2488 = vmatpush1.msra.mxu0 0.0
      %2489 = vmatprep.subr.mxu0 0.0
      %2490 = vmatpush1.msra.mxu0 0.0
      %2491 = vmatprep.subr.mxu0 0.0
      %2492 = vmatpush1.msra.mxu0 0.0
      %2493 = vmatprep.subr.mxu0 0.0
      %2494 = vmatpush1.msra.mxu0 0.0
      %2495 = vmatprep.subr.mxu0 0.0
      %2496 = vmatpush1.msra.mxu0 0.0
      %2497 = vmatprep.subr.mxu0 0.0
      %2498 = vmatpush1.msra.mxu0 0.0
      %2499 = vmatprep.subr.mxu0 0.0
      %2500 = vmatpush1.msra.mxu0 0.0
      %2501 = vmatprep.subr.mxu0 0.0
      %2502 = vmatpush1.msra.mxu0 0.0
      %2503 = vmatprep.subr.mxu0 0.0
      %2504 = vmatpush1.msra.mxu0 0.0
      %2505 = vmatprep.subr.mxu0 0.0
      %2506 = vmatpush1.msra.mxu0 0.0
      %2507 = vmatprep.subr.mxu0 0.0
      %2508 = vmatpush1.msra.mxu0 0.0
      %2509 = vmatprep.subr.mxu0 0.0
      %2510 = vmatpush1.msra.mxu0 0.0
      %2511 = vmatprep.subr.mxu0 0.0
      %2512 = vmatpush1.msra.mxu0 0.0
      %2513 = vmatprep.mubr.f32.mxu0 0.0
      %2514 = vmatmul.mubr.f32.gmra.mrb[0].mxu0 %v2447
      %v2515 = vpop.f32.mrb[0].mxu0
      %v2516 = vadd.f32 0.0, %v2515
      %v2517 = vpop.f32.mrb[0].mxu0
      %2518 = vdwg.mxu0
      %v2520 = vsel %vm1512, %v2159, 0
      %2522 = vmatprep.subr.mxu0 0.0
      %2523 = vmatpush1.msra.mxu0 %v724
      %2524 = vmatprep.subr.mxu0 0.0
      %2525 = vmatpush1.msra.mxu0 0.0
      %2526 = vmatprep.subr.mxu0 0.0
      %2527 = vmatpush1.msra.mxu0 0.0
      %2528 = vmatprep.subr.mxu0 0.0
      %2529 = vmatpush1.msra.mxu0 0.0
      %2530 = vmatprep.subr.mxu0 0.0
      %2531 = vmatpush1.msra.mxu0 0.0
      %2532 = vmatprep.subr.mxu0 0.0
      %2533 = vmatpush1.msra.mxu0 0.0
      %2534 = vmatprep.subr.mxu0 0.0
      %2535 = vmatpush1.msra.mxu0 0.0
      %2536 = vmatprep.subr.mxu0 0.0
      %2537 = vmatpush1.msra.mxu0 0.0
      %2538 = vmatprep.subr.mxu0 0.0
      %2539 = vmatpush1.msra.mxu0 0.0
      %2540 = vmatprep.subr.mxu0 0.0
      %2541 = vmatpush1.msra.mxu0 0.0
      %2542 = vmatprep.subr.mxu0 0.0
      %2543 = vmatpush1.msra.mxu0 0.0
      %2544 = vmatprep.subr.mxu0 0.0
      %2545 = vmatpush1.msra.mxu0 0.0
      %2546 = vmatprep.subr.mxu0 0.0
      %2547 = vmatpush1.msra.mxu0 0.0
      %2548 = vmatprep.subr.mxu0 0.0
      %2549 = vmatpush1.msra.mxu0 0.0
      %2550 = vmatprep.subr.mxu0 0.0
      %2551 = vmatpush1.msra.mxu0 0.0
      %2552 = vmatprep.subr.mxu0 0.0
      %2553 = vmatpush1.msra.mxu0 0.0
      %2554 = vmatprep.subr.mxu0 0.0
      %2555 = vmatpush1.msra.mxu0 0.0
      %2556 = vmatprep.subr.mxu0 0.0
      %2557 = vmatpush1.msra.mxu0 0.0
      %2558 = vmatprep.subr.mxu0 0.0
      %2559 = vmatpush1.msra.mxu0 0.0
      %2560 = vmatprep.subr.mxu0 0.0
      %2561 = vmatpush1.msra.mxu0 0.0
      %2562 = vmatprep.subr.mxu0 0.0
      %2563 = vmatpush1.msra.mxu0 0.0
      %2564 = vmatprep.subr.mxu0 0.0
      %2565 = vmatpush1.msra.mxu0 0.0
      %2566 = vmatprep.subr.mxu0 0.0
      %2567 = vmatpush1.msra.mxu0 0.0
      %2568 = vmatprep.subr.mxu0 0.0
      %2569 = vmatpush1.msra.mxu0 0.0
      %2570 = vmatprep.subr.mxu0 0.0
      %2571 = vmatpush1.msra.mxu0 0.0
      %2572 = vmatprep.subr.mxu0 0.0
      %2573 = vmatpush1.msra.mxu0 0.0
      %2574 = vmatprep.subr.mxu0 0.0
      %2575 = vmatpush1.msra.mxu0 0.0
      %2576 = vmatprep.subr.mxu0 0.0
      %2577 = vmatpush1.msra.mxu0 0.0
      %2578 = vmatprep.subr.mxu0 0.0
      %2579 = vmatpush1.msra.mxu0 0.0
      %2580 = vmatprep.subr.mxu0 0.0
      %2581 = vmatpush1.msra.mxu0 0.0
      %2582 = vmatprep.subr.mxu0 0.0
      %2583 = vmatpush1.msra.mxu0 0.0
      %2584 = vmatprep.subr.mxu0 0.0
      %2585 = vmatpush1.msra.mxu0 0.0
      %2586 = vmatprep.mubr.f32.mxu0 0.0
      %2587 = vmatmul.mubr.f32.gmra.mrb[0].mxu0 %v2520
      %v2588 = vpop.f32.mrb[0].mxu0
      %v2589 = vadd.f32 0.0, %v2588
      %v2590 = vpop.f32.mrb[0].mxu0
      %2591 = vdwg.mxu0
      %v2593 = vsel %vm1512, %v2160, 0
      %2595 = vmatprep.subr.mxu0 0.0
      %2596 = vmatpush1.msra.mxu0 %v725
      %2597 = vmatprep.subr.mxu0 0.0
      %2598 = vmatpush1.msra.mxu0 0.0
      %2599 = vmatprep.subr.mxu0 0.0
      %2600 = vmatpush1.msra.mxu0 0.0
      %2601 = vmatprep.subr.mxu0 0.0
      %2602 = vmatpush1.msra.mxu0 0.0
      %2603 = vmatprep.subr.mxu0 0.0
      %2604 = vmatpush1.msra.mxu0 0.0
      %2605 = vmatprep.subr.mxu0 0.0
      %2606 = vmatpush1.msra.mxu0 0.0
      %2607 = vmatprep.subr.mxu0 0.0
      %2608 = vmatpush1.msra.mxu0 0.0
      %2609 = vmatprep.subr.mxu0 0.0
      %2610 = vmatpush1.msra.mxu0 0.0
      %2611 = vmatprep.subr.mxu0 0.0
      %2612 = vmatpush1.msra.mxu0 0.0
      %2613 = vmatprep.subr.mxu0 0.0
      %2614 = vmatpush1.msra.mxu0 0.0
      %2615 = vmatprep.subr.mxu0 0.0
      %2616 = vmatpush1.msra.mxu0 0.0
      %2617 = vmatprep.subr.mxu0 0.0
      %2618 = vmatpush1.msra.mxu0 0.0
      %2619 = vmatprep.subr.mxu0 0.0
      %2620 = vmatpush1.msra.mxu0 0.0
      %2621 = vmatprep.subr.mxu0 0.0
      %2622 = vmatpush1.msra.mxu0 0.0
      %2623 = vmatprep.subr.mxu0 0.0
      %2624 = vmatpush1.msra.mxu0 0.0
      %2625 = vmatprep.subr.mxu0 0.0
      %2626 = vmatpush1.msra.mxu0 0.0
      %2627 = vmatprep.subr.mxu0 0.0
      %2628 = vmatpush1.msra.mxu0 0.0
      %2629 = vmatprep.subr.mxu0 0.0
      %2630 = vmatpush1.msra.mxu0 0.0
      %2631 = vmatprep.subr.mxu0 0.0
      %2632 = vmatpush1.msra.mxu0 0.0
      %2633 = vmatprep.subr.mxu0 0.0
      %2634 = vmatpush1.msra.mxu0 0.0
      %2635 = vmatprep.subr.mxu0 0.0
      %2636 = vmatpush1.msra.mxu0 0.0
      %2637 = vmatprep.subr.mxu0 0.0
      %2638 = vmatpush1.msra.mxu0 0.0
      %2639 = vmatprep.subr.mxu0 0.0
      %2640 = vmatpush1.msra.mxu0 0.0
      %2641 = vmatprep.subr.mxu0 0.0
      %2642 = vmatpush1.msra.mxu0 0.0
      %2643 = vmatprep.subr.mxu0 0.0
      %2644 = vmatpush1.msra.mxu0 0.0
      %2645 = vmatprep.subr.mxu0 0.0
      %2646 = vmatpush1.msra.mxu0 0.0
      %2647 = vmatprep.subr.mxu0 0.0
      %2648 = vmatpush1.msra.mxu0 0.0
      %2649 = vmatprep.subr.mxu0 0.0
      %2650 = vmatpush1.msra.mxu0 0.0
      %2651 = vmatprep.subr.mxu0 0.0
      %2652 = vmatpush1.msra.mxu0 0.0
      %2653 = vmatprep.subr.mxu0 0.0
      %2654 = vmatpush1.msra.mxu0 0.0
      %2655 = vmatprep.subr.mxu0 0.0
      %2656 = vmatpush1.msra.mxu0 0.0
      %2657 = vmatprep.subr.mxu0 0.0
      %2658 = vmatpush1.msra.mxu0 0.0
      %2659 = vmatprep.mubr.f32.mxu0 0.0
      %2660 = vmatmul.mubr.f32.gmra.mrb[0].mxu0 %v2593
      %v2661 = vpop.f32.mrb[0].mxu0
      %v2662 = vadd.f32 0.0, %v2661
      %v2663 = vpop.f32.mrb[0].mxu0
      %2664 = vdwg.mxu0
      %v2666 = vsel %vm1512, %v2161, 0
      %2668 = vmatprep.subr.mxu0 0.0
      %2669 = vmatpush1.msra.mxu0 %v726
      %2670 = vmatprep.subr.mxu0 0.0
      %2671 = vmatpush1.msra.mxu0 0.0
      %2672 = vmatprep.subr.mxu0 0.0
      %2673 = vmatpush1.msra.mxu0 0.0
      %2674 = vmatprep.subr.mxu0 0.0
      %2675 = vmatpush1.msra.mxu0 0.0
      %2676 = vmatprep.subr.mxu0 0.0
      %2677 = vmatpush1.msra.mxu0 0.0
      %2678 = vmatprep.subr.mxu0 0.0
      %2679 = vmatpush1.msra.mxu0 0.0
      %2680 = vmatprep.subr.mxu0 0.0
      %2681 = vmatpush1.msra.mxu0 0.0
      %2682 = vmatprep.subr.mxu0 0.0
      %2683 = vmatpush1.msra.mxu0 0.0
      %2684 = vmatprep.subr.mxu0 0.0
      %2685 = vmatpush1.msra.mxu0 0.0
      %2686 = vmatprep.subr.mxu0 0.0
      %2687 = vmatpush1.msra.mxu0 0.0
      %2688 = vmatprep.subr.mxu0 0.0
      %2689 = vmatpush1.msra.mxu0 0.0
      %2690 = vmatprep.subr.mxu0 0.0
      %2691 = vmatpush1.msra.mxu0 0.0
      %2692 = vmatprep.subr.mxu0 0.0
      %2693 = vmatpush1.msra.mxu0 0.0
      %2694 = vmatprep.subr.mxu0 0.0
      %2695 = vmatpush1.msra.mxu0 0.0
      %2696 = vmatprep.subr.mxu0 0.0
      %2697 = vmatpush1.msra.mxu0 0.0
      %2698 = vmatprep.subr.mxu0 0.0
      %2699 = vmatpush1.msra.mxu0 0.0
      %2700 = vmatprep.subr.mxu0 0.0
      %2701 = vmatpush1.msra.mxu0 0.0
      %2702 = vmatprep.subr.mxu0 0.0
      %2703 = vmatpush1.msra.mxu0 0.0
      %2704 = vmatprep.subr.mxu0 0.0
      %2705 = vmatpush1.msra.mxu0 0.0
      %2706 = vmatprep.subr.mxu0 0.0
      %2707 = vmatpush1.msra.mxu0 0.0
      %2708 = vmatprep.subr.mxu0 0.0
      %2709 = vmatpush1.msra.mxu0 0.0
      %2710 = vmatprep.subr.mxu0 0.0
      %2711 = vmatpush1.msra.mxu0 0.0
      %2712 = vmatprep.subr.mxu0 0.0
      %2713 = vmatpush1.msra.mxu0 0.0
      %2714 = vmatprep.subr.mxu0 0.0
      %2715 = vmatpush1.msra.mxu0 0.0
      %2716 = vmatprep.subr.mxu0 0.0
      %2717 = vmatpush1.msra.mxu0 0.0
      %2718 = vmatprep.subr.mxu0 0.0
      %2719 = vmatpush1.msra.mxu0 0.0
      %2720 = vmatprep.subr.mxu0 0.0
      %2721 = vmatpush1.msra.mxu0 0.0
      %2722 = vmatprep.subr.mxu0 0.0
      %2723 = vmatpush1.msra.mxu0 0.0
      %2724 = vmatprep.subr.mxu0 0.0
      %2725 = vmatpush1.msra.mxu0 0.0
      %2726 = vmatprep.subr.mxu0 0.0
      %2727 = vmatpush1.msra.mxu0 0.0
      %2728 = vmatprep.subr.mxu0 0.0
      %2729 = vmatpush1.msra.mxu0 0.0
      %2730 = vmatprep.subr.mxu0 0.0
      %2731 = vmatpush1.msra.mxu0 0.0
      %2732 = vmatprep.mubr.f32.mxu0 0.0
      %2733 = vmatmul.mubr.f32.gmra.mrb[0].mxu0 %v2666
      %v2734 = vpop.f32.mrb[0].mxu0
      %v2735 = vadd.f32 0.0, %v2734
      %v2736 = vpop.f32.mrb[0].mxu0
      %2737 = vdwg.mxu0
      %v2739 = vsel %vm1512, %v2162, 0
      %2741 = vmatprep.subr.mxu0 0.0
      %2742 = vmatpush1.msra.mxu0 %v727
      %2743 = vmatprep.subr.mxu0 0.0
      %2744 = vmatpush1.msra.mxu0 0.0
      %2745 = vmatprep.subr.mxu0 0.0
      %2746 = vmatpush1.msra.mxu0 0.0
      %2747 = vmatprep.subr.mxu0 0.0
      %2748 = vmatpush1.msra.mxu0 0.0
      %2749 = vmatprep.subr.mxu0 0.0
      %2750 = vmatpush1.msra.mxu0 0.0
      %2751 = vmatprep.subr.mxu0 0.0
      %2752 = vmatpush1.msra.mxu0 0.0
      %2753 = vmatprep.subr.mxu0 0.0
      %2754 = vmatpush1.msra.mxu0 0.0
      %2755 = vmatprep.subr.mxu0 0.0
      %2756 = vmatpush1.msra.mxu0 0.0
      %2757 = vmatprep.subr.mxu0 0.0
      %2758 = vmatpush1.msra.mxu0 0.0
      %2759 = vmatprep.subr.mxu0 0.0
      %2760 = vmatpush1.msra.mxu0 0.0
      %2761 = vmatprep.subr.mxu0 0.0
      %2762 = vmatpush1.msra.mxu0 0.0
      %2763 = vmatprep.subr.mxu0 0.0
      %2764 = vmatpush1.msra.mxu0 0.0
      %2765 = vmatprep.subr.mxu0 0.0
      %2766 = vmatpush1.msra.mxu0 0.0
      %2767 = vmatprep.subr.mxu0 0.0
      %2768 = vmatpush1.msra.mxu0 0.0
      %2769 = vmatprep.subr.mxu0 0.0
      %2770 = vmatpush1.msra.mxu0 0.0
      %2771 = vmatprep.subr.mxu0 0.0
      %2772 = vmatpush1.msra.mxu0 0.0
      %2773 = vmatprep.subr.mxu0 0.0
      %2774 = vmatpush1.msra.mxu0 0.0
      %2775 = vmatprep.subr.mxu0 0.0
      %2776 = vmatpush1.msra.mxu0 0.0
      %2777 = vmatprep.subr.mxu0 0.0
      %2778 = vmatpush1.msra.mxu0 0.0
      %2779 = vmatprep.subr.mxu0 0.0
      %2780 = vmatpush1.msra.mxu0 0.0
      %2781 = vmatprep.subr.mxu0 0.0
      %2782 = vmatpush1.msra.mxu0 0.0
      %2783 = vmatprep.subr.mxu0 0.0
      %2784 = vmatpush1.msra.mxu0 0.0
      %2785 = vmatprep.subr.mxu0 0.0
      %2786 = vmatpush1.msra.mxu0 0.0
      %2787 = vmatprep.subr.mxu0 0.0
      %2788 = vmatpush1.msra.mxu0 0.0
      %2789 = vmatprep.subr.mxu0 0.0
      %2790 = vmatpush1.msra.mxu0 0.0
      %2791 = vmatprep.subr.mxu0 0.0
      %2792 = vmatpush1.msra.mxu0 0.0
      %2793 = vmatprep.subr.mxu0 0.0
      %2794 = vmatpush1.msra.mxu0 0.0
      %2795 = vmatprep.subr.mxu0 0.0
      %2796 = vmatpush1.msra.mxu0 0.0
      %2797 = vmatprep.subr.mxu0 0.0
      %2798 = vmatpush1.msra.mxu0 0.0
      %2799 = vmatprep.subr.mxu0 0.0
      %2800 = vmatpush1.msra.mxu0 0.0
      %2801 = vmatprep.subr.mxu0 0.0
      %2802 = vmatpush1.msra.mxu0 0.0
      %2803 = vmatprep.subr.mxu0 0.0
      %2804 = vmatpush1.msra.mxu0 0.0
      %2805 = vmatprep.mubr.f32.mxu0 0.0
      %2806 = vmatmul.mubr.f32.gmra.mrb[0].mxu0 %v2739
      %v2807 = vpop.f32.mrb[0].mxu0
      %v2808 = vadd.f32 0.0, %v2807
      %v2809 = vpop.f32.mrb[0].mxu0
      %2810 = vdwg.mxu0
      %v2812 = vsel %vm1512, %v2219, 0
      %2814 = vmatprep.subr.mxu0 0.0
      %2815 = vmatpush1.msra.mxu0 %v304
      %2816 = vmatprep.subr.mxu0 0.0
      %2817 = vmatpush1.msra.mxu0 0.0
      %2818 = vmatprep.subr.mxu0 0.0
      %2819 = vmatpush1.msra.mxu0 0.0
      %2820 = vmatprep.subr.mxu0 0.0
      %2821 = vmatpush1.msra.mxu0 0.0
      %2822 = vmatprep.subr.mxu0 0.0
      %2823 = vmatpush1.msra.mxu0 0.0
      %2824 = vmatprep.subr.mxu0 0.0
      %2825 = vmatpush1.msra.mxu0 0.0
      %2826 = vmatprep.subr.mxu0 0.0
      %2827 = vmatpush1.msra.mxu0 0.0
      %2828 = vmatprep.subr.mxu0 0.0
      %2829 = vmatpush1.msra.mxu0 0.0
      %2830 = vmatprep.subr.mxu0 0.0
      %2831 = vmatpush1.msra.mxu0 0.0
      %2832 = vmatprep.subr.mxu0 0.0
      %2833 = vmatpush1.msra.mxu0 0.0
      %2834 = vmatprep.subr.mxu0 0.0
      %2835 = vmatpush1.msra.mxu0 0.0
      %2836 = vmatprep.subr.mxu0 0.0
      %2837 = vmatpush1.msra.mxu0 0.0
      %2838 = vmatprep.subr.mxu0 0.0
      %2839 = vmatpush1.msra.mxu0 0.0
      %2840 = vmatprep.subr.mxu0 0.0
      %2841 = vmatpush1.msra.mxu0 0.0
      %2842 = vmatprep.subr.mxu0 0.0
      %2843 = vmatpush1.msra.mxu0 0.0
      %2844 = vmatprep.subr.mxu0 0.0
      %2845 = vmatpush1.msra.mxu0 0.0
      %2846 = vmatprep.subr.mxu0 0.0
      %2847 = vmatpush1.msra.mxu0 0.0
      %2848 = vmatprep.subr.mxu0 0.0
      %2849 = vmatpush1.msra.mxu0 0.0
      %2850 = vmatprep.subr.mxu0 0.0
      %2851 = vmatpush1.msra.mxu0 0.0
      %2852 = vmatprep.subr.mxu0 0.0
      %2853 = vmatpush1.msra.mxu0 0.0
      %2854 = vmatprep.subr.mxu0 0.0
      %2855 = vmatpush1.msra.mxu0 0.0
      %2856 = vmatprep.subr.mxu0 0.0
      %2857 = vmatpush1.msra.mxu0 0.0
      %2858 = vmatprep.subr.mxu0 0.0
      %2859 = vmatpush1.msra.mxu0 0.0
      %2860 = vmatprep.subr.mxu0 0.0
      %2861 = vmatpush1.msra.mxu0 0.0
      %2862 = vmatprep.subr.mxu0 0.0
      %2863 = vmatpush1.msra.mxu0 0.0
      %2864 = vmatprep.subr.mxu0 0.0
      %2865 = vmatpush1.msra.mxu0 0.0
      %2866 = vmatprep.subr.mxu0 0.0
      %2867 = vmatpush1.msra.mxu0 0.0
      %2868 = vmatprep.subr.mxu0 0.0
      %2869 = vmatpush1.msra.mxu0 0.0
      %2870 = vmatprep.subr.mxu0 0.0
      %2871 = vmatpush1.msra.mxu0 0.0
      %2872 = vmatprep.subr.mxu0 0.0
      %2873 = vmatpush1.msra.mxu0 0.0
      %2874 = vmatprep.subr.mxu0 0.0
      %2875 = vmatpush1.msra.mxu0 0.0
      %2876 = vmatprep.subr.mxu0 0.0
      %2877 = vmatpush1.msra.mxu0 0.0
      %2878 = vmatprep.mubr.f32.mxu0 0.0
      %2879 = vmatmul.mubr.f32.gmra.mrb[0].mxu0 %v2812
      %v2880 = vpop.f32.mrb[0].mxu0
      %v2881 = vadd.f32 0.0, %v2880
      %v2882 = vpop.f32.mrb[0].mxu0
      %2883 = vdwg.mxu0
      %v2885 = vsel %vm1512, %v2220, 0
      %2887 = vmatprep.subr.mxu0 0.0
      %2888 = vmatpush1.msra.mxu0 %v305
      %2889 = vmatprep.subr.mxu0 0.0
      %2890 = vmatpush1.msra.mxu0 0.0
      %2891 = vmatprep.subr.mxu0 0.0
      %2892 = vmatpush1.msra.mxu0 0.0
      %2893 = vmatprep.subr.mxu0 0.0
      %2894 = vmatpush1.msra.mxu0 0.0
      %2895 = vmatprep.subr.mxu0 0.0
      %2896 = vmatpush1.msra.mxu0 0.0
      %2897 = vmatprep.subr.mxu0 0.0
      %2898 = vmatpush1.msra.mxu0 0.0
      %2899 = vmatprep.subr.mxu0 0.0
      %2900 = vmatpush1.msra.mxu0 0.0
      %2901 = vmatprep.subr.mxu0 0.0
      %2902 = vmatpush1.msra.mxu0 0.0
      %2903 = vmatprep.subr.mxu0 0.0
      %2904 = vmatpush1.msra.mxu0 0.0
      %2905 = vmatprep.subr.mxu0 0.0
      %2906 = vmatpush1.msra.mxu0 0.0
      %2907 = vmatprep.subr.mxu0 0.0
      %2908 = vmatpush1.msra.mxu0 0.0
      %2909 = vmatprep.subr.mxu0 0.0
      %2910 = vmatpush1.msra.mxu0 0.0
      %2911 = vmatprep.subr.mxu0 0.0
      %2912 = vmatpush1.msra.mxu0 0.0
      %2913 = vmatprep.subr.mxu0 0.0
      %2914 = vmatpush1.msra.mxu0 0.0
      %2915 = vmatprep.subr.mxu0 0.0
      %2916 = vmatpush1.msra.mxu0 0.0
      %2917 = vmatprep.subr.mxu0 0.0
      %2918 = vmatpush1.msra.mxu0 0.0
      %2919 = vmatprep.subr.mxu0 0.0
      %2920 = vmatpush1.msra.mxu0 0.0
      %2921 = vmatprep.subr.mxu0 0.0
      %2922 = vmatpush1.msra.mxu0 0.0
      %2923 = vmatprep.subr.mxu0 0.0
      %2924 = vmatpush1.msra.mxu0 0.0
      %2925 = vmatprep.subr.mxu0 0.0
      %2926 = vmatpush1.msra.mxu0 0.0
      %2927 = vmatprep.subr.mxu0 0.0
      %2928 = vmatpush1.msra.mxu0 0.0
      %2929 = vmatprep.subr.mxu0 0.0
      %2930 = vmatpush1.msra.mxu0 0.0
      %2931 = vmatprep.subr.mxu0 0.0
      %2932 = vmatpush1.msra.mxu0 0.0
      %2933 = vmatprep.subr.mxu0 0.0
      %2934 = vmatpush1.msra.mxu0 0.0
      %2935 = vmatprep.subr.mxu0 0.0
      %2936 = vmatpush1.msra.mxu0 0.0
      %2937 = vmatprep.subr.mxu0 0.0
      %2938 = vmatpush1.msra.mxu0 0.0
      %2939 = vmatprep.subr.mxu0 0.0
      %2940 = vmatpush1.msra.mxu0 0.0
      %2941 = vmatprep.subr.mxu0 0.0
      %2942 = vmatpush1.msra.mxu0 0.0
      %2943 = vmatprep.subr.mxu0 0.0
      %2944 = vmatpush1.msra.mxu0 0.0
      %2945 = vmatprep.subr.mxu0 0.0
      %2946 = vmatpush1.msra.mxu0 0.0
      %2947 = vmatprep.subr.mxu0 0.0
      %2948 = vmatpush1.msra.mxu0 0.0
      %2949 = vmatprep.subr.mxu0 0.0
      %2950 = vmatpush1.msra.mxu0 0.0
      %2951 = vmatprep.mubr.f32.mxu0 0.0
      %2952 = vmatmul.mubr.f32.gmra.mrb[0].mxu0 %v2885
      %v2953 = vpop.f32.mrb[0].mxu0
      %v2954 = vadd.f32 0.0, %v2953
      %v2955 = vpop.f32.mrb[0].mxu0
      %2956 = vdwg.mxu0
      %v2958 = vsel %vm1512, %v2221, 0
      %2960 = vmatprep.subr.mxu0 0.0
      %2961 = vmatpush1.msra.mxu0 %v306
      %2962 = vmatprep.subr.mxu0 0.0
      %2963 = vmatpush1.msra.mxu0 0.0
      %2964 = vmatprep.subr.mxu0 0.0
      %2965 = vmatpush1.msra.mxu0 0.0
      %2966 = vmatprep.subr.mxu0 0.0
      %2967 = vmatpush1.msra.mxu0 0.0
      %2968 = vmatprep.subr.mxu0 0.0
      %2969 = vmatpush1.msra.mxu0 0.0
      %2970 = vmatprep.subr.mxu0 0.0
      %2971 = vmatpush1.msra.mxu0 0.0
      %2972 = vmatprep.subr.mxu0 0.0
      %2973 = vmatpush1.msra.mxu0 0.0
      %2974 = vmatprep.subr.mxu0 0.0
      %2975 = vmatpush1.msra.mxu0 0.0
      %2976 = vmatprep.subr.mxu0 0.0
      %2977 = vmatpush1.msra.mxu0 0.0
      %2978 = vmatprep.subr.mxu0 0.0
      %2979 = vmatpush1.msra.mxu0 0.0
      %2980 = vmatprep.subr.mxu0 0.0
      %2981 = vmatpush1.msra.mxu0 0.0
      %2982 = vmatprep.subr.mxu0 0.0
      %2983 = vmatpush1.msra.mxu0 0.0
      %2984 = vmatprep.subr.mxu0 0.0
      %2985 = vmatpush1.msra.mxu0 0.0
      %2986 = vmatprep.subr.mxu0 0.0
      %2987 = vmatpush1.msra.mxu0 0.0
      %2988 = vmatprep.subr.mxu0 0.0
      %2989 = vmatpush1.msra.mxu0 0.0
      %2990 = vmatprep.subr.mxu0 0.0
      %2991 = vmatpush1.msra.mxu0 0.0
      %2992 = vmatprep.subr.mxu0 0.0
      %2993 = vmatpush1.msra.mxu0 0.0
      %2994 = vmatprep.subr.mxu0 0.0
      %2995 = vmatpush1.msra.mxu0 0.0
      %2996 = vmatprep.subr.mxu0 0.0
      %2997 = vmatpush1.msra.mxu0 0.0
      %2998 = vmatprep.subr.mxu0 0.0
      %2999 = vmatpush1.msra.mxu0 0.0
      %3000 = vmatprep.subr.mxu0 0.0
      %3001 = vmatpush1.msra.mxu0 0.0
      %3002 = vmatprep.subr.mxu0 0.0
      %3003 = vmatpush1.msra.mxu0 0.0
      %3004 = vmatprep.subr.mxu0 0.0
      %3005 = vmatpush1.msra.mxu0 0.0
      %3006 = vmatprep.subr.mxu0 0.0
      %3007 = vmatpush1.msra.mxu0 0.0
      %3008 = vmatprep.subr.mxu0 0.0
      %3009 = vmatpush1.msra.mxu0 0.0
      %3010 = vmatprep.subr.mxu0 0.0
      %3011 = vmatpush1.msra.mxu0 0.0
      %3012 = vmatprep.subr.mxu0 0.0
      %3013 = vmatpush1.msra.mxu0 0.0
      %3014 = vmatprep.subr.mxu0 0.0
      %3015 = vmatpush1.msra.mxu0 0.0
      %3016 = vmatprep.subr.mxu0 0.0
      %3017 = vmatpush1.msra.mxu0 0.0
      %3018 = vmatprep.subr.mxu0 0.0
      %3019 = vmatpush1.msra.mxu0 0.0
      %3020 = vmatprep.subr.mxu0 0.0
      %3021 = vmatpush1.msra.mxu0 0.0
      %3022 = vmatprep.subr.mxu0 0.0
      %3023 = vmatpush1.msra.mxu0 0.0
      %3024 = vmatprep.mubr.f32.mxu0 0.0
      %3025 = vmatmul.mubr.f32.gmra.mrb[0].mxu0 %v2958
      %v3026 = vpop.f32.mrb[0].mxu0
      %v3027 = vadd.f32 0.0, %v3026
      %v3028 = vpop.f32.mrb[0].mxu0
      %3029 = vdwg.mxu0
      %v3031 = vsel %vm1512, %v2222, 0
      %3033 = vmatprep.subr.mxu0 0.0
      %3034 = vmatpush1.msra.mxu0 %v307
      %3035 = vmatprep.subr.mxu0 0.0
      %3036 = vmatpush1.msra.mxu0 0.0
      %3037 = vmatprep.subr.mxu0 0.0
      %3038 = vmatpush1.msra.mxu0 0.0
      %3039 = vmatprep.subr.mxu0 0.0
      %3040 = vmatpush1.msra.mxu0 0.0
      %3041 = vmatprep.subr.mxu0 0.0
      %3042 = vmatpush1.msra.mxu0 0.0
      %3043 = vmatprep.subr.mxu0 0.0
      %3044 = vmatpush1.msra.mxu0 0.0
      %3045 = vmatprep.subr.mxu0 0.0
      %3046 = vmatpush1.msra.mxu0 0.0
      %3047 = vmatprep.subr.mxu0 0.0
      %3048 = vmatpush1.msra.mxu0 0.0
      %3049 = vmatprep.subr.mxu0 0.0
      %3050 = vmatpush1.msra.mxu0 0.0
      %3051 = vmatprep.subr.mxu0 0.0
      %3052 = vmatpush1.msra.mxu0 0.0
      %3053 = vmatprep.subr.mxu0 0.0
      %3054 = vmatpush1.msra.mxu0 0.0
      %3055 = vmatprep.subr.mxu0 0.0
      %3056 = vmatpush1.msra.mxu0 0.0
      %3057 = vmatprep.subr.mxu0 0.0
      %3058 = vmatpush1.msra.mxu0 0.0
      %3059 = vmatprep.subr.mxu0 0.0
      %3060 = vmatpush1.msra.mxu0 0.0
      %3061 = vmatprep.subr.mxu0 0.0
      %3062 = vmatpush1.msra.mxu0 0.0
      %3063 = vmatprep.subr.mxu0 0.0
      %3064 = vmatpush1.msra.mxu0 0.0
      %3065 = vmatprep.subr.mxu0 0.0
      %3066 = vmatpush1.msra.mxu0 0.0
      %3067 = vmatprep.subr.mxu0 0.0
      %3068 = vmatpush1.msra.mxu0 0.0
      %3069 = vmatprep.subr.mxu0 0.0
      %3070 = vmatpush1.msra.mxu0 0.0
      %3071 = vmatprep.subr.mxu0 0.0
      %3072 = vmatpush1.msra.mxu0 0.0
      %3073 = vmatprep.subr.mxu0 0.0
      %3074 = vmatpush1.msra.mxu0 0.0
      %3075 = vmatprep.subr.mxu0 0.0
      %3076 = vmatpush1.msra.mxu0 0.0
      %3077 = vmatprep.subr.mxu0 0.0
      %3078 = vmatpush1.msra.mxu0 0.0
      %3079 = vmatprep.subr.mxu0 0.0
      %3080 = vmatpush1.msra.mxu0 0.0
      %3081 = vmatprep.subr.mxu0 0.0
      %3082 = vmatpush1.msra.mxu0 0.0
      %3083 = vmatprep.subr.mxu0 0.0
      %3084 = vmatpush1.msra.mxu0 0.0
      %3085 = vmatprep.subr.mxu0 0.0
      %3086 = vmatpush1.msra.mxu0 0.0
      %3087 = vmatprep.subr.mxu0 0.0
      %3088 = vmatpush1.msra.mxu0 0.0
      %3089 = vmatprep.subr.mxu0 0.0
      %3090 = vmatpush1.msra.mxu0 0.0
      %3091 = vmatprep.subr.mxu0 0.0
      %3092 = vmatpush1.msra.mxu0 0.0
      %3093 = vmatprep.subr.mxu0 0.0
      %3094 = vmatpush1.msra.mxu0 0.0
      %3095 = vmatprep.subr.mxu0 0.0
      %3096 = vmatpush1.msra.mxu0 0.0
      %3097 = vmatprep.mubr.f32.mxu0 0.0
      %3098 = vmatmul.mubr.f32.gmra.mrb[0].mxu0 %v3031
      %v3099 = vpop.f32.mrb[0].mxu0
      %v3100 = vadd.f32 0.0, %v3099
      %v3101 = vpop.f32.mrb[0].mxu0
      %3102 = vdwg.mxu0
      %v3104 = vsel %vm1512, %v2223, 0
      %3106 = vmatprep.subr.mxu0 0.0
      %3107 = vmatpush1.msra.mxu0 %v308
      %3108 = vmatprep.subr.mxu0 0.0
      %3109 = vmatpush1.msra.mxu0 0.0
      %3110 = vmatprep.subr.mxu0 0.0
      %3111 = vmatpush1.msra.mxu0 0.0
      %3112 = vmatprep.subr.mxu0 0.0
      %3113 = vmatpush1.msra.mxu0 0.0
      %3114 = vmatprep.subr.mxu0 0.0
      %3115 = vmatpush1.msra.mxu0 0.0
      %3116 = vmatprep.subr.mxu0 0.0
      %3117 = vmatpush1.msra.mxu0 0.0
      %3118 = vmatprep.subr.mxu0 0.0
      %3119 = vmatpush1.msra.mxu0 0.0
      %3120 = vmatprep.subr.mxu0 0.0
      %3121 = vmatpush1.msra.mxu0 0.0
      %3122 = vmatprep.subr.mxu0 0.0
      %3123 = vmatpush1.msra.mxu0 0.0
      %3124 = vmatprep.subr.mxu0 0.0
      %3125 = vmatpush1.msra.mxu0 0.0
      %3126 = vmatprep.subr.mxu0 0.0
      %3127 = vmatpush1.msra.mxu0 0.0
      %3128 = vmatprep.subr.mxu0 0.0
      %3129 = vmatpush1.msra.mxu0 0.0
      %3130 = vmatprep.subr.mxu0 0.0
      %3131 = vmatpush1.msra.mxu0 0.0
      %3132 = vmatprep.subr.mxu0 0.0
      %3133 = vmatpush1.msra.mxu0 0.0
      %3134 = vmatprep.subr.mxu0 0.0
      %3135 = vmatpush1.msra.mxu0 0.0
      %3136 = vmatprep.subr.mxu0 0.0
      %3137 = vmatpush1.msra.mxu0 0.0
      %3138 = vmatprep.subr.mxu0 0.0
      %3139 = vmatpush1.msra.mxu0 0.0
      %3140 = vmatprep.subr.mxu0 0.0
      %3141 = vmatpush1.msra.mxu0 0.0
      %3142 = vmatprep.subr.mxu0 0.0
      %3143 = vmatpush1.msra.mxu0 0.0
      %3144 = vmatprep.subr.mxu0 0.0
      %3145 = vmatpush1.msra.mxu0 0.0
      %3146 = vmatprep.subr.mxu0 0.0
      %3147 = vmatpush1.msra.mxu0 0.0
      %3148 = vmatprep.subr.mxu0 0.0
      %3149 = vmatpush1.msra.mxu0 0.0
      %3150 = vmatprep.subr.mxu0 0.0
      %3151 = vmatpush1.msra.mxu0 0.0
      %3152 = vmatprep.subr.mxu0 0.0
      %3153 = vmatpush1.msra.mxu0 0.0
      %3154 = vmatprep.subr.mxu0 0.0
      %3155 = vmatpush1.msra.mxu0 0.0
      %3156 = vmatprep.subr.mxu0 0.0
      %3157 = vmatpush1.msra.mxu0 0.0
      %3158 = vmatprep.subr.mxu0 0.0
      %3159 = vmatpush1.msra.mxu0 0.0
      %3160 = vmatprep.subr.mxu0 0.0
      %3161 = vmatpush1.msra.mxu0 0.0
      %3162 = vmatprep.subr.mxu0 0.0
      %3163 = vmatpush1.msra.mxu0 0.0
      %3164 = vmatprep.subr.mxu0 0.0
      %3165 = vmatpush1.msra.mxu0 0.0
      %3166 = vmatprep.subr.mxu0 0.0
      %3167 = vmatpush1.msra.mxu0 0.0
      %3168 = vmatprep.subr.mxu0 0.0
      %3169 = vmatpush1.msra.mxu0 0.0
      %3170 = vmatprep.mubr.f32.mxu0 0.0
      %3171 = vmatmul.mubr.f32.gmra.mrb[0].mxu0 %v3104
      %v3172 = vpop.f32.mrb[0].mxu0
      %v3173 = vadd.f32 0.0, %v3172
      %v3174 = vpop.f32.mrb[0].mxu0
      %3175 = vdwg.mxu0
      %v3177 = vsel %vm1512, %v2224, 0
      %3179 = vmatprep.subr.mxu0 0.0
      %3180 = vmatpush1.msra.mxu0 %v309
      %3181 = vmatprep.subr.mxu0 0.0
      %3182 = vmatpush1.msra.mxu0 0.0
      %3183 = vmatprep.subr.mxu0 0.0
      %3184 = vmatpush1.msra.mxu0 0.0
      %3185 = vmatprep.subr.mxu0 0.0
      %3186 = vmatpush1.msra.mxu0 0.0
      %3187 = vmatprep.subr.mxu0 0.0
      %3188 = vmatpush1.msra.mxu0 0.0
      %3189 = vmatprep.subr.mxu0 0.0
      %3190 = vmatpush1.msra.mxu0 0.0
      %3191 = vmatprep.subr.mxu0 0.0
      %3192 = vmatpush1.msra.mxu0 0.0
      %3193 = vmatprep.subr.mxu0 0.0
      %3194 = vmatpush1.msra.mxu0 0.0
      %3195 = vmatprep.subr.mxu0 0.0
      %3196 = vmatpush1.msra.mxu0 0.0
      %3197 = vmatprep.subr.mxu0 0.0
      %3198 = vmatpush1.msra.mxu0 0.0
      %3199 = vmatprep.subr.mxu0 0.0
      %3200 = vmatpush1.msra.mxu0 0.0
      %3201 = vmatprep.subr.mxu0 0.0
      %3202 = vmatpush1.msra.mxu0 0.0
      %3203 = vmatprep.subr.mxu0 0.0
      %3204 = vmatpush1.msra.mxu0 0.0
      %3205 = vmatprep.subr.mxu0 0.0
      %3206 = vmatpush1.msra.mxu0 0.0
      %3207 = vmatprep.subr.mxu0 0.0
      %3208 = vmatpush1.msra.mxu0 0.0
      %3209 = vmatprep.subr.mxu0 0.0
      %3210 = vmatpush1.msra.mxu0 0.0
      %3211 = vmatprep.subr.mxu0 0.0
      %3212 = vmatpush1.msra.mxu0 0.0
      %3213 = vmatprep.subr.mxu0 0.0
      %3214 = vmatpush1.msra.mxu0 0.0
      %3215 = vmatprep.subr.mxu0 0.0
      %3216 = vmatpush1.msra.mxu0 0.0
      %3217 = vmatprep.subr.mxu0 0.0
      %3218 = vmatpush1.msra.mxu0 0.0
      %3219 = vmatprep.subr.mxu0 0.0
      %3220 = vmatpush1.msra.mxu0 0.0
      %3221 = vmatprep.subr.mxu0 0.0
      %3222 = vmatpush1.msra.mxu0 0.0
      %3223 = vmatprep.subr.mxu0 0.0
      %3224 = vmatpush1.msra.mxu0 0.0
      %3225 = vmatprep.subr.mxu0 0.0
      %3226 = vmatpush1.msra.mxu0 0.0
      %3227 = vmatprep.subr.mxu0 0.0
      %3228 = vmatpush1.msra.mxu0 0.0
      %3229 = vmatprep.subr.mxu0 0.0
      %3230 = vmatpush1.msra.mxu0 0.0
      %3231 = vmatprep.subr.mxu0 0.0
      %3232 = vmatpush1.msra.mxu0 0.0
      %3233 = vmatprep.subr.mxu0 0.0
      %3234 = vmatpush1.msra.mxu0 0.0
      %3235 = vmatprep.subr.mxu0 0.0
      %3236 = vmatpush1.msra.mxu0 0.0
      %3237 = vmatprep.subr.mxu0 0.0
      %3238 = vmatpush1.msra.mxu0 0.0
      %3239 = vmatprep.subr.mxu0 0.0
      %3240 = vmatpush1.msra.mxu0 0.0
      %3241 = vmatprep.subr.mxu0 0.0
      %3242 = vmatpush1.msra.mxu0 0.0
      %3243 = vmatprep.mubr.f32.mxu0 0.0
      %3244 = vmatmul.mubr.f32.gmra.mrb[0].mxu0 %v3177
      %v3245 = vpop.f32.mrb[0].mxu0
      %v3246 = vadd.f32 0.0, %v3245
      %v3247 = vpop.f32.mrb[0].mxu0
      %3248 = vdwg.mxu0
      %v3250 = vsel %vm1512, %v2225, 0
      %3252 = vmatprep.subr.mxu0 0.0
      %3253 = vmatpush1.msra.mxu0 %v310
      %3254 = vmatprep.subr.mxu0 0.0
      %3255 = vmatpush1.msra.mxu0 0.0
      %3256 = vmatprep.subr.mxu0 0.0
      %3257 = vmatpush1.msra.mxu0 0.0
      %3258 = vmatprep.subr.mxu0 0.0
      %3259 = vmatpush1.msra.mxu0 0.0
      %3260 = vmatprep.subr.mxu0 0.0
      %3261 = vmatpush1.msra.mxu0 0.0
      %3262 = vmatprep.subr.mxu0 0.0
      %3263 = vmatpush1.msra.mxu0 0.0
      %3264 = vmatprep.subr.mxu0 0.0
      %3265 = vmatpush1.msra.mxu0 0.0
      %3266 = vmatprep.subr.mxu0 0.0
      %3267 = vmatpush1.msra.mxu0 0.0
      %3268 = vmatprep.subr.mxu0 0.0
      %3269 = vmatpush1.msra.mxu0 0.0
      %3270 = vmatprep.subr.mxu0 0.0
      %3271 = vmatpush1.msra.mxu0 0.0
      %3272 = vmatprep.subr.mxu0 0.0
      %3273 = vmatpush1.msra.mxu0 0.0
      %3274 = vmatprep.subr.mxu0 0.0
      %3275 = vmatpush1.msra.mxu0 0.0
      %3276 = vmatprep.subr.mxu0 0.0
      %3277 = vmatpush1.msra.mxu0 0.0
      %3278 = vmatprep.subr.mxu0 0.0
      %3279 = vmatpush1.msra.mxu0 0.0
      %3280 = vmatprep.subr.mxu0 0.0
      %3281 = vmatpush1.msra.mxu0 0.0
      %3282 = vmatprep.subr.mxu0 0.0
      %3283 = vmatpush1.msra.mxu0 0.0
      %3284 = vmatprep.subr.mxu0 0.0
      %3285 = vmatpush1.msra.mxu0 0.0
      %3286 = vmatprep.subr.mxu0 0.0
      %3287 = vmatpush1.msra.mxu0 0.0
      %3288 = vmatprep.subr.mxu0 0.0
      %3289 = vmatpush1.msra.mxu0 0.0
      %3290 = vmatprep.subr.mxu0 0.0
      %3291 = vmatpush1.msra.mxu0 0.0
      %3292 = vmatprep.subr.mxu0 0.0
      %3293 = vmatpush1.msra.mxu0 0.0
      %3294 = vmatprep.subr.mxu0 0.0
      %3295 = vmatpush1.msra.mxu0 0.0
      %3296 = vmatprep.subr.mxu0 0.0
      %3297 = vmatpush1.msra.mxu0 0.0
      %3298 = vmatprep.subr.mxu0 0.0
      %3299 = vmatpush1.msra.mxu0 0.0
      %3300 = vmatprep.subr.mxu0 0.0
      %3301 = vmatpush1.msra.mxu0 0.0
      %3302 = vmatprep.subr.mxu0 0.0
      %3303 = vmatpush1.msra.mxu0 0.0
      %3304 = vmatprep.subr.mxu0 0.0
      %3305 = vmatpush1.msra.mxu0 0.0
      %3306 = vmatprep.subr.mxu0 0.0
      %3307 = vmatpush1.msra.mxu0 0.0
      %3308 = vmatprep.subr.mxu0 0.0
      %3309 = vmatpush1.msra.mxu0 0.0
      %3310 = vmatprep.subr.mxu0 0.0
      %3311 = vmatpush1.msra.mxu0 0.0
      %3312 = vmatprep.subr.mxu0 0.0
      %3313 = vmatpush1.msra.mxu0 0.0
      %3314 = vmatprep.subr.mxu0 0.0
      %3315 = vmatpush1.msra.mxu0 0.0
      %3316 = vmatprep.mubr.f32.mxu0 0.0
      %3317 = vmatmul.mubr.f32.gmra.mrb[0].mxu0 %v3250
      %v3318 = vpop.f32.mrb[0].mxu0
      %v3319 = vadd.f32 0.0, %v3318
      %v3320 = vpop.f32.mrb[0].mxu0
      %3321 = vdwg.mxu0
      %v3323 = vsel %vm1512, %v2226, 0
      %3325 = vmatprep.subr.mxu0 0.0
      %3326 = vmatpush1.msra.mxu0 %v311
      %3327 = vmatprep.subr.mxu0 0.0
      %3328 = vmatpush1.msra.mxu0 0.0
      %3329 = vmatprep.subr.mxu0 0.0
      %3330 = vmatpush1.msra.mxu0 0.0
      %3331 = vmatprep.subr.mxu0 0.0
      %3332 = vmatpush1.msra.mxu0 0.0
      %3333 = vmatprep.subr.mxu0 0.0
      %3334 = vmatpush1.msra.mxu0 0.0
      %3335 = vmatprep.subr.mxu0 0.0
      %3336 = vmatpush1.msra.mxu0 0.0
      %3337 = vmatprep.subr.mxu0 0.0
      %3338 = vmatpush1.msra.mxu0 0.0
      %3339 = vmatprep.subr.mxu0 0.0
      %3340 = vmatpush1.msra.mxu0 0.0
      %3341 = vmatprep.subr.mxu0 0.0
      %3342 = vmatpush1.msra.mxu0 0.0
      %3343 = vmatprep.subr.mxu0 0.0
      %3344 = vmatpush1.msra.mxu0 0.0
      %3345 = vmatprep.subr.mxu0 0.0
      %3346 = vmatpush1.msra.mxu0 0.0
      %3347 = vmatprep.subr.mxu0 0.0
      %3348 = vmatpush1.msra.mxu0 0.0
      %3349 = vmatprep.subr.mxu0 0.0
      %3350 = vmatpush1.msra.mxu0 0.0
      %3351 = vmatprep.subr.mxu0 0.0
      %3352 = vmatpush1.msra.mxu0 0.0
      %3353 = vmatprep.subr.mxu0 0.0
      %3354 = vmatpush1.msra.mxu0 0.0
      %3355 = vmatprep.subr.mxu0 0.0
      %3356 = vmatpush1.msra.mxu0 0.0
      %3357 = vmatprep.subr.mxu0 0.0
      %3358 = vmatpush1.msra.mxu0 0.0
      %3359 = vmatprep.subr.mxu0 0.0
      %3360 = vmatpush1.msra.mxu0 0.0
      %3361 = vmatprep.subr.mxu0 0.0
      %3362 = vmatpush1.msra.mxu0 0.0
      %3363 = vmatprep.subr.mxu0 0.0
      %3364 = vmatpush1.msra.mxu0 0.0
      %3365 = vmatprep.subr.mxu0 0.0
      %3366 = vmatpush1.msra.mxu0 0.0
      %3367 = vmatprep.subr.mxu0 0.0
      %3368 = vmatpush1.msra.mxu0 0.0
      %3369 = vmatprep.subr.mxu0 0.0
      %3370 = vmatpush1.msra.mxu0 0.0
      %3371 = vmatprep.subr.mxu0 0.0
      %3372 = vmatpush1.msra.mxu0 0.0
      %3373 = vmatprep.subr.mxu0 0.0
      %3374 = vmatpush1.msra.mxu0 0.0
      %3375 = vmatprep.subr.mxu0 0.0
      %3376 = vmatpush1.msra.mxu0 0.0
      %3377 = vmatprep.subr.mxu0 0.0
      %3378 = vmatpush1.msra.mxu0 0.0
      %3379 = vmatprep.subr.mxu0 0.0
      %3380 = vmatpush1.msra.mxu0 0.0
      %3381 = vmatprep.subr.mxu0 0.0
      %3382 = vmatpush1.msra.mxu0 0.0
      %3383 = vmatprep.subr.mxu0 0.0
      %3384 = vmatpush1.msra.mxu0 0.0
      %3385 = vmatprep.subr.mxu0 0.0
      %3386 = vmatpush1.msra.mxu0 0.0
      %3387 = vmatprep.subr.mxu0 0.0
      %3388 = vmatpush1.msra.mxu0 0.0
      %3389 = vmatprep.mubr.f32.mxu0 0.0
      %3390 = vmatmul.mubr.f32.gmra.mrb[0].mxu0 %v3323
      %v3391 = vpop.f32.mrb[0].mxu0
      %v3392 = vadd.f32 0.0, %v3391
      %v3393 = vpop.f32.mrb[0].mxu0
      %3394 = vdwg.mxu0
      %v3395 = vcombine.low %v2297, %v2443
      %v3396 = vcombine.high %v2297, %v2443
      %v3398 = vunpack.c.l.s4 1983009808
      %v3399 = vunpack.c.0.s8 %v3398
      %v3400 = vlaneseq
      %v3401 = vshrl.u32 %v3400, 7
      %v3402 = vsub.s32 %v3399, %v3401
      %v3403 = vrot.slane %v3395, %v3402
      %v3405 = vunpack.c.l.s4 1983009808
      %v3406 = vunpack.c.0.s8 %v3405
      %v3407 = vlaneseq
      %v3408 = vshrl.u32 %v3407, 7
      %v3409 = vsub.s32 %v3406, %v3408
      %v3410 = vrot.slane %v3396, %v3409
      %v3411 = vcombine.low %v2370, %v2516
      %v3412 = vcombine.high %v2370, %v2516
      %v3414 = vunpack.c.l.s4 1983009808
      %v3415 = vunpack.c.0.s8 %v3414
      %v3416 = vlaneseq
      %v3417 = vshrl.u32 %v3416, 7
      %v3418 = vsub.s32 %v3415, %v3417
      %v3419 = vrot.slane %v3411, %v3418
      %v3421 = vunpack.c.l.s4 1983009808
      %v3422 = vunpack.c.0.s8 %v3421
      %v3423 = vlaneseq
      %v3424 = vshrl.u32 %v3423, 7
      %v3425 = vsub.s32 %v3422, %v3424
      %v3426 = vrot.slane %v3412, %v3425
      %v3427 = vcombine.low %v2589, %v2735
      %v3428 = vcombine.high %v2589, %v2735
      %v3430 = vunpack.c.l.s4 1983009808
      %v3431 = vunpack.c.0.s8 %v3430
      %v3432 = vlaneseq
      %v3433 = vshrl.u32 %v3432, 7
      %v3434 = vsub.s32 %v3431, %v3433
      %v3435 = vrot.slane %v3427, %v3434
      %v3437 = vunpack.c.l.s4 1983009808
      %v3438 = vunpack.c.0.s8 %v3437
      %v3439 = vlaneseq
      %v3440 = vshrl.u32 %v3439, 7
      %v3441 = vsub.s32 %v3438, %v3440
      %v3442 = vrot.slane %v3428, %v3441
      %v3443 = vcombine.low %v2662, %v2808
      %v3444 = vcombine.high %v2662, %v2808
      %v3446 = vunpack.c.l.s4 1983009808
      %v3447 = vunpack.c.0.s8 %v3446
      %v3448 = vlaneseq
      %v3449 = vshrl.u32 %v3448, 7
      %v3450 = vsub.s32 %v3447, %v3449
      %v3451 = vrot.slane %v3443, %v3450
      %v3453 = vunpack.c.l.s4 1983009808
      %v3454 = vunpack.c.0.s8 %v3453
      %v3455 = vlaneseq
      %v3456 = vshrl.u32 %v3455, 7
      %v3457 = vsub.s32 %v3454, %v3456
      %v3458 = vrot.slane %v3444, %v3457
      %v3459 = vcombine.low %v3403, %v3419
      %v3460 = vcombine.high %v3403, %v3419
      %v3462 = vunpack.c.l.s4 1934713408
      %v3463 = vunpack.c.0.s8 %v3462
      %v3464 = vlaneseq
      %v3465 = vshrl.u32 %v3464, 7
      %v3466 = vsub.s32 %v3463, %v3465
      %v3467 = vrot.slane %v3459, %v3466
      %v3469 = vunpack.c.l.s4 1934713408
      %v3470 = vunpack.c.0.s8 %v3469
      %v3471 = vlaneseq
      %v3472 = vshrl.u32 %v3471, 7
      %v3473 = vsub.s32 %v3470, %v3472
      %v3474 = vrot.slane %v3460, %v3473
      %v3475 = vcombine.low %v3410, %v3426
      %v3476 = vcombine.high %v3410, %v3426
      %v3478 = vunpack.c.l.s4 1934713408
      %v3479 = vunpack.c.0.s8 %v3478
      %v3480 = vlaneseq
      %v3481 = vshrl.u32 %v3480, 7
      %v3482 = vsub.s32 %v3479, %v3481
      %v3483 = vrot.slane %v3475, %v3482
      %v3485 = vunpack.c.l.s4 1934713408
      %v3486 = vunpack.c.0.s8 %v3485
      %v3487 = vlaneseq
      %v3488 = vshrl.u32 %v3487, 7
      %v3489 = vsub.s32 %v3486, %v3488
      %v3490 = vrot.slane %v3476, %v3489
      %v3491 = vcombine.low %v3435, %v3451
      %v3492 = vcombine.high %v3435, %v3451
      %v3494 = vunpack.c.l.s4 1934713408
      %v3495 = vunpack.c.0.s8 %v3494
      %v3496 = vlaneseq
      %v3497 = vshrl.u32 %v3496, 7
      %v3498 = vsub.s32 %v3495, %v3497
      %v3499 = vrot.slane %v3491, %v3498
      %v3501 = vunpack.c.l.s4 1934713408
      %v3502 = vunpack.c.0.s8 %v3501
      %v3503 = vlaneseq
      %v3504 = vshrl.u32 %v3503, 7
      %v3505 = vsub.s32 %v3502, %v3504
      %v3506 = vrot.slane %v3492, %v3505
      %v3507 = vcombine.low %v3442, %v3458
      %v3508 = vcombine.high %v3442, %v3458
      %v3510 = vunpack.c.l.s4 1934713408
      %v3511 = vunpack.c.0.s8 %v3510
      %v3512 = vlaneseq
      %v3513 = vshrl.u32 %v3512, 7
      %v3514 = vsub.s32 %v3511, %v3513
      %v3515 = vrot.slane %v3507, %v3514
      %v3517 = vunpack.c.l.s4 1934713408
      %v3518 = vunpack.c.0.s8 %v3517
      %v3519 = vlaneseq
      %v3520 = vshrl.u32 %v3519, 7
      %v3521 = vsub.s32 %v3518, %v3520
      %v3522 = vrot.slane %v3508, %v3521
      %v3523 = vcombine.low %v3467, %v3499
      %v3524 = vcombine.high %v3467, %v3499
      %v3525 = vcombine.low %v3474, %v3506
      %v3526 = vcombine.high %v3474, %v3506
      %v3527 = vcombine.low %v3483, %v3515
      %v3528 = vcombine.high %v3483, %v3515
      %v3529 = vcombine.low %v3490, %v3522
      %v3530 = vcombine.high %v3490, %v3522
      %v3531 = vadd.f32 %v3523, %v2881
      %v3532 = vadd.f32 %v3524, %v2954
      %v3533 = vadd.f32 %v3525, %v3027
      %v3534 = vadd.f32 %v3526, %v3100
      %v3535 = vadd.f32 %v3527, %v3173
      %v3536 = vadd.f32 %v3528, %v3246
      %v3537 = vadd.f32 %v3529, %v3319
      %v3538 = vadd.f32 %v3530, %v3392
      %v3539 = vstv %s287
      %v3540 = vmul.f32 %v3539, %v3531
      %v3541 = vmul.f32 %v3539, %v3532
      %v3542 = vmul.f32 %v3539, %v3533
      %v3543 = vmul.f32 %v3539, %v3534
      %v3544 = vmul.f32 %v3539, %v3535
      %v3545 = vmul.f32 %v3539, %v3536
      %v3546 = vmul.f32 %v3539, %v3537
      %v3547 = vmul.f32 %v3539, %v3538
      %v3548 = vadd.f32 %v3540, %v312
      %v3549 = vadd.f32 %v3541, %v313
      %v3550 = vadd.f32 %v3542, %v314
      %v3551 = vadd.f32 %v3543, %v315
      %v3552 = vadd.f32 %v3544, %v316
      %v3553 = vadd.f32 %v3545, %v317
      %v3554 = vadd.f32 %v3546, %v318
      %v3555 = vadd.f32 %v3547, %v319
      %vm3556 = vcmask 130048
      %3557 = vst.msk [vmem:[%s285] sm:$0xff] %vm3556, %v3548
      %3558 = vst.msk [vmem:[%s285 + $0x8] sm:$0xff] %vm3556, %v3549
      %3559 = vst.msk [vmem:[%s285 + $0x10] sm:$0xff] %vm3556, %v3550
      %3560 = vst.msk [vmem:[%s285 + $0x18] sm:$0xff] %vm3556, %v3551
      %3561 = vst.msk [vmem:[%s285 + $0x20] sm:$0xff] %vm3556, %v3552
      %3562 = vst.msk [vmem:[%s285 + $0x28] sm:$0xff] %vm3556, %v3553
      %3563 = vst.msk [vmem:[%s285 + $0x30] sm:$0xff] %vm3556, %v3554
      %3564 = vst.msk [vmem:[%s285 + $0x38] sm:$0xff] %vm3556, %v3555
      %p3565 = scmp.lt.s32.totalorder %s17, 1
      %s3566 = scalar_select %p3565, %s17, 1
      %s3567 = smul.addr %s3566, 8
      %s3568 = smul.addr %s3567, 8
      %s3569 = scalar_lea.vmem %s5, %s3568
      // Predicated region
      $region41: #{criss_cross_attention.3} parent=39 // pred_check
        %p3570 = pneg %p160
      $region42: #{criss_cross_attention.3} parent=39 // pred_check_branch
        %3572 = sbr.rel (%p3570) target = $region44
      $region43: #{criss_cross_attention.3} parent=39 // pred_region
        _
      $region44: #{criss_cross_attention.3} parent=39 // pred_fallthru
        _
    $region40: #{criss_cross_attention.3} parent=5 // pred_fallthru
      _
    %p3573 = scmp.le.s32.totalorder 2, %s12
    // Predicated region
    $region45: #{criss_cross_attention.3} parent=5 // pred_check
      %p3574 = pneg %p3573
    $region46: #{criss_cross_attention.3} parent=5 // pred_check_branch
      %3576 = sbr.rel (%p3574) target = $region48
    $region47: #{criss_cross_attention.3} parent=5 // pred_region
      %s3577 = ssub.s32 %s12, 2
      // Predicated region
      $region49: #{criss_cross_attention.3} parent=47 // pred_check
        %p3578 = pneg %p166
      $region50: #{criss_cross_attention.3} parent=47 // pred_check_branch
        %3580 = sbr.rel (%p3578) target = $region52
      $region51: #{criss_cross_attention.3} parent=47 // pred_region
        %p3581 = scmp.lt.s32.totalorder %s18, 1
        %s3582 = scalar_select %p3581, %s18, 1
        %s3583 = smul.addr %s3582, 8
        %s3584 = smul.addr %s3583, 8
        %s3585 = scalar_lea.vmem %s5, %s3584
      $region52: #{criss_cross_attention.3} parent=47 // pred_fallthru
        _
    $region48: #{criss_cross_attention.3} parent=5 // pred_fallthru
      _
  $region6: #{criss_cross_attention.3} parent=0 // loop_footer
    %s16 = sadd.s32 1, %s12
  $region7: #{criss_cross_attention.3} parent=0 // loop_footer_branch
    %11 = sbr.rel target = $region3
  $region8: #{criss_cross_attention.3} parent=0 // loop_exit
    _

</llo_original>
